<compile_context>
chip_gen: v5e
topology: v5e:2x2
jax: 0.10.0
libtpu: 0.0.40
codegen_flags: <defaults>
</compile_context>

<pallas_src>
import functools

import jax
import jax.numpy as jnp
import numpy as np
from jax import lax
from jax.experimental import pallas as pl
from jax.experimental.pallas import tpu as pltpu

CHANNELS = [3, 24, 16, 12]
KERNEL_SIZE = 5
OUT_CHANNELS = 8
PADDING = 2
STRIDE = 2

# Images per grid step (GEMM M sub-tile).  8 keeps the biggest f32 accumulator
# at (128, 384) = ~48 vregs (review: cap B to avoid spilling the acc).
BATCH_TILE = 8


# ------------------------------ static geometry ------------------------------
def _layer_geoms(image_size):
    """Per-layer static geometry for a square input of size `image_size`."""
    chans = CHANNELS + [OUT_CHANNELS]
    geoms = []
    s = image_size
    for i in range(len(chans) - 1):
        cin, cout = chans[i], chans[i + 1]
        oh = (s + 2 * PADDING - KERNEL_SIZE) // STRIDE + 1
        geoms.append(
            dict(
                s_in=s, cin=cin, cout=cout, oh=oh,
                k=s * cin,                   # GEMM K lanes: (w_in, ci)
                j=oh * cout,                 # GEMM output lanes: (ow, co)
                hq=(s + 2 * PADDING) // 2,   # H-phase-split padded row count
            )
        )
        s = oh
    return geoms


# ------------------------------- Pallas kernel --------------------------------
def _encoder_kernel(x_ref, b1, c1, b2, c2, b3, c3, b4, c4, o_ref,
                    s2, s3, s4, *, geoms, bt):
    b_refs = (b1, b2, b3, b4)
    c_refs = (c1, c2, c3, c4)
    s_refs = (s2, s3, s4)   # phase-split padded inputs of layers 2..4 (VMEM f32)

    def conv_layer(src_ref, b_ref, c_ref, g, relu):
        # src_ref: (2, hq, B, k) f32   phase-split, H-padded rows
        # b_ref:   (5, k, j)     bf16  banded weights (kw taps + W stride folded in)
        # c_ref:   (1, j)        f32   tiled bias
        oh, k, j = g["oh"], g["k"], g["j"]
        m = oh * bt
        acc = None
        for kh in range(KERNEL_SIZE):
            lhs = src_ref[kh % 2, kh // 2: kh // 2 + oh, :, :]   # (oh, B, k)
            lhs = lhs.reshape(m, k).astype(jnp.bfloat16)          # free reshape (B=8)
            d = jnp.dot(lhs, b_ref[kh], preferred_element_type=jnp.float32)
            acc = d if acc is None else acc + d                   # f32 accumulate
        acc = acc + c_ref[...]                                    # bias, once
        if relu:
            acc = jnp.maximum(acc, 0.0)
        return acc                                                # (m, j), (row, image)-major

    def repack(acc, dst_ref, g):
        # acc rows ordered (r, b): even output rows -> phase 0, odd -> phase 1,
        # both landing at padded-row indices 1 .. oh//2 of the next layer input.
        oh, j = g["oh"], g["j"]
        half = oh // 2
        hq = dst_ref.shape[1]
        a3 = acc.reshape(half, 2 * bt, j)                 # free (B=8 sublane tile)
        dst_ref[0, 1:1 + half, :, :] = a3[:, :bt, :]      # even rows, bulk store
        dst_ref[1, 1:1 + half, :, :] = a3[:, bt:, :]      # odd rows, bulk store
        # Zero only the halo rows, every step (scratch is per-core & persistent;
        # a one-time init under program_id==0 is unsafe with "parallel" grid).
        zrow = jnp.zeros((bt, j), dst_ref.dtype)
        dst_ref[0, 0, :, :] = zrow
        dst_ref[1, 0, :, :] = zrow
        dst_ref[0, hq - 1, :, :] = zrow
        dst_ref[1, hq - 1, :, :] = zrow

    src = x_ref
    n_layers = len(geoms)
    for li, g in enumerate(geoms):
        last = li == n_layers - 1
        acc = conv_layer(src, b_refs[li], c_refs[li], g, relu=not last)
        if last:
            # (oh*B, j) -> (oh, B, j): matches the batched output block layout.
            o_ref[...] = acc.reshape(g["oh"], bt, g["j"]).astype(o_ref.dtype)
        else:
            repack(acc, s_refs[li], g)
            src = s_refs[li]


# ------------------------------ parameter packing -----------------------------
def init_encoder_params(key):
    """Deterministic Conv2d params (PyTorch OIHW layout), kaiming-uniform style."""
    dims = CHANNELS + [OUT_CHANNELS]  # [3, 24, 16, 12, 8]
    params = []
    for i in range(len(dims) - 1):
        cin, cout = dims[i], dims[i + 1]
        key, wk, bk = jax.random.split(key, 3)
        fan_in = cin * KERNEL_SIZE * KERNEL_SIZE
        bound = 1.0 / np.sqrt(fan_in)
        w = jax.random.uniform(
            wk, (cout, cin, KERNEL_SIZE, KERNEL_SIZE), jnp.float32, -bound, bound
        )
        b = jax.random.uniform(bk, (cout,), jnp.float32, -bound, bound)
        params.append((w, b))
    return params


def pack_encoder_params(params, image_size):
    """One-time repack of OIHW conv params into banded bf16 GEMM weights + f32 bias.

    B[kh][(w_in*Cin + ci), (ow*Cout + co)] = W[co, ci, kh, w_in + pad - 2*ow]
    (zero where the tap index falls outside [0, 5)).
    """
    geoms = _layer_geoms(image_size)
    packed = []
    for (w, b), g in zip(params, geoms):
        cin, cout, s_in, oh = g["cin"], g["cout"], g["s_in"], g["oh"]
        w_t = jnp.transpose(w, (2, 3, 1, 0))                # (kh, kw, ci, co)
        w_in = jnp.arange(s_in)[:, None]                    # unpadded input col
        ow = jnp.arange(oh)[None, :]
        kw = w_in + PADDING - STRIDE * ow                   # tap hit by (w_in, ow)
        valid = (kw >= 0) & (kw < KERNEL_SIZE)
        kw_c = jnp.clip(kw, 0, KERNEL_SIZE - 1)
        bg = w_t[:, kw_c]                                   # (5, s_in, oh, ci, co)
        bg = jnp.where(valid[None, :, :, None, None], bg, 0.0)
        bg = jnp.transpose(bg, (0, 1, 3, 2, 4))             # (5, s_in, ci, oh, co)
        bmat = bg.reshape(KERNEL_SIZE, s_in * cin, oh * cout).astype(jnp.bfloat16)
        crow = jnp.tile(b, oh).reshape(1, oh * cout).astype(jnp.float32)
        packed.append((bmat, crow))
    return packed


# ---------------------------------- forward -----------------------------------
def encoder_forward(x_nchw, packed, *, batch_tile=BATCH_TILE):
    """Fused Pallas Encoder.forward (input/output NCHW like PyTorch)."""
    N, C, H, W = x_nchw.shape
    geoms = _layer_geoms(H)
    g1, gl = geoms[0], geoms[-1]

    # Pad the batch up to a multiple of the sub-batch tile (zeros; sliced off).
    n_pad = (-N) % batch_tile
    if n_pad:
        x_nchw = jnp.pad(x_nchw, ((0, n_pad), (0, 0), (0, 0), (0, 0)))
    n_im = N + n_pad

    # Layer-1 input prep (one-time layout glue on the tiny raw input):
    # NCHW -> NHWC -> pad H by 2 -> flatten (w, ci) lanes -> split padded rows
    # into even/odd phases with batch on the sublane dim: (2, hq1, n_im, W*Cin).
    x = jnp.transpose(x_nchw, (0, 2, 3, 1))
    x = jnp.pad(x, ((0, 0), (PADDING, PADDING), (0, 0), (0, 0)))
    x = x.reshape(n_im, H + 2 * PADDING, W * C)
    x = x.reshape(n_im, g1["hq"], 2, W * C)
    x = jnp.transpose(x, (2, 1, 0, 3))                     # (2, hq1, n_im, k1)

    in_specs = [pl.BlockSpec((2, g1["hq"], batch_tile, g1["k"]),
                             lambda n: (0, 0, n, 0))]
    flat_args = [x]
    for g, (bmat, crow) in zip(geoms, packed):
        # Constant index_map -> weights/bias DMA'd once per core, not per step.
        in_specs.append(
            pl.BlockSpec((KERNEL_SIZE, g["k"], g["j"]), lambda n: (0, 0, 0)))
        in_specs.append(pl.BlockSpec((1, g["j"]), lambda n: (0, 0)))
        flat_args += [bmat, crow]

    scratch_shapes = [
        pltpu.VMEM((2, g["hq"], batch_tile, g["k"]), jnp.float32)
        for g in geoms[1:]
    ]

    kernel = functools.partial(_encoder_kernel, geoms=geoms, bt=batch_tile)
    out = pl.pallas_call(
        kernel,
        out_shape=jax.ShapeDtypeStruct((gl["oh"], n_im, gl["j"]), jnp.float32),
        grid_spec=pltpu.PrefetchScalarGridSpec(
            num_scalar_prefetch=0,
            grid=(n_im // batch_tile,),
            in_specs=in_specs,
            out_specs=pl.BlockSpec((gl["oh"], batch_tile, gl["j"]),
                                   lambda n: (0, n, 0)),
            scratch_shapes=scratch_shapes,
        ),
        compiler_params=pltpu.CompilerParams(
            dimension_semantics=("parallel",),
        ),
    )(*flat_args)

    # (OH, n_im, OW*Cout) -> (n_im, Cout, OH, OW) -> drop batch padding.
    out = out.reshape(gl["oh"], n_im, gl["oh"], OUT_CHANNELS)
    out = jnp.transpose(out, (1, 3, 0, 2))
    return out[:N]


# --------------------------------- reference ----------------------------------
def encoder_reference(x_nchw, params):
    """Pure-JAX reference (lax conv) for correctness checking."""
    x = x_nchw
    n_layers = len(params)
    for i, (w, b) in enumerate(params):
        x = lax.conv_general_dilated(
            x,
            w,
            window_strides=(STRIDE, STRIDE),
            padding=((PADDING, PADDING), (PADDING, PADDING)),
            dimension_numbers=("NCHW", "OIHW", "NCHW"),
        )
        x = x + b[None, :, None, None]
        if i < n_layers - 1:
            x = jnp.maximum(x, 0.0)
    return x


if __name__ == "__main__":
    key = jax.random.PRNGKey(0)
    key, xk = jax.random.split(key)

    # Small shapes consistent with the module: NCHW image, 3 input channels.
    # N=16 -> 2 grid steps of B=8 images (both v7x TensorCores get work).
    N, H = 16, 32
    x = jax.random.normal(xk, (N, 3, H, H), jnp.float32)
    params = init_encoder_params(key)
    packed = pack_encoder_params(params, H)     # one-time bf16 weight repack

    fwd = jax.jit(encoder_forward)
    out = jax.block_until_ready(fwd(x, packed))
    ref = jax.block_until_ready(encoder_reference(x, params))

    assert out.shape == (N, OUT_CHANNELS, 2, 2), out.shape
    # bf16 weights/LHS on the MXU -> loosened tolerance vs the f32 reference.
    np.testing.assert_allclose(np.asarray(out), np.asarray(ref), rtol=3e-2, atol=3e-2)
    print("KERNEL_OK")
</pallas_src>

<mosaic_0001>
module attributes {stable_mosaic.version = 11 : i64} {
  func.func @_encoder_kernel(%arg0: i32, %arg1: memref<2x18x8x96xf32, #tpu.memory_space<vmem>>, %arg2: memref<5x96x384xbf16, #tpu.memory_space<vmem>>, %arg3: memref<1x384xf32, #tpu.memory_space<vmem>>, %arg4: memref<5x384x128xbf16, #tpu.memory_space<vmem>>, %arg5: memref<1x128xf32, #tpu.memory_space<vmem>>, %arg6: memref<5x128x48xbf16, #tpu.memory_space<vmem>>, %arg7: memref<1x48xf32, #tpu.memory_space<vmem>>, %arg8: memref<5x48x16xbf16, #tpu.memory_space<vmem>>, %arg9: memref<1x16xf32, #tpu.memory_space<vmem>>, %arg10: memref<2x8x16xf32, #tpu.memory_space<vmem>>, %arg11: memref<2x10x8x384xf32, #tpu.memory_space<vmem>>, %arg12: memref<2x6x8x128xf32, #tpu.memory_space<vmem>>, %arg13: memref<2x4x8x48xf32, #tpu.memory_space<vmem>>) attributes {dimension_semantics = [#tpu.dimension_semantics<parallel>], iteration_bounds = array<i64: 2>, scalar_prefetch = 0 : i64, scratch_operands = 3 : i64, tpu.core_type = #tpu.core_type<tc>, window_params = [{transform_indices = @transform_0, window_bounds = array<i64: 2, 18, 8, 96>}, {pipeline_mode = #tpu.pipeline_mode<synchronous>, transform_indices = @transform_1, window_bounds = array<i64: 5, 96, 384>}, {pipeline_mode = #tpu.pipeline_mode<synchronous>, transform_indices = @transform_2, window_bounds = array<i64: 1, 384>}, {pipeline_mode = #tpu.pipeline_mode<synchronous>, transform_indices = @transform_3, window_bounds = array<i64: 5, 384, 128>}, {pipeline_mode = #tpu.pipeline_mode<synchronous>, transform_indices = @transform_4, window_bounds = array<i64: 1, 128>}, {pipeline_mode = #tpu.pipeline_mode<synchronous>, transform_indices = @transform_5, window_bounds = array<i64: 5, 128, 48>}, {pipeline_mode = #tpu.pipeline_mode<synchronous>, transform_indices = @transform_6, window_bounds = array<i64: 1, 48>}, {pipeline_mode = #tpu.pipeline_mode<synchronous>, transform_indices = @transform_7, window_bounds = array<i64: 5, 48, 16>}, {pipeline_mode = #tpu.pipeline_mode<synchronous>, transform_indices = @transform_8, window_bounds = array<i64: 1, 16>}, {transform_indices = @transform_9, window_bounds = array<i64: 2, 8, 16>}]} {
    %c0 = arith.constant 0 : index
    %c0_0 = arith.constant 0 : index
    %c0_1 = arith.constant 0 : index
    %c0_2 = arith.constant 0 : index
    %0 = vector.load %arg1[%c0, %c0_0, %c0_1, %c0_2] : memref<2x18x8x96xf32, #tpu.memory_space<vmem>>, vector<1x16x8x96xf32>
    %1 = vector.shape_cast %0 : vector<1x16x8x96xf32> to vector<16x8x96xf32>
    %2 = vector.shape_cast %1 : vector<16x8x96xf32> to vector<128x96xf32>
    %3 = arith.truncf %2 : vector<128x96xf32> to vector<128x96xbf16>
    %c0_3 = arith.constant 0 : index
    %c0_4 = arith.constant 0 : index
    %c0_5 = arith.constant 0 : index
    %4 = vector.load %arg2[%c0_3, %c0_4, %c0_5] : memref<5x96x384xbf16, #tpu.memory_space<vmem>>, vector<1x96x384xbf16>
    %5 = vector.shape_cast %4 : vector<1x96x384xbf16> to vector<96x384xbf16>
    %cst = arith.constant dense<0.000000e+00> : vector<128x384xf32>
    %6 = tpu.matmul %3, %5, %cst {dimension_numbers = #tpu.dot_dimension_numbers<[1], [0], [0], [1], [0, 0, 1, 1], [], []>} : vector<128x96xbf16>, vector<96x384xbf16>, vector<128x384xf32> -> vector<128x384xf32>
    %c1 = arith.constant 1 : index
    %c0_6 = arith.constant 0 : index
    %c0_7 = arith.constant 0 : index
    %c0_8 = arith.constant 0 : index
    %7 = vector.load %arg1[%c1, %c0_6, %c0_7, %c0_8] : memref<2x18x8x96xf32, #tpu.memory_space<vmem>>, vector<1x16x8x96xf32>
    %8 = vector.shape_cast %7 : vector<1x16x8x96xf32> to vector<16x8x96xf32>
    %9 = vector.shape_cast %8 : vector<16x8x96xf32> to vector<128x96xf32>
    %10 = arith.truncf %9 : vector<128x96xf32> to vector<128x96xbf16>
    %c1_9 = arith.constant 1 : index
    %c0_10 = arith.constant 0 : index
    %c0_11 = arith.constant 0 : index
    %11 = vector.load %arg2[%c1_9, %c0_10, %c0_11] : memref<5x96x384xbf16, #tpu.memory_space<vmem>>, vector<1x96x384xbf16>
    %12 = vector.shape_cast %11 : vector<1x96x384xbf16> to vector<96x384xbf16>
    %cst_12 = arith.constant dense<0.000000e+00> : vector<128x384xf32>
    %13 = tpu.matmul %10, %12, %cst_12 {dimension_numbers = #tpu.dot_dimension_numbers<[1], [0], [0], [1], [0, 0, 1, 1], [], []>} : vector<128x96xbf16>, vector<96x384xbf16>, vector<128x384xf32> -> vector<128x384xf32>
    %14 = arith.addf %6, %13 : vector<128x384xf32>
    %c0_13 = arith.constant 0 : index
    %c1_14 = arith.constant 1 : index
    %c0_15 = arith.constant 0 : index
    %c0_16 = arith.constant 0 : index
    %15 = vector.load %arg1[%c0_13, %c1_14, %c0_15, %c0_16] : memref<2x18x8x96xf32, #tpu.memory_space<vmem>>, vector<1x16x8x96xf32>
    %16 = vector.shape_cast %15 : vector<1x16x8x96xf32> to vector<16x8x96xf32>
    %17 = vector.shape_cast %16 : vector<16x8x96xf32> to vector<128x96xf32>
    %18 = arith.truncf %17 : vector<128x96xf32> to vector<128x96xbf16>
    %c2 = arith.constant 2 : index
    %c0_17 = arith.constant 0 : index
    %c0_18 = arith.constant 0 : index
    %19 = vector.load %arg2[%c2, %c0_17, %c0_18] : memref<5x96x384xbf16, #tpu.memory_space<vmem>>, vector<1x96x384xbf16>
    %20 = vector.shape_cast %19 : vector<1x96x384xbf16> to vector<96x384xbf16>
    %cst_19 = arith.constant dense<0.000000e+00> : vector<128x384xf32>
    %21 = tpu.matmul %18, %20, %cst_19 {dimension_numbers = #tpu.dot_dimension_numbers<[1], [0], [0], [1], [0, 0, 1, 1], [], []>} : vector<128x96xbf16>, vector<96x384xbf16>, vector<128x384xf32> -> vector<128x384xf32>
    %22 = arith.addf %14, %21 : vector<128x384xf32>
    %c1_20 = arith.constant 1 : index
    %c1_21 = arith.constant 1 : index
    %c0_22 = arith.constant 0 : index
    %c0_23 = arith.constant 0 : index
    %23 = vector.load %arg1[%c1_20, %c1_21, %c0_22, %c0_23] : memref<2x18x8x96xf32, #tpu.memory_space<vmem>>, vector<1x16x8x96xf32>
    %24 = vector.shape_cast %23 : vector<1x16x8x96xf32> to vector<16x8x96xf32>
    %25 = vector.shape_cast %24 : vector<16x8x96xf32> to vector<128x96xf32>
    %26 = arith.truncf %25 : vector<128x96xf32> to vector<128x96xbf16>
    %c3 = arith.constant 3 : index
    %c0_24 = arith.constant 0 : index
    %c0_25 = arith.constant 0 : index
    %27 = vector.load %arg2[%c3, %c0_24, %c0_25] : memref<5x96x384xbf16, #tpu.memory_space<vmem>>, vector<1x96x384xbf16>
    %28 = vector.shape_cast %27 : vector<1x96x384xbf16> to vector<96x384xbf16>
    %cst_26 = arith.constant dense<0.000000e+00> : vector<128x384xf32>
    %29 = tpu.matmul %26, %28, %cst_26 {dimension_numbers = #tpu.dot_dimension_numbers<[1], [0], [0], [1], [0, 0, 1, 1], [], []>} : vector<128x96xbf16>, vector<96x384xbf16>, vector<128x384xf32> -> vector<128x384xf32>
    %30 = arith.addf %22, %29 : vector<128x384xf32>
    %c0_27 = arith.constant 0 : index
    %c2_28 = arith.constant 2 : index
    %c0_29 = arith.constant 0 : index
    %c0_30 = arith.constant 0 : index
    %31 = vector.load %arg1[%c0_27, %c2_28, %c0_29, %c0_30] : memref<2x18x8x96xf32, #tpu.memory_space<vmem>>, vector<1x16x8x96xf32>
    %32 = vector.shape_cast %31 : vector<1x16x8x96xf32> to vector<16x8x96xf32>
    %33 = vector.shape_cast %32 : vector<16x8x96xf32> to vector<128x96xf32>
    %34 = arith.truncf %33 : vector<128x96xf32> to vector<128x96xbf16>
    %c4 = arith.constant 4 : index
    %c0_31 = arith.constant 0 : index
    %c0_32 = arith.constant 0 : index
    %35 = vector.load %arg2[%c4, %c0_31, %c0_32] : memref<5x96x384xbf16, #tpu.memory_space<vmem>>, vector<1x96x384xbf16>
    %36 = vector.shape_cast %35 : vector<1x96x384xbf16> to vector<96x384xbf16>
    %cst_33 = arith.constant dense<0.000000e+00> : vector<128x384xf32>
    %37 = tpu.matmul %34, %36, %cst_33 {dimension_numbers = #tpu.dot_dimension_numbers<[1], [0], [0], [1], [0, 0, 1, 1], [], []>} : vector<128x96xbf16>, vector<96x384xbf16>, vector<128x384xf32> -> vector<128x384xf32>
    %38 = arith.addf %30, %37 : vector<128x384xf32>
    %c0_34 = arith.constant 0 : index
    %c0_35 = arith.constant 0 : index
    %39 = vector.load %arg3[%c0_34, %c0_35] : memref<1x384xf32, #tpu.memory_space<vmem>>, vector<1x384xf32>
    %40 = vector.broadcast %39 : vector<1x384xf32> to vector<128x384xf32>
    %41 = arith.addf %38, %40 : vector<128x384xf32>
    %cst_36 = arith.constant 0.000000e+00 : f32
    %42 = vector.broadcast %cst_36 : f32 to vector<128x384xf32>
    %43 = arith.maximumf %41, %42 : vector<128x384xf32>
    %44 = vector.shape_cast %43 : vector<128x384xf32> to vector<8x16x384xf32>
    %45 = vector.extract_strided_slice %44 {offsets = [0, 0, 0], sizes = [8, 8, 384], strides = [1, 1, 1]} : vector<8x16x384xf32> to vector<8x8x384xf32>
    %c0_37 = arith.constant 0 : index
    %c1_38 = arith.constant 1 : index
    %c0_39 = arith.constant 0 : index
    %c0_40 = arith.constant 0 : index
    %46 = vector.load %arg11[%c0_37, %c1_38, %c0_39, %c0_40] : memref<2x10x8x384xf32, #tpu.memory_space<vmem>>, vector<1x8x8x384xf32>
    %47 = vector.shape_cast %46 : vector<1x8x8x384xf32> to vector<8x8x384xf32>
    %48 = vector.shape_cast %45 : vector<8x8x384xf32> to vector<1x8x8x384xf32>
    tpu.vector_store %arg11[%c0_37, %c1_38, %c0_39, %c0_40], %48 {strides = array<i32>} : memref<2x10x8x384xf32, #tpu.memory_space<vmem>>, vector<1x8x8x384xf32>,
    %49 = vector.extract_strided_slice %44 {offsets = [0, 8, 0], sizes = [8, 8, 384], strides = [1, 1, 1]} : vector<8x16x384xf32> to vector<8x8x384xf32>
    %c1_41 = arith.constant 1 : index
    %c1_42 = arith.constant 1 : index
    %c0_43 = arith.constant 0 : index
    %c0_44 = arith.constant 0 : index
    %50 = vector.load %arg11[%c1_41, %c1_42, %c0_43, %c0_44] : memref<2x10x8x384xf32, #tpu.memory_space<vmem>>, vector<1x8x8x384xf32>
    %51 = vector.shape_cast %50 : vector<1x8x8x384xf32> to vector<8x8x384xf32>
    %52 = vector.shape_cast %49 : vector<8x8x384xf32> to vector<1x8x8x384xf32>
    tpu.vector_store %arg11[%c1_41, %c1_42, %c0_43, %c0_44], %52 {strides = array<i32>} : memref<2x10x8x384xf32, #tpu.memory_space<vmem>>, vector<1x8x8x384xf32>,
    %cst_45 = arith.constant 0.000000e+00 : f32
    %53 = vector.broadcast %cst_45 : f32 to vector<8x384xf32>
    %c0_46 = arith.constant 0 : index
    %c0_47 = arith.constant 0 : index
    %c0_48 = arith.constant 0 : index
    %c0_49 = arith.constant 0 : index
    %54 = vector.load %arg11[%c0_46, %c0_47, %c0_48, %c0_49] : memref<2x10x8x384xf32, #tpu.memory_space<vmem>>, vector<1x1x8x384xf32>
    %55 = vector.shape_cast %54 : vector<1x1x8x384xf32> to vector<8x384xf32>
    %56 = vector.shape_cast %53 : vector<8x384xf32> to vector<1x1x8x384xf32>
    tpu.vector_store %arg11[%c0_46, %c0_47, %c0_48, %c0_49], %56 {strides = array<i32>} : memref<2x10x8x384xf32, #tpu.memory_space<vmem>>, vector<1x1x8x384xf32>,
    %c1_50 = arith.constant 1 : index
    %c0_51 = arith.constant 0 : index
    %c0_52 = arith.constant 0 : index
    %c0_53 = arith.constant 0 : index
    %57 = vector.load %arg11[%c1_50, %c0_51, %c0_52, %c0_53] : memref<2x10x8x384xf32, #tpu.memory_space<vmem>>, vector<1x1x8x384xf32>
    %58 = vector.shape_cast %57 : vector<1x1x8x384xf32> to vector<8x384xf32>
    %59 = vector.shape_cast %53 : vector<8x384xf32> to vector<1x1x8x384xf32>
    tpu.vector_store %arg11[%c1_50, %c0_51, %c0_52, %c0_53], %59 {strides = array<i32>} : memref<2x10x8x384xf32, #tpu.memory_space<vmem>>, vector<1x1x8x384xf32>,
    %c0_54 = arith.constant 0 : index
    %c9 = arith.constant 9 : index
    %c0_55 = arith.constant 0 : index
    %c0_56 = arith.constant 0 : index
    %60 = vector.load %arg11[%c0_54, %c9, %c0_55, %c0_56] : memref<2x10x8x384xf32, #tpu.memory_space<vmem>>, vector<1x1x8x384xf32>
    %61 = vector.shape_cast %60 : vector<1x1x8x384xf32> to vector<8x384xf32>
    %62 = vector.shape_cast %53 : vector<8x384xf32> to vector<1x1x8x384xf32>
    tpu.vector_store %arg11[%c0_54, %c9, %c0_55, %c0_56], %62 {strides = array<i32>} : memref<2x10x8x384xf32, #tpu.memory_space<vmem>>, vector<1x1x8x384xf32>,
    %c1_57 = arith.constant 1 : index
    %c9_58 = arith.constant 9 : index
    %c0_59 = arith.constant 0 : index
    %c0_60 = arith.constant 0 : index
    %63 = vector.load %arg11[%c1_57, %c9_58, %c0_59, %c0_60] : memref<2x10x8x384xf32, #tpu.memory_space<vmem>>, vector<1x1x8x384xf32>
    %64 = vector.shape_cast %63 : vector<1x1x8x384xf32> to vector<8x384xf32>
    %65 = vector.shape_cast %53 : vector<8x384xf32> to vector<1x1x8x384xf32>
    tpu.vector_store %arg11[%c1_57, %c9_58, %c0_59, %c0_60], %65 {strides = array<i32>} : memref<2x10x8x384xf32, #tpu.memory_space<vmem>>, vector<1x1x8x384xf32>,
    %c0_61 = arith.constant 0 : index
    %c0_62 = arith.constant 0 : index
    %c0_63 = arith.constant 0 : index
    %c0_64 = arith.constant 0 : index
    %66 = vector.load %arg11[%c0_61, %c0_62, %c0_63, %c0_64] : memref<2x10x8x384xf32, #tpu.memory_space<vmem>>, vector<1x8x8x384xf32>
    %67 = vector.shape_cast %66 : vector<1x8x8x384xf32> to vector<8x8x384xf32>
    %68 = vector.shape_cast %67 : vector<8x8x384xf32> to vector<64x384xf32>
    %69 = arith.truncf %68 : vector<64x384xf32> to vector<64x384xbf16>
    %c0_65 = arith.constant 0 : index
    %c0_66 = arith.constant 0 : index
    %c0_67 = arith.constant 0 : index
    %70 = vector.load %arg4[%c0_65, %c0_66, %c0_67] : memref<5x384x128xbf16, #tpu.memory_space<vmem>>, vector<1x384x128xbf16>
    %71 = vector.shape_cast %70 : vector<1x384x128xbf16> to vector<384x128xbf16>
    %cst_68 = arith.constant dense<0.000000e+00> : vector<64x128xf32>
    %72 = tpu.matmul %69, %71, %cst_68 {dimension_numbers = #tpu.dot_dimension_numbers<[1], [0], [0], [1], [0, 0, 1, 1], [], []>} : vector<64x384xbf16>, vector<384x128xbf16>, vector<64x128xf32> -> vector<64x128xf32>
    %c1_69 = arith.constant 1 : index
    %c0_70 = arith.constant 0 : index
    %c0_71 = arith.constant 0 : index
    %c0_72 = arith.constant 0 : index
    %73 = vector.load %arg11[%c1_69, %c0_70, %c0_71, %c0_72] : memref<2x10x8x384xf32, #tpu.memory_space<vmem>>, vector<1x8x8x384xf32>
    %74 = vector.shape_cast %73 : vector<1x8x8x384xf32> to vector<8x8x384xf32>
    %75 = vector.shape_cast %74 : vector<8x8x384xf32> to vector<64x384xf32>
    %76 = arith.truncf %75 : vector<64x384xf32> to vector<64x384xbf16>
    %c1_73 = arith.constant 1 : index
    %c0_74 = arith.constant 0 : index
    %c0_75 = arith.constant 0 : index
    %77 = vector.load %arg4[%c1_73, %c0_74, %c0_75] : memref<5x384x128xbf16, #tpu.memory_space<vmem>>, vector<1x384x128xbf16>
    %78 = vector.shape_cast %77 : vector<1x384x128xbf16> to vector<384x128xbf16>
    %cst_76 = arith.constant dense<0.000000e+00> : vector<64x128xf32>
    %79 = tpu.matmul %76, %78, %cst_76 {dimension_numbers = #tpu.dot_dimension_numbers<[1], [0], [0], [1], [0, 0, 1, 1], [], []>} : vector<64x384xbf16>, vector<384x128xbf16>, vector<64x128xf32> -> vector<64x128xf32>
    %80 = arith.addf %72, %79 : vector<64x128xf32>
    %c0_77 = arith.constant 0 : index
    %c1_78 = arith.constant 1 : index
    %c0_79 = arith.constant 0 : index
    %c0_80 = arith.constant 0 : index
    %81 = vector.load %arg11[%c0_77, %c1_78, %c0_79, %c0_80] : memref<2x10x8x384xf32, #tpu.memory_space<vmem>>, vector<1x8x8x384xf32>
    %82 = vector.shape_cast %81 : vector<1x8x8x384xf32> to vector<8x8x384xf32>
    %83 = vector.shape_cast %82 : vector<8x8x384xf32> to vector<64x384xf32>
    %84 = arith.truncf %83 : vector<64x384xf32> to vector<64x384xbf16>
    %c2_81 = arith.constant 2 : index
    %c0_82 = arith.constant 0 : index
    %c0_83 = arith.constant 0 : index
    %85 = vector.load %arg4[%c2_81, %c0_82, %c0_83] : memref<5x384x128xbf16, #tpu.memory_space<vmem>>, vector<1x384x128xbf16>
    %86 = vector.shape_cast %85 : vector<1x384x128xbf16> to vector<384x128xbf16>
    %cst_84 = arith.constant dense<0.000000e+00> : vector<64x128xf32>
    %87 = tpu.matmul %84, %86, %cst_84 {dimension_numbers = #tpu.dot_dimension_numbers<[1], [0], [0], [1], [0, 0, 1, 1], [], []>} : vector<64x384xbf16>, vector<384x128xbf16>, vector<64x128xf32> -> vector<64x128xf32>
    %88 = arith.addf %80, %87 : vector<64x128xf32>
    %c1_85 = arith.constant 1 : index
    %c1_86 = arith.constant 1 : index
    %c0_87 = arith.constant 0 : index
    %c0_88 = arith.constant 0 : index
    %89 = vector.load %arg11[%c1_85, %c1_86, %c0_87, %c0_88] : memref<2x10x8x384xf32, #tpu.memory_space<vmem>>, vector<1x8x8x384xf32>
    %90 = vector.shape_cast %89 : vector<1x8x8x384xf32> to vector<8x8x384xf32>
    %91 = vector.shape_cast %90 : vector<8x8x384xf32> to vector<64x384xf32>
    %92 = arith.truncf %91 : vector<64x384xf32> to vector<64x384xbf16>
    %c3_89 = arith.constant 3 : index
    %c0_90 = arith.constant 0 : index
    %c0_91 = arith.constant 0 : index
    %93 = vector.load %arg4[%c3_89, %c0_90, %c0_91] : memref<5x384x128xbf16, #tpu.memory_space<vmem>>, vector<1x384x128xbf16>
    %94 = vector.shape_cast %93 : vector<1x384x128xbf16> to vector<384x128xbf16>
    %cst_92 = arith.constant dense<0.000000e+00> : vector<64x128xf32>
    %95 = tpu.matmul %92, %94, %cst_92 {dimension_numbers = #tpu.dot_dimension_numbers<[1], [0], [0], [1], [0, 0, 1, 1], [], []>} : vector<64x384xbf16>, vector<384x128xbf16>, vector<64x128xf32> -> vector<64x128xf32>
    %96 = arith.addf %88, %95 : vector<64x128xf32>
    %c0_93 = arith.constant 0 : index
    %c2_94 = arith.constant 2 : index
    %c0_95 = arith.constant 0 : index
    %c0_96 = arith.constant 0 : index
    %97 = vector.load %arg11[%c0_93, %c2_94, %c0_95, %c0_96] : memref<2x10x8x384xf32, #tpu.memory_space<vmem>>, vector<1x8x8x384xf32>
    %98 = vector.shape_cast %97 : vector<1x8x8x384xf32> to vector<8x8x384xf32>
    %99 = vector.shape_cast %98 : vector<8x8x384xf32> to vector<64x384xf32>
    %100 = arith.truncf %99 : vector<64x384xf32> to vector<64x384xbf16>
    %c4_97 = arith.constant 4 : index
    %c0_98 = arith.constant 0 : index
    %c0_99 = arith.constant 0 : index
    %101 = vector.load %arg4[%c4_97, %c0_98, %c0_99] : memref<5x384x128xbf16, #tpu.memory_space<vmem>>, vector<1x384x128xbf16>
    %102 = vector.shape_cast %101 : vector<1x384x128xbf16> to vector<384x128xbf16>
    %cst_100 = arith.constant dense<0.000000e+00> : vector<64x128xf32>
    %103 = tpu.matmul %100, %102, %cst_100 {dimension_numbers = #tpu.dot_dimension_numbers<[1], [0], [0], [1], [0, 0, 1, 1], [], []>} : vector<64x384xbf16>, vector<384x128xbf16>, vector<64x128xf32> -> vector<64x128xf32>
    %104 = arith.addf %96, %103 : vector<64x128xf32>
    %c0_101 = arith.constant 0 : index
    %c0_102 = arith.constant 0 : index
    %105 = vector.load %arg5[%c0_101, %c0_102] : memref<1x128xf32, #tpu.memory_space<vmem>>, vector<1x128xf32>
    %106 = vector.broadcast %105 : vector<1x128xf32> to vector<64x128xf32>
    %107 = arith.addf %104, %106 : vector<64x128xf32>
    %cst_103 = arith.constant 0.000000e+00 : f32
    %108 = vector.broadcast %cst_103 : f32 to vector<64x128xf32>
    %109 = arith.maximumf %107, %108 : vector<64x128xf32>
    %110 = vector.shape_cast %109 : vector<64x128xf32> to vector<4x16x128xf32>
    %111 = vector.extract_strided_slice %110 {offsets = [0, 0, 0], sizes = [4, 8, 128], strides = [1, 1, 1]} : vector<4x16x128xf32> to vector<4x8x128xf32>
    %c0_104 = arith.constant 0 : index
    %c1_105 = arith.constant 1 : index
    %c0_106 = arith.constant 0 : index
    %c0_107 = arith.constant 0 : index
    %112 = vector.load %arg12[%c0_104, %c1_105, %c0_106, %c0_107] : memref<2x6x8x128xf32, #tpu.memory_space<vmem>>, vector<1x4x8x128xf32>
    %113 = vector.shape_cast %112 : vector<1x4x8x128xf32> to vector<4x8x128xf32>
    %114 = vector.shape_cast %111 : vector<4x8x128xf32> to vector<1x4x8x128xf32>
    tpu.vector_store %arg12[%c0_104, %c1_105, %c0_106, %c0_107], %114 {strides = array<i32>} : memref<2x6x8x128xf32, #tpu.memory_space<vmem>>, vector<1x4x8x128xf32>,
    %115 = vector.extract_strided_slice %110 {offsets = [0, 8, 0], sizes = [4, 8, 128], strides = [1, 1, 1]} : vector<4x16x128xf32> to vector<4x8x128xf32>
    %c1_108 = arith.constant 1 : index
    %c1_109 = arith.constant 1 : index
    %c0_110 = arith.constant 0 : index
    %c0_111 = arith.constant 0 : index
    %116 = vector.load %arg12[%c1_108, %c1_109, %c0_110, %c0_111] : memref<2x6x8x128xf32, #tpu.memory_space<vmem>>, vector<1x4x8x128xf32>
    %117 = vector.shape_cast %116 : vector<1x4x8x128xf32> to vector<4x8x128xf32>
    %118 = vector.shape_cast %115 : vector<4x8x128xf32> to vector<1x4x8x128xf32>
    tpu.vector_store %arg12[%c1_108, %c1_109, %c0_110, %c0_111], %118 {strides = array<i32>} : memref<2x6x8x128xf32, #tpu.memory_space<vmem>>, vector<1x4x8x128xf32>,
    %cst_112 = arith.constant 0.000000e+00 : f32
    %119 = vector.broadcast %cst_112 : f32 to vector<8x128xf32>
    %c0_113 = arith.constant 0 : index
    %c0_114 = arith.constant 0 : index
    %c0_115 = arith.constant 0 : index
    %c0_116 = arith.constant 0 : index
    %120 = vector.load %arg12[%c0_113, %c0_114, %c0_115, %c0_116] : memref<2x6x8x128xf32, #tpu.memory_space<vmem>>, vector<1x1x8x128xf32>
    %121 = vector.shape_cast %120 : vector<1x1x8x128xf32> to vector<8x128xf32>
    %122 = vector.shape_cast %119 : vector<8x128xf32> to vector<1x1x8x128xf32>
    tpu.vector_store %arg12[%c0_113, %c0_114, %c0_115, %c0_116], %122 {strides = array<i32>} : memref<2x6x8x128xf32, #tpu.memory_space<vmem>>, vector<1x1x8x128xf32>,
    %c1_117 = arith.constant 1 : index
    %c0_118 = arith.constant 0 : index
    %c0_119 = arith.constant 0 : index
    %c0_120 = arith.constant 0 : index
    %123 = vector.load %arg12[%c1_117, %c0_118, %c0_119, %c0_120] : memref<2x6x8x128xf32, #tpu.memory_space<vmem>>, vector<1x1x8x128xf32>
    %124 = vector.shape_cast %123 : vector<1x1x8x128xf32> to vector<8x128xf32>
    %125 = vector.shape_cast %119 : vector<8x128xf32> to vector<1x1x8x128xf32>
    tpu.vector_store %arg12[%c1_117, %c0_118, %c0_119, %c0_120], %125 {strides = array<i32>} : memref<2x6x8x128xf32, #tpu.memory_space<vmem>>, vector<1x1x8x128xf32>,
    %c0_121 = arith.constant 0 : index
    %c5 = arith.constant 5 : index
    %c0_122 = arith.constant 0 : index
    %c0_123 = arith.constant 0 : index
    %126 = vector.load %arg12[%c0_121, %c5, %c0_122, %c0_123] : memref<2x6x8x128xf32, #tpu.memory_space<vmem>>, vector<1x1x8x128xf32>
    %127 = vector.shape_cast %126 : vector<1x1x8x128xf32> to vector<8x128xf32>
    %128 = vector.shape_cast %119 : vector<8x128xf32> to vector<1x1x8x128xf32>
    tpu.vector_store %arg12[%c0_121, %c5, %c0_122, %c0_123], %128 {strides = array<i32>} : memref<2x6x8x128xf32, #tpu.memory_space<vmem>>, vector<1x1x8x128xf32>,
    %c1_124 = arith.constant 1 : index
    %c5_125 = arith.constant 5 : index
    %c0_126 = arith.constant 0 : index
    %c0_127 = arith.constant 0 : index
    %129 = vector.load %arg12[%c1_124, %c5_125, %c0_126, %c0_127] : memref<2x6x8x128xf32, #tpu.memory_space<vmem>>, vector<1x1x8x128xf32>
    %130 = vector.shape_cast %129 : vector<1x1x8x128xf32> to vector<8x128xf32>
    %131 = vector.shape_cast %119 : vector<8x128xf32> to vector<1x1x8x128xf32>
    tpu.vector_store %arg12[%c1_124, %c5_125, %c0_126, %c0_127], %131 {strides = array<i32>} : memref<2x6x8x128xf32, #tpu.memory_space<vmem>>, vector<1x1x8x128xf32>,
    %c0_128 = arith.constant 0 : index
    %c0_129 = arith.constant 0 : index
    %c0_130 = arith.constant 0 : index
    %c0_131 = arith.constant 0 : index
    %132 = vector.load %arg12[%c0_128, %c0_129, %c0_130, %c0_131] : memref<2x6x8x128xf32, #tpu.memory_space<vmem>>, vector<1x4x8x128xf32>
    %133 = vector.shape_cast %132 : vector<1x4x8x128xf32> to vector<4x8x128xf32>
    %134 = vector.shape_cast %133 : vector<4x8x128xf32> to vector<32x128xf32>
    %135 = arith.truncf %134 : vector<32x128xf32> to vector<32x128xbf16>
    %c0_132 = arith.constant 0 : index
    %c0_133 = arith.constant 0 : index
    %c0_134 = arith.constant 0 : index
    %136 = vector.load %arg6[%c0_132, %c0_133, %c0_134] : memref<5x128x48xbf16, #tpu.memory_space<vmem>>, vector<1x128x48xbf16>
    %137 = vector.shape_cast %136 : vector<1x128x48xbf16> to vector<128x48xbf16>
    %cst_135 = arith.constant dense<0.000000e+00> : vector<32x48xf32>
    %138 = tpu.matmul %135, %137, %cst_135 {dimension_numbers = #tpu.dot_dimension_numbers<[1], [0], [0], [1], [0, 0, 1, 1], [], []>} : vector<32x128xbf16>, vector<128x48xbf16>, vector<32x48xf32> -> vector<32x48xf32>
    %c1_136 = arith.constant 1 : index
    %c0_137 = arith.constant 0 : index
    %c0_138 = arith.constant 0 : index
    %c0_139 = arith.constant 0 : index
    %139 = vector.load %arg12[%c1_136, %c0_137, %c0_138, %c0_139] : memref<2x6x8x128xf32, #tpu.memory_space<vmem>>, vector<1x4x8x128xf32>
    %140 = vector.shape_cast %139 : vector<1x4x8x128xf32> to vector<4x8x128xf32>
    %141 = vector.shape_cast %140 : vector<4x8x128xf32> to vector<32x128xf32>
    %142 = arith.truncf %141 : vector<32x128xf32> to vector<32x128xbf16>
    %c1_140 = arith.constant 1 : index
    %c0_141 = arith.constant 0 : index
    %c0_142 = arith.constant 0 : index
    %143 = vector.load %arg6[%c1_140, %c0_141, %c0_142] : memref<5x128x48xbf16, #tpu.memory_space<vmem>>, vector<1x128x48xbf16>
    %144 = vector.shape_cast %143 : vector<1x128x48xbf16> to vector<128x48xbf16>
    %cst_143 = arith.constant dense<0.000000e+00> : vector<32x48xf32>
    %145 = tpu.matmul %142, %144, %cst_143 {dimension_numbers = #tpu.dot_dimension_numbers<[1], [0], [0], [1], [0, 0, 1, 1], [], []>} : vector<32x128xbf16>, vector<128x48xbf16>, vector<32x48xf32> -> vector<32x48xf32>
    %146 = arith.addf %138, %145 : vector<32x48xf32>
    %c0_144 = arith.constant 0 : index
    %c1_145 = arith.constant 1 : index
    %c0_146 = arith.constant 0 : index
    %c0_147 = arith.constant 0 : index
    %147 = vector.load %arg12[%c0_144, %c1_145, %c0_146, %c0_147] : memref<2x6x8x128xf32, #tpu.memory_space<vmem>>, vector<1x4x8x128xf32>
    %148 = vector.shape_cast %147 : vector<1x4x8x128xf32> to vector<4x8x128xf32>
    %149 = vector.shape_cast %148 : vector<4x8x128xf32> to vector<32x128xf32>
    %150 = arith.truncf %149 : vector<32x128xf32> to vector<32x128xbf16>
    %c2_148 = arith.constant 2 : index
    %c0_149 = arith.constant 0 : index
    %c0_150 = arith.constant 0 : index
    %151 = vector.load %arg6[%c2_148, %c0_149, %c0_150] : memref<5x128x48xbf16, #tpu.memory_space<vmem>>, vector<1x128x48xbf16>
    %152 = vector.shape_cast %151 : vector<1x128x48xbf16> to vector<128x48xbf16>
    %cst_151 = arith.constant dense<0.000000e+00> : vector<32x48xf32>
    %153 = tpu.matmul %150, %152, %cst_151 {dimension_numbers = #tpu.dot_dimension_numbers<[1], [0], [0], [1], [0, 0, 1, 1], [], []>} : vector<32x128xbf16>, vector<128x48xbf16>, vector<32x48xf32> -> vector<32x48xf32>
    %154 = arith.addf %146, %153 : vector<32x48xf32>
    %c1_152 = arith.constant 1 : index
    %c1_153 = arith.constant 1 : index
    %c0_154 = arith.constant 0 : index
    %c0_155 = arith.constant 0 : index
    %155 = vector.load %arg12[%c1_152, %c1_153, %c0_154, %c0_155] : memref<2x6x8x128xf32, #tpu.memory_space<vmem>>, vector<1x4x8x128xf32>
    %156 = vector.shape_cast %155 : vector<1x4x8x128xf32> to vector<4x8x128xf32>
    %157 = vector.shape_cast %156 : vector<4x8x128xf32> to vector<32x128xf32>
    %158 = arith.truncf %157 : vector<32x128xf32> to vector<32x128xbf16>
    %c3_156 = arith.constant 3 : index
    %c0_157 = arith.constant 0 : index
    %c0_158 = arith.constant 0 : index
    %159 = vector.load %arg6[%c3_156, %c0_157, %c0_158] : memref<5x128x48xbf16, #tpu.memory_space<vmem>>, vector<1x128x48xbf16>
    %160 = vector.shape_cast %159 : vector<1x128x48xbf16> to vector<128x48xbf16>
    %cst_159 = arith.constant dense<0.000000e+00> : vector<32x48xf32>
    %161 = tpu.matmul %158, %160, %cst_159 {dimension_numbers = #tpu.dot_dimension_numbers<[1], [0], [0], [1], [0, 0, 1, 1], [], []>} : vector<32x128xbf16>, vector<128x48xbf16>, vector<32x48xf32> -> vector<32x48xf32>
    %162 = arith.addf %154, %161 : vector<32x48xf32>
    %c0_160 = arith.constant 0 : index
    %c2_161 = arith.constant 2 : index
    %c0_162 = arith.constant 0 : index
    %c0_163 = arith.constant 0 : index
    %163 = vector.load %arg12[%c0_160, %c2_161, %c0_162, %c0_163] : memref<2x6x8x128xf32, #tpu.memory_space<vmem>>, vector<1x4x8x128xf32>
    %164 = vector.shape_cast %163 : vector<1x4x8x128xf32> to vector<4x8x128xf32>
    %165 = vector.shape_cast %164 : vector<4x8x128xf32> to vector<32x128xf32>
    %166 = arith.truncf %165 : vector<32x128xf32> to vector<32x128xbf16>
    %c4_164 = arith.constant 4 : index
    %c0_165 = arith.constant 0 : index
    %c0_166 = arith.constant 0 : index
    %167 = vector.load %arg6[%c4_164, %c0_165, %c0_166] : memref<5x128x48xbf16, #tpu.memory_space<vmem>>, vector<1x128x48xbf16>
    %168 = vector.shape_cast %167 : vector<1x128x48xbf16> to vector<128x48xbf16>
    %cst_167 = arith.constant dense<0.000000e+00> : vector<32x48xf32>
    %169 = tpu.matmul %166, %168, %cst_167 {dimension_numbers = #tpu.dot_dimension_numbers<[1], [0], [0], [1], [0, 0, 1, 1], [], []>} : vector<32x128xbf16>, vector<128x48xbf16>, vector<32x48xf32> -> vector<32x48xf32>
    %170 = arith.addf %162, %169 : vector<32x48xf32>
    %c0_168 = arith.constant 0 : index
    %c0_169 = arith.constant 0 : index
    %171 = vector.load %arg7[%c0_168, %c0_169] : memref<1x48xf32, #tpu.memory_space<vmem>>, vector<1x48xf32>
    %172 = vector.broadcast %171 : vector<1x48xf32> to vector<32x48xf32>
    %173 = arith.addf %170, %172 : vector<32x48xf32>
    %cst_170 = arith.constant 0.000000e+00 : f32
    %174 = vector.broadcast %cst_170 : f32 to vector<32x48xf32>
    %175 = arith.maximumf %173, %174 : vector<32x48xf32>
    %176 = vector.shape_cast %175 : vector<32x48xf32> to vector<2x16x48xf32>
    %177 = vector.extract_strided_slice %176 {offsets = [0, 0, 0], sizes = [2, 8, 48], strides = [1, 1, 1]} : vector<2x16x48xf32> to vector<2x8x48xf32>
    %c0_171 = arith.constant 0 : index
    %c1_172 = arith.constant 1 : index
    %c0_173 = arith.constant 0 : index
    %c0_174 = arith.constant 0 : index
    %178 = vector.load %arg13[%c0_171, %c1_172, %c0_173, %c0_174] : memref<2x4x8x48xf32, #tpu.memory_space<vmem>>, vector<1x2x8x48xf32>
    %179 = vector.shape_cast %178 : vector<1x2x8x48xf32> to vector<2x8x48xf32>
    %180 = vector.shape_cast %177 : vector<2x8x48xf32> to vector<1x2x8x48xf32>
    tpu.vector_store %arg13[%c0_171, %c1_172, %c0_173, %c0_174], %180 {strides = array<i32>} : memref<2x4x8x48xf32, #tpu.memory_space<vmem>>, vector<1x2x8x48xf32>,
    %181 = vector.extract_strided_slice %176 {offsets = [0, 8, 0], sizes = [2, 8, 48], strides = [1, 1, 1]} : vector<2x16x48xf32> to vector<2x8x48xf32>
    %c1_175 = arith.constant 1 : index
    %c1_176 = arith.constant 1 : index
    %c0_177 = arith.constant 0 : index
    %c0_178 = arith.constant 0 : index
    %182 = vector.load %arg13[%c1_175, %c1_176, %c0_177, %c0_178] : memref<2x4x8x48xf32, #tpu.memory_space<vmem>>, vector<1x2x8x48xf32>
    %183 = vector.shape_cast %182 : vector<1x2x8x48xf32> to vector<2x8x48xf32>
    %184 = vector.shape_cast %181 : vector<2x8x48xf32> to vector<1x2x8x48xf32>
    tpu.vector_store %arg13[%c1_175, %c1_176, %c0_177, %c0_178], %184 {strides = array<i32>} : memref<2x4x8x48xf32, #tpu.memory_space<vmem>>, vector<1x2x8x48xf32>,
    %cst_179 = arith.constant 0.000000e+00 : f32
    %185 = vector.broadcast %cst_179 : f32 to vector<8x48xf32>
    %c0_180 = arith.constant 0 : index
    %c0_181 = arith.constant 0 : index
    %c0_182 = arith.constant 0 : index
    %c0_183 = arith.constant 0 : index
    %186 = vector.load %arg13[%c0_180, %c0_181, %c0_182, %c0_183] : memref<2x4x8x48xf32, #tpu.memory_space<vmem>>, vector<1x1x8x48xf32>
    %187 = vector.shape_cast %186 : vector<1x1x8x48xf32> to vector<8x48xf32>
    %188 = vector.shape_cast %185 : vector<8x48xf32> to vector<1x1x8x48xf32>
    tpu.vector_store %arg13[%c0_180, %c0_181, %c0_182, %c0_183], %188 {strides = array<i32>} : memref<2x4x8x48xf32, #tpu.memory_space<vmem>>, vector<1x1x8x48xf32>,
    %c1_184 = arith.constant 1 : index
    %c0_185 = arith.constant 0 : index
    %c0_186 = arith.constant 0 : index
    %c0_187 = arith.constant 0 : index
    %189 = vector.load %arg13[%c1_184, %c0_185, %c0_186, %c0_187] : memref<2x4x8x48xf32, #tpu.memory_space<vmem>>, vector<1x1x8x48xf32>
    %190 = vector.shape_cast %189 : vector<1x1x8x48xf32> to vector<8x48xf32>
    %191 = vector.shape_cast %185 : vector<8x48xf32> to vector<1x1x8x48xf32>
    tpu.vector_store %arg13[%c1_184, %c0_185, %c0_186, %c0_187], %191 {strides = array<i32>} : memref<2x4x8x48xf32, #tpu.memory_space<vmem>>, vector<1x1x8x48xf32>,
    %c0_188 = arith.constant 0 : index
    %c3_189 = arith.constant 3 : index
    %c0_190 = arith.constant 0 : index
    %c0_191 = arith.constant 0 : index
    %192 = vector.load %arg13[%c0_188, %c3_189, %c0_190, %c0_191] : memref<2x4x8x48xf32, #tpu.memory_space<vmem>>, vector<1x1x8x48xf32>
    %193 = vector.shape_cast %192 : vector<1x1x8x48xf32> to vector<8x48xf32>
    %194 = vector.shape_cast %185 : vector<8x48xf32> to vector<1x1x8x48xf32>
    tpu.vector_store %arg13[%c0_188, %c3_189, %c0_190, %c0_191], %194 {strides = array<i32>} : memref<2x4x8x48xf32, #tpu.memory_space<vmem>>, vector<1x1x8x48xf32>,
    %c1_192 = arith.constant 1 : index
    %c3_193 = arith.constant 3 : index
    %c0_194 = arith.constant 0 : index
    %c0_195 = arith.constant 0 : index
    %195 = vector.load %arg13[%c1_192, %c3_193, %c0_194, %c0_195] : memref<2x4x8x48xf32, #tpu.memory_space<vmem>>, vector<1x1x8x48xf32>
    %196 = vector.shape_cast %195 : vector<1x1x8x48xf32> to vector<8x48xf32>
    %197 = vector.shape_cast %185 : vector<8x48xf32> to vector<1x1x8x48xf32>
    tpu.vector_store %arg13[%c1_192, %c3_193, %c0_194, %c0_195], %197 {strides = array<i32>} : memref<2x4x8x48xf32, #tpu.memory_space<vmem>>, vector<1x1x8x48xf32>,
    %c0_196 = arith.constant 0 : index
    %c0_197 = arith.constant 0 : index
    %c0_198 = arith.constant 0 : index
    %c0_199 = arith.constant 0 : index
    %198 = vector.load %arg13[%c0_196, %c0_197, %c0_198, %c0_199] : memref<2x4x8x48xf32, #tpu.memory_space<vmem>>, vector<1x2x8x48xf32>
    %199 = vector.shape_cast %198 : vector<1x2x8x48xf32> to vector<2x8x48xf32>
    %200 = vector.shape_cast %199 : vector<2x8x48xf32> to vector<16x48xf32>
    %201 = arith.truncf %200 : vector<16x48xf32> to vector<16x48xbf16>
    %c0_200 = arith.constant 0 : index
    %c0_201 = arith.constant 0 : index
    %c0_202 = arith.constant 0 : index
    %202 = vector.load %arg8[%c0_200, %c0_201, %c0_202] : memref<5x48x16xbf16, #tpu.memory_space<vmem>>, vector<1x48x16xbf16>
    %203 = vector.shape_cast %202 : vector<1x48x16xbf16> to vector<48x16xbf16>
    %cst_203 = arith.constant dense<0.000000e+00> : vector<16x16xf32>
    %204 = tpu.matmul %201, %203, %cst_203 {dimension_numbers = #tpu.dot_dimension_numbers<[1], [0], [0], [1], [0, 0, 1, 1], [], []>} : vector<16x48xbf16>, vector<48x16xbf16>, vector<16x16xf32> -> vector<16x16xf32>
    %c1_204 = arith.constant 1 : index
    %c0_205 = arith.constant 0 : index
    %c0_206 = arith.constant 0 : index
    %c0_207 = arith.constant 0 : index
    %205 = vector.load %arg13[%c1_204, %c0_205, %c0_206, %c0_207] : memref<2x4x8x48xf32, #tpu.memory_space<vmem>>, vector<1x2x8x48xf32>
    %206 = vector.shape_cast %205 : vector<1x2x8x48xf32> to vector<2x8x48xf32>
    %207 = vector.shape_cast %206 : vector<2x8x48xf32> to vector<16x48xf32>
    %208 = arith.truncf %207 : vector<16x48xf32> to vector<16x48xbf16>
    %c1_208 = arith.constant 1 : index
    %c0_209 = arith.constant 0 : index
    %c0_210 = arith.constant 0 : index
    %209 = vector.load %arg8[%c1_208, %c0_209, %c0_210] : memref<5x48x16xbf16, #tpu.memory_space<vmem>>, vector<1x48x16xbf16>
    %210 = vector.shape_cast %209 : vector<1x48x16xbf16> to vector<48x16xbf16>
    %cst_211 = arith.constant dense<0.000000e+00> : vector<16x16xf32>
    %211 = tpu.matmul %208, %210, %cst_211 {dimension_numbers = #tpu.dot_dimension_numbers<[1], [0], [0], [1], [0, 0, 1, 1], [], []>} : vector<16x48xbf16>, vector<48x16xbf16>, vector<16x16xf32> -> vector<16x16xf32>
    %212 = arith.addf %204, %211 : vector<16x16xf32>
    %c0_212 = arith.constant 0 : index
    %c1_213 = arith.constant 1 : index
    %c0_214 = arith.constant 0 : index
    %c0_215 = arith.constant 0 : index
    %213 = vector.load %arg13[%c0_212, %c1_213, %c0_214, %c0_215] : memref<2x4x8x48xf32, #tpu.memory_space<vmem>>, vector<1x2x8x48xf32>
    %214 = vector.shape_cast %213 : vector<1x2x8x48xf32> to vector<2x8x48xf32>
    %215 = vector.shape_cast %214 : vector<2x8x48xf32> to vector<16x48xf32>
    %216 = arith.truncf %215 : vector<16x48xf32> to vector<16x48xbf16>
    %c2_216 = arith.constant 2 : index
    %c0_217 = arith.constant 0 : index
    %c0_218 = arith.constant 0 : index
    %217 = vector.load %arg8[%c2_216, %c0_217, %c0_218] : memref<5x48x16xbf16, #tpu.memory_space<vmem>>, vector<1x48x16xbf16>
    %218 = vector.shape_cast %217 : vector<1x48x16xbf16> to vector<48x16xbf16>
    %cst_219 = arith.constant dense<0.000000e+00> : vector<16x16xf32>
    %219 = tpu.matmul %216, %218, %cst_219 {dimension_numbers = #tpu.dot_dimension_numbers<[1], [0], [0], [1], [0, 0, 1, 1], [], []>} : vector<16x48xbf16>, vector<48x16xbf16>, vector<16x16xf32> -> vector<16x16xf32>
    %220 = arith.addf %212, %219 : vector<16x16xf32>
    %c1_220 = arith.constant 1 : index
    %c1_221 = arith.constant 1 : index
    %c0_222 = arith.constant 0 : index
    %c0_223 = arith.constant 0 : index
    %221 = vector.load %arg13[%c1_220, %c1_221, %c0_222, %c0_223] : memref<2x4x8x48xf32, #tpu.memory_space<vmem>>, vector<1x2x8x48xf32>
    %222 = vector.shape_cast %221 : vector<1x2x8x48xf32> to vector<2x8x48xf32>
    %223 = vector.shape_cast %222 : vector<2x8x48xf32> to vector<16x48xf32>
    %224 = arith.truncf %223 : vector<16x48xf32> to vector<16x48xbf16>
    %c3_224 = arith.constant 3 : index
    %c0_225 = arith.constant 0 : index
    %c0_226 = arith.constant 0 : index
    %225 = vector.load %arg8[%c3_224, %c0_225, %c0_226] : memref<5x48x16xbf16, #tpu.memory_space<vmem>>, vector<1x48x16xbf16>
    %226 = vector.shape_cast %225 : vector<1x48x16xbf16> to vector<48x16xbf16>
    %cst_227 = arith.constant dense<0.000000e+00> : vector<16x16xf32>
    %227 = tpu.matmul %224, %226, %cst_227 {dimension_numbers = #tpu.dot_dimension_numbers<[1], [0], [0], [1], [0, 0, 1, 1], [], []>} : vector<16x48xbf16>, vector<48x16xbf16>, vector<16x16xf32> -> vector<16x16xf32>
    %228 = arith.addf %220, %227 : vector<16x16xf32>
    %c0_228 = arith.constant 0 : index
    %c2_229 = arith.constant 2 : index
    %c0_230 = arith.constant 0 : index
    %c0_231 = arith.constant 0 : index
    %229 = vector.load %arg13[%c0_228, %c2_229, %c0_230, %c0_231] : memref<2x4x8x48xf32, #tpu.memory_space<vmem>>, vector<1x2x8x48xf32>
    %230 = vector.shape_cast %229 : vector<1x2x8x48xf32> to vector<2x8x48xf32>
    %231 = vector.shape_cast %230 : vector<2x8x48xf32> to vector<16x48xf32>
    %232 = arith.truncf %231 : vector<16x48xf32> to vector<16x48xbf16>
    %c4_232 = arith.constant 4 : index
    %c0_233 = arith.constant 0 : index
    %c0_234 = arith.constant 0 : index
    %233 = vector.load %arg8[%c4_232, %c0_233, %c0_234] : memref<5x48x16xbf16, #tpu.memory_space<vmem>>, vector<1x48x16xbf16>
    %234 = vector.shape_cast %233 : vector<1x48x16xbf16> to vector<48x16xbf16>
    %cst_235 = arith.constant dense<0.000000e+00> : vector<16x16xf32>
    %235 = tpu.matmul %232, %234, %cst_235 {dimension_numbers = #tpu.dot_dimension_numbers<[1], [0], [0], [1], [0, 0, 1, 1], [], []>} : vector<16x48xbf16>, vector<48x16xbf16>, vector<16x16xf32> -> vector<16x16xf32>
    %236 = arith.addf %228, %235 : vector<16x16xf32>
    %c0_236 = arith.constant 0 : index
    %c0_237 = arith.constant 0 : index
    %237 = vector.load %arg9[%c0_236, %c0_237] : memref<1x16xf32, #tpu.memory_space<vmem>>, vector<1x16xf32>
    %238 = vector.broadcast %237 : vector<1x16xf32> to vector<16x16xf32>
    %239 = arith.addf %236, %238 : vector<16x16xf32>
    %240 = vector.shape_cast %239 : vector<16x16xf32> to vector<2x8x16xf32>
    %c0_238 = arith.constant 0 : index
    %c0_239 = arith.constant 0 : index
    %c0_240 = arith.constant 0 : index
    %241 = vector.load %arg10[%c0_238, %c0_239, %c0_240] : memref<2x8x16xf32, #tpu.memory_space<vmem>>, vector<2x8x16xf32>
    tpu.vector_store %arg10[%c0_238, %c0_239, %c0_240], %240 {strides = array<i32>} : memref<2x8x16xf32, #tpu.memory_space<vmem>>, vector<2x8x16xf32>,
    return
  }
  func.func @transform_0(%arg0: i32) -> (i32, i32, i32, i32) {
    %c0_i32 = arith.constant 0 : i32
    %c0_i32_0 = arith.constant 0 : i32
    %c0_i32_1 = arith.constant 0 : i32
    %c0_i32_2 = arith.constant 0 : i32
    return %c0_i32, %c0_i32_0, %arg0, %c0_i32_1 : i32, i32, i32, i32
  }
  func.func @transform_1(%arg0: i32) -> (i32, i32, i32) {
    %c0_i32 = arith.constant 0 : i32
    %c0_i32_0 = arith.constant 0 : i32
    %c0_i32_1 = arith.constant 0 : i32
    %c0_i32_2 = arith.constant 0 : i32
    return %c0_i32, %c0_i32_0, %c0_i32_1 : i32, i32, i32
  }
  func.func @transform_2(%arg0: i32) -> (i32, i32) {
    %c0_i32 = arith.constant 0 : i32
    %c0_i32_0 = arith.constant 0 : i32
    %c0_i32_1 = arith.constant 0 : i32
    return %c0_i32, %c0_i32_0 : i32, i32
  }
  func.func @transform_3(%arg0: i32) -> (i32, i32, i32) {
    %c0_i32 = arith.constant 0 : i32
    %c0_i32_0 = arith.constant 0 : i32
    %c0_i32_1 = arith.constant 0 : i32
    %c0_i32_2 = arith.constant 0 : i32
    return %c0_i32, %c0_i32_0, %c0_i32_1 : i32, i32, i32
  }
  func.func @transform_4(%arg0: i32) -> (i32, i32) {
    %c0_i32 = arith.constant 0 : i32
    %c0_i32_0 = arith.constant 0 : i32
    %c0_i32_1 = arith.constant 0 : i32
    return %c0_i32, %c0_i32_0 : i32, i32
  }
  func.func @transform_5(%arg0: i32) -> (i32, i32, i32) {
    %c0_i32 = arith.constant 0 : i32
    %c0_i32_0 = arith.constant 0 : i32
    %c0_i32_1 = arith.constant 0 : i32
    %c0_i32_2 = arith.constant 0 : i32
    return %c0_i32, %c0_i32_0, %c0_i32_1 : i32, i32, i32
  }
  func.func @transform_6(%arg0: i32) -> (i32, i32) {
    %c0_i32 = arith.constant 0 : i32
    %c0_i32_0 = arith.constant 0 : i32
    %c0_i32_1 = arith.constant 0 : i32
    return %c0_i32, %c0_i32_0 : i32, i32
  }
  func.func @transform_7(%arg0: i32) -> (i32, i32, i32) {
    %c0_i32 = arith.constant 0 : i32
    %c0_i32_0 = arith.constant 0 : i32
    %c0_i32_1 = arith.constant 0 : i32
    %c0_i32_2 = arith.constant 0 : i32
    return %c0_i32, %c0_i32_0, %c0_i32_1 : i32, i32, i32
  }
  func.func @transform_8(%arg0: i32) -> (i32, i32) {
    %c0_i32 = arith.constant 0 : i32
    %c0_i32_0 = arith.constant 0 : i32
    %c0_i32_1 = arith.constant 0 : i32
    return %c0_i32, %c0_i32_0 : i32, i32
  }
  func.func @transform_9(%arg0: i32) -> (i32, i32, i32) {
    %c0_i32 = arith.constant 0 : i32
    %c0_i32_0 = arith.constant 0 : i32
    %c0_i32_1 = arith.constant 0 : i32
    return %c0_i32, %arg0, %c0_i32_0 : i32, i32, i32
  }
}

</mosaic_0001>

<llo_original>
// kernel: encoder_forward.1
$region0: #{encoder_forward.1}
  #allocation0 [shape = 'u32[]', space=smem, size = 0x4, offset = 0x4, fixed_abs, tag = 'smem constant byte address 0x4 - core index']
  #allocation1 [shape = 'u32[72,128]{1,0:T(1,128)}', space=vmem, size = 0x9000, scoped, tag = 'internal scratch']
  #allocation2 [shape = 'f32[2,10,8,384]{3,2,1,0:T(8,128)}', space=vmem, size = 0x3c000, scoped, tag = 'scratch operand']
  #allocation3 [shape = 'f32[2,6,8,128]{3,2,1,0:T(8,128)}', space=vmem, size = 0xc000, scoped, tag = 'scratch operand']
  #allocation4 [shape = 'f32[2,4,8,48]{3,2,1,0:T(8,128)}', space=vmem, size = 0x8000, scoped, tag = 'scratch operand']
  %s0 = inlined_call_operand.vmem [shape: f32[2,18,16,96], index: 0, kind: input, shape index: {}]
  %s1 = inlined_call_operand.vmem [shape: bf16[5,96,384], index: 1, kind: input, shape index: {}]
  %s2 = inlined_call_operand.vmem [shape: f32[1,384], index: 2, kind: input, shape index: {}]
  %s3 = inlined_call_operand.vmem [shape: bf16[5,384,128], index: 3, kind: input, shape index: {}]
  %s4 = inlined_call_operand.vmem [shape: f32[1,128], index: 4, kind: input, shape index: {}]
  %s5 = inlined_call_operand.vmem [shape: bf16[5,128,48], index: 5, kind: input, shape index: {}]
  %s6 = inlined_call_operand.vmem [shape: f32[1,48], index: 6, kind: input, shape index: {}]
  %s7 = inlined_call_operand.vmem [shape: bf16[5,48,16], index: 7, kind: input, shape index: {}]
  %s8 = inlined_call_operand.vmem [shape: f32[1,16], index: 8, kind: input, shape index: {}]
  %s9 = inlined_call_operand.vmem [shape: f32[2,16,16], index: 9, kind: output, shape index: {}]
  %s10 = sld [smem:[#allocation0]]
  $region141: #{encoder_forward.1} parent=0
    _
  %s12 = ssub.s32 1, %s10
  %s13 = scalar_select 0, %s12, %s10
  $region1: #{encoder_forward.1} parent=0
    #allocation5 [shape = 'u8[294912]{0}', space=vmem, size = 0x48000, scoped, tag = 'input window, operand 0']
    #allocation6 [shape = 'u8[16384]{0}', space=vmem, size = 0x4000, scoped, tag = 'output window, operand 0']
    loop: start=0, step=1, limit=4
    $region2: #{encoder_forward.1} parent=1 // loop_pre_header
      _
    $region3: #{encoder_forward.1} parent=1 // loop_header
      %s15 = sphi 0, %s19
      %p16 = scmp.ge.s32.totalorder %s15, 4
      %s25 = sphi 0, %s27
      %s28 = sphi 0, %s25
      %s29 = sphi 0, %s28
      %s45 = sphi 0, %s29
      %s49 = sphi 0, %s49
      %s51 = sphi 0, %s49
      %s52 = sphi 0, %s51
      %s66 = sphi 0, %s52
      %s70 = sphi 0, %s70
      %s72 = sphi 0, %s70
      %s73 = sphi 0, %s72
      %s87 = sphi 0, %s73
      %s91 = sphi 0, %s91
      %s93 = sphi 0, %s91
      %s94 = sphi 0, %s93
      %s108 = sphi 0, %s94
      %s112 = sphi 0, %s112
      %s114 = sphi 0, %s112
      %s115 = sphi 0, %s114
      %s129 = sphi 0, %s115
      %s133 = sphi 0, %s133
      %s135 = sphi 0, %s133
      %s136 = sphi 0, %s135
      %s150 = sphi 0, %s136
      %s154 = sphi 0, %s154
      %s156 = sphi 0, %s154
      %s157 = sphi 0, %s156
      %s171 = sphi 0, %s157
      %s175 = sphi 0, %s175
      %s177 = sphi 0, %s175
      %s178 = sphi 0, %s177
      %s192 = sphi 0, %s178
      %s196 = sphi 0, %s196
      %s198 = sphi 0, %s196
      %s199 = sphi 0, %s198
      %s213 = sphi 0, %s199
      %s219 = sphi 0, %s221
      %s222 = sphi 0, %s219
      %s223 = sphi 0, %s222
      %s239 = sphi 0, %s223
    $region4: #{encoder_forward.1} parent=1 // loop_header_branch
      %18 = sbr.rel (%p16) target = $region8
    $region5: #{encoder_forward.1} parent=1 // loop_body
      %s20 = ssub.s32 %s15, 1
      %s21 = ssub.s32 %s15, 2
      %s22 = sadd.s32 %s15, 1
      %s23 = ssub.s32 %s15, %s22
      %p24 = scmp.eq.s32.totalorder %s23, 0
      %s26 = sadd.s32 %s25, 1
      %s27 = scalar_select %p24, %s25, %s26
      %p30 = pneg %p24
      %p31 = scmp.eq.s32.totalorder %s15, 1
      %p32 = por %p30, %p31
      %p33 = scmp.ne.s32.totalorder %s25, %s28
      %p34 = scmp.eq.s32.totalorder %s15, 0
      %p35 = por %p33, %p34
      %p36 = scmp.ne.s32.totalorder %s25, %s28
      %p37 = scmp.eq.s32.totalorder %s20, 1
      %p38 = por %p36, %p37
      %p39 = scmp.ne.s32.totalorder %s28, %s29
      %p40 = scmp.eq.s32.totalorder %s20, 0
      %p41 = por %p39, %p40
      %p42 = scmp.ne.s32.totalorder %s28, %s29
      %p43 = scmp.eq.s32.totalorder %s21, 1
      %p44 = por %p42, %p43
      %p46 = scmp.ne.s32.totalorder %s29, %s45
      %p47 = scmp.eq.s32.totalorder %s21, 0
      %p48 = por %p46, %p47
      %s50 = sadd.s32 %s49, 1
      %p53 = scmp.eq.s32.totalorder %s15, 1
      %p54 = scmp.ne.s32.totalorder %s49, %s51
      %p55 = scmp.eq.s32.totalorder %s15, 0
      %p56 = por %p54, %p55
      %p57 = scmp.ne.s32.totalorder %s49, %s51
      %p58 = scmp.eq.s32.totalorder %s20, 1
      %p59 = por %p57, %p58
      %p60 = scmp.ne.s32.totalorder %s51, %s52
      %p61 = scmp.eq.s32.totalorder %s20, 0
      %p62 = por %p60, %p61
      %p63 = scmp.ne.s32.totalorder %s51, %s52
      %p64 = scmp.eq.s32.totalorder %s21, 1
      %p65 = por %p63, %p64
      %p67 = scmp.ne.s32.totalorder %s52, %s66
      %p68 = scmp.eq.s32.totalorder %s21, 0
      %p69 = por %p67, %p68
      %s71 = sadd.s32 %s70, 1
      %p74 = scmp.eq.s32.totalorder %s15, 1
      %p75 = scmp.ne.s32.totalorder %s70, %s72
      %p76 = scmp.eq.s32.totalorder %s15, 0
      %p77 = por %p75, %p76
      %p78 = scmp.ne.s32.totalorder %s70, %s72
      %p79 = scmp.eq.s32.totalorder %s20, 1
      %p80 = por %p78, %p79
      %p81 = scmp.ne.s32.totalorder %s72, %s73
      %p82 = scmp.eq.s32.totalorder %s20, 0
      %p83 = por %p81, %p82
      %p84 = scmp.ne.s32.totalorder %s72, %s73
      %p85 = scmp.eq.s32.totalorder %s21, 1
      %p86 = por %p84, %p85
      %p88 = scmp.ne.s32.totalorder %s73, %s87
      %p89 = scmp.eq.s32.totalorder %s21, 0
      %p90 = por %p88, %p89
      %s92 = sadd.s32 %s91, 1
      %p95 = scmp.eq.s32.totalorder %s15, 1
      %p96 = scmp.ne.s32.totalorder %s91, %s93
      %p97 = scmp.eq.s32.totalorder %s15, 0
      %p98 = por %p96, %p97
      %p99 = scmp.ne.s32.totalorder %s91, %s93
      %p100 = scmp.eq.s32.totalorder %s20, 1
      %p101 = por %p99, %p100
      %p102 = scmp.ne.s32.totalorder %s93, %s94
      %p103 = scmp.eq.s32.totalorder %s20, 0
      %p104 = por %p102, %p103
      %p105 = scmp.ne.s32.totalorder %s93, %s94
      %p106 = scmp.eq.s32.totalorder %s21, 1
      %p107 = por %p105, %p106
      %p109 = scmp.ne.s32.totalorder %s94, %s108
      %p110 = scmp.eq.s32.totalorder %s21, 0
      %p111 = por %p109, %p110
      %s113 = sadd.s32 %s112, 1
      %p116 = scmp.eq.s32.totalorder %s15, 1
      %p117 = scmp.ne.s32.totalorder %s112, %s114
      %p118 = scmp.eq.s32.totalorder %s15, 0
      %p119 = por %p117, %p118
      %p120 = scmp.ne.s32.totalorder %s112, %s114
      %p121 = scmp.eq.s32.totalorder %s20, 1
      %p122 = por %p120, %p121
      %p123 = scmp.ne.s32.totalorder %s114, %s115
      %p124 = scmp.eq.s32.totalorder %s20, 0
      %p125 = por %p123, %p124
      %p126 = scmp.ne.s32.totalorder %s114, %s115
      %p127 = scmp.eq.s32.totalorder %s21, 1
      %p128 = por %p126, %p127
      %p130 = scmp.ne.s32.totalorder %s115, %s129
      %p131 = scmp.eq.s32.totalorder %s21, 0
      %p132 = por %p130, %p131
      %s134 = sadd.s32 %s133, 1
      %p137 = scmp.eq.s32.totalorder %s15, 1
      %p138 = scmp.ne.s32.totalorder %s133, %s135
      %p139 = scmp.eq.s32.totalorder %s15, 0
      %p140 = por %p138, %p139
      %p141 = scmp.ne.s32.totalorder %s133, %s135
      %p142 = scmp.eq.s32.totalorder %s20, 1
      %p143 = por %p141, %p142
      %p144 = scmp.ne.s32.totalorder %s135, %s136
      %p145 = scmp.eq.s32.totalorder %s20, 0
      %p146 = por %p144, %p145
      %p147 = scmp.ne.s32.totalorder %s135, %s136
      %p148 = scmp.eq.s32.totalorder %s21, 1
      %p149 = por %p147, %p148
      %p151 = scmp.ne.s32.totalorder %s136, %s150
      %p152 = scmp.eq.s32.totalorder %s21, 0
      %p153 = por %p151, %p152
      %s155 = sadd.s32 %s154, 1
      %p158 = scmp.eq.s32.totalorder %s15, 1
      %p159 = scmp.ne.s32.totalorder %s154, %s156
      %p160 = scmp.eq.s32.totalorder %s15, 0
      %p161 = por %p159, %p160
      %p162 = scmp.ne.s32.totalorder %s154, %s156
      %p163 = scmp.eq.s32.totalorder %s20, 1
      %p164 = por %p162, %p163
      %p165 = scmp.ne.s32.totalorder %s156, %s157
      %p166 = scmp.eq.s32.totalorder %s20, 0
      %p167 = por %p165, %p166
      %p168 = scmp.ne.s32.totalorder %s156, %s157
      %p169 = scmp.eq.s32.totalorder %s21, 1
      %p170 = por %p168, %p169
      %p172 = scmp.ne.s32.totalorder %s157, %s171
      %p173 = scmp.eq.s32.totalorder %s21, 0
      %p174 = por %p172, %p173
      %s176 = sadd.s32 %s175, 1
      %p179 = scmp.eq.s32.totalorder %s15, 1
      %p180 = scmp.ne.s32.totalorder %s175, %s177
      %p181 = scmp.eq.s32.totalorder %s15, 0
      %p182 = por %p180, %p181
      %p183 = scmp.ne.s32.totalorder %s175, %s177
      %p184 = scmp.eq.s32.totalorder %s20, 1
      %p185 = por %p183, %p184
      %p186 = scmp.ne.s32.totalorder %s177, %s178
      %p187 = scmp.eq.s32.totalorder %s20, 0
      %p188 = por %p186, %p187
      %p189 = scmp.ne.s32.totalorder %s177, %s178
      %p190 = scmp.eq.s32.totalorder %s21, 1
      %p191 = por %p189, %p190
      %p193 = scmp.ne.s32.totalorder %s178, %s192
      %p194 = scmp.eq.s32.totalorder %s21, 0
      %p195 = por %p193, %p194
      %s197 = sadd.s32 %s196, 1
      %p200 = scmp.eq.s32.totalorder %s15, 1
      %p201 = scmp.ne.s32.totalorder %s196, %s198
      %p202 = scmp.eq.s32.totalorder %s15, 0
      %p203 = por %p201, %p202
      %p204 = scmp.ne.s32.totalorder %s196, %s198
      %p205 = scmp.eq.s32.totalorder %s20, 1
      %p206 = por %p204, %p205
      %p207 = scmp.ne.s32.totalorder %s198, %s199
      %p208 = scmp.eq.s32.totalorder %s20, 0
      %p209 = por %p207, %p208
      %p210 = scmp.ne.s32.totalorder %s198, %s199
      %p211 = scmp.eq.s32.totalorder %s21, 1
      %p212 = por %p210, %p211
      %p214 = scmp.ne.s32.totalorder %s199, %s213
      %p215 = scmp.eq.s32.totalorder %s21, 0
      %p216 = por %p214, %p215
      %s217 = ssub.s32 %s15, %s22
      %p218 = scmp.eq.s32.totalorder %s217, 0
      %s220 = sadd.s32 %s219, 1
      %s221 = scalar_select %p218, %s219, %s220
      %p224 = pneg %p218
      %p225 = scmp.eq.s32.totalorder %s15, 1
      %p226 = por %p224, %p225
      %p227 = scmp.ne.s32.totalorder %s219, %s222
      %p228 = scmp.eq.s32.totalorder %s15, 0
      %p229 = por %p227, %p228
      %p230 = scmp.ne.s32.totalorder %s219, %s222
      %p231 = scmp.eq.s32.totalorder %s20, 1
      %p232 = por %p230, %p231
      %p233 = scmp.ne.s32.totalorder %s222, %s223
      %p234 = scmp.eq.s32.totalorder %s20, 0
      %p235 = por %p233, %p234
      %p236 = scmp.ne.s32.totalorder %s222, %s223
      %p237 = scmp.eq.s32.totalorder %s21, 1
      %p238 = por %p236, %p237
      %p240 = scmp.ne.s32.totalorder %s223, %s239
      %p241 = scmp.eq.s32.totalorder %s21, 0
      %p242 = por %p240, %p241
      %p243 = scmp.le.s32.totalorder 1, %s15
      %p244 = scmp.lt.s32.totalorder %s15, 3
      %p245 = pnand %p243, %p244
      %p246 = pneg %p245
      // Predicated region
      $region9: #{encoder_forward.1} parent=5 // pred_check
        _
      $region10: #{encoder_forward.1} parent=5 // pred_check_branch
        %248 = sbr.rel (%p245) target = $region12
      $region11: #{encoder_forward.1} parent=5 // pred_region
        %s249 = ssub.s32 %s15, 1
        // Predicated region
        $region13: #{encoder_forward.1} parent=11 // pred_check
          %p250 = pneg %p62
        $region14: #{encoder_forward.1} parent=11 // pred_check_branch
          %252 = sbr.rel (%p250) target = $region16
        $region15: #{encoder_forward.1} parent=11 // pred_region
          _
        $region16: #{encoder_forward.1} parent=11 // pred_fallthru
          _
        // Predicated region
        $region17: #{encoder_forward.1} parent=11 // pred_check
          %p253 = pneg %p83
        $region18: #{encoder_forward.1} parent=11 // pred_check_branch
          %255 = sbr.rel (%p253) target = $region20
        $region19: #{encoder_forward.1} parent=11 // pred_region
          _
        $region20: #{encoder_forward.1} parent=11 // pred_fallthru
          _
        // Predicated region
        $region21: #{encoder_forward.1} parent=11 // pred_check
          %p256 = pneg %p104
        $region22: #{encoder_forward.1} parent=11 // pred_check_branch
          %258 = sbr.rel (%p256) target = $region24
        $region23: #{encoder_forward.1} parent=11 // pred_region
          _
        $region24: #{encoder_forward.1} parent=11 // pred_fallthru
          _
        // Predicated region
        $region25: #{encoder_forward.1} parent=11 // pred_check
          %p259 = pneg %p125
        $region26: #{encoder_forward.1} parent=11 // pred_check_branch
          %261 = sbr.rel (%p259) target = $region28
        $region27: #{encoder_forward.1} parent=11 // pred_region
          _
        $region28: #{encoder_forward.1} parent=11 // pred_fallthru
          _
        // Predicated region
        $region29: #{encoder_forward.1} parent=11 // pred_check
          %p262 = pneg %p146
        $region30: #{encoder_forward.1} parent=11 // pred_check_branch
          %264 = sbr.rel (%p262) target = $region32
        $region31: #{encoder_forward.1} parent=11 // pred_region
          _
        $region32: #{encoder_forward.1} parent=11 // pred_fallthru
          _
        // Predicated region
        $region33: #{encoder_forward.1} parent=11 // pred_check
          %p265 = pneg %p167
        $region34: #{encoder_forward.1} parent=11 // pred_check_branch
          %267 = sbr.rel (%p265) target = $region36
        $region35: #{encoder_forward.1} parent=11 // pred_region
          _
        $region36: #{encoder_forward.1} parent=11 // pred_fallthru
          _
        // Predicated region
        $region37: #{encoder_forward.1} parent=11 // pred_check
          %p268 = pneg %p188
        $region38: #{encoder_forward.1} parent=11 // pred_check_branch
          %270 = sbr.rel (%p268) target = $region40
        $region39: #{encoder_forward.1} parent=11 // pred_region
          _
        $region40: #{encoder_forward.1} parent=11 // pred_fallthru
          _
        // Predicated region
        $region41: #{encoder_forward.1} parent=11 // pred_check
          %p271 = pneg %p209
        $region42: #{encoder_forward.1} parent=11 // pred_check_branch
          %273 = sbr.rel (%p271) target = $region44
        $region43: #{encoder_forward.1} parent=11 // pred_region
          _
        $region44: #{encoder_forward.1} parent=11 // pred_fallthru
          _
      $region12: #{encoder_forward.1} parent=5 // pred_fallthru
        _
      %p274 = scmp.lt.s32.totalorder %s15, 2
      // Predicated region
      $region45: #{encoder_forward.1} parent=5 // pred_check
        %p275 = pneg %p274
      $region46: #{encoder_forward.1} parent=5 // pred_check_branch
        %277 = sbr.rel (%p275) target = $region48
      $region47: #{encoder_forward.1} parent=5 // pred_region
        // Predicated region
        $region49: #{encoder_forward.1} parent=47 // pred_check
          %p278 = pneg %p35
        $region50: #{encoder_forward.1} parent=47 // pred_check_branch
          %280 = sbr.rel (%p278) target = $region52
        $region51: #{encoder_forward.1} parent=47 // pred_region
          %s281 = sand.u32 %s25, 1
          %s282 = sand.u32 %s25, 1
          %s283 = smul.addr %s282, 288
          %s284 = scalar_lea.vmem [#allocation5], %s283
          %s285 = smul.addr %s15, 8
          %s286 = scalar_lea.vmem %s0, %s285
          // Predicated region
          $region53: #{encoder_forward.1} parent=51 // pred_check
            _
          $region54: #{encoder_forward.1} parent=51 // pred_check_branch
            %288 = sbr.rel (0) target = $region56
          $region55: #{encoder_forward.1} parent=51 // pred_region
            // Predicated region
            $region57: #{encoder_forward.1} parent=55 // pred_check
              _
            $region58: #{encoder_forward.1} parent=55 // pred_check_branch
              %290 = sbr.rel (0) target = $region60
            $region59: #{encoder_forward.1} parent=55 // pred_region
              // Predicated region
              $region72: #{encoder_forward.1} parent=59 // pred_check
                _
              $region73: #{encoder_forward.1} parent=59 // pred_check_branch
                %376 = sbr.rel (0) target = $region75
              $region74: #{encoder_forward.1} parent=59 // pred_region
                loop: start=0, step=1, limit=1
                $region76: #{encoder_forward.1} parent=74 // loop_pre_header
                  _
                $region77: #{encoder_forward.1} parent=74 // loop_header
                  %s378 = sphi 0, %s382
                  %p379 = scmp.ge.s32.totalorder %s378, 1
                  %s383 = sphi %s286, %s286
                  %s384 = sphi %s284, %s284
                $region78: #{encoder_forward.1} parent=74 // loop_header_branch
                  %381 = sbr.rel (%p379) target = $region82
                $region79: #{encoder_forward.1} parent=74 // loop_body
                  %v385 = vld [vmem:[%s383] sm:$0xff]
                  %386 = vst [vmem:[%s384] sm:$0xff] %v385
                  %v387 = vld [vmem:[%s383 + $0x10] sm:$0xff]
                  %388 = vst [vmem:[%s384 + $0x8] sm:$0xff] %v387
                  %v389 = vld [vmem:[%s383 + $0x20] sm:$0xff]
                  %390 = vst [vmem:[%s384 + $0x10] sm:$0xff] %v389
                  %v391 = vld [vmem:[%s383 + $0x30] sm:$0xff]
                  %392 = vst [vmem:[%s384 + $0x18] sm:$0xff] %v391
                  %v393 = vld [vmem:[%s383 + $0x40] sm:$0xff]
                  %394 = vst [vmem:[%s384 + $0x20] sm:$0xff] %v393
                  %v395 = vld [vmem:[%s383 + $0x50] sm:$0xff]
                  %396 = vst [vmem:[%s384 + $0x28] sm:$0xff] %v395
                  %v397 = vld [vmem:[%s383 + $0x60] sm:$0xff]
                  %398 = vst [vmem:[%s384 + $0x30] sm:$0xff] %v397
                  %v399 = vld [vmem:[%s383 + $0x70] sm:$0xff]
                  %400 = vst [vmem:[%s384 + $0x38] sm:$0xff] %v399
                  %v401 = vld [vmem:[%s383 + $0x80] sm:$0xff]
                  %402 = vst [vmem:[%s384 + $0x40] sm:$0xff] %v401
                  %v403 = vld [vmem:[%s383 + $0x90] sm:$0xff]
                  %404 = vst [vmem:[%s384 + $0x48] sm:$0xff] %v403
                  %v405 = vld [vmem:[%s383 + $0xa0] sm:$0xff]
                  %406 = vst [vmem:[%s384 + $0x50] sm:$0xff] %v405
                  %v407 = vld [vmem:[%s383 + $0xb0] sm:$0xff]
                  %408 = vst [vmem:[%s384 + $0x58] sm:$0xff] %v407
                  %v409 = vld [vmem:[%s383 + $0xc0] sm:$0xff]
                  %410 = vst [vmem:[%s384 + $0x60] sm:$0xff] %v409
                  %v411 = vld [vmem:[%s383 + $0xd0] sm:$0xff]
                  %412 = vst [vmem:[%s384 + $0x68] sm:$0xff] %v411
                  %v413 = vld [vmem:[%s383 + $0xe0] sm:$0xff]
                  %414 = vst [vmem:[%s384 + $0x70] sm:$0xff] %v413
                  %v415 = vld [vmem:[%s383 + $0xf0] sm:$0xff]
                  %416 = vst [vmem:[%s384 + $0x78] sm:$0xff] %v415
                  %v417 = vld [vmem:[%s383 + $0x100] sm:$0xff]
                  %418 = vst [vmem:[%s384 + $0x80] sm:$0xff] %v417
                  %v419 = vld [vmem:[%s383 + $0x110] sm:$0xff]
                  %420 = vst [vmem:[%s384 + $0x88] sm:$0xff] %v419
                  %v421 = vld [vmem:[%s383 + $0x120] sm:$0xff]
                  %422 = vst [vmem:[%s384 + $0x90] sm:$0xff] %v421
                  %v423 = vld [vmem:[%s383 + $0x130] sm:$0xff]
                  %424 = vst [vmem:[%s384 + $0x98] sm:$0xff] %v423
                  %v425 = vld [vmem:[%s383 + $0x140] sm:$0xff]
                  %426 = vst [vmem:[%s384 + $0xa0] sm:$0xff] %v425
                  %v427 = vld [vmem:[%s383 + $0x150] sm:$0xff]
                  %428 = vst [vmem:[%s384 + $0xa8] sm:$0xff] %v427
                  %v429 = vld [vmem:[%s383 + $0x160] sm:$0xff]
                  %430 = vst [vmem:[%s384 + $0xb0] sm:$0xff] %v429
                  %v431 = vld [vmem:[%s383 + $0x170] sm:$0xff]
                  %432 = vst [vmem:[%s384 + $0xb8] sm:$0xff] %v431
                  %v433 = vld [vmem:[%s383 + $0x180] sm:$0xff]
                  %434 = vst [vmem:[%s384 + $0xc0] sm:$0xff] %v433
                  %v435 = vld [vmem:[%s383 + $0x190] sm:$0xff]
                  %436 = vst [vmem:[%s384 + $0xc8] sm:$0xff] %v435
                  %v437 = vld [vmem:[%s383 + $0x1a0] sm:$0xff]
                  %438 = vst [vmem:[%s384 + $0xd0] sm:$0xff] %v437
                  %v439 = vld [vmem:[%s383 + $0x1b0] sm:$0xff]
                  %440 = vst [vmem:[%s384 + $0xd8] sm:$0xff] %v439
                  %v441 = vld [vmem:[%s383 + $0x1c0] sm:$0xff]
                  %442 = vst [vmem:[%s384 + $0xe0] sm:$0xff] %v441
                  %v443 = vld [vmem:[%s383 + $0x1d0] sm:$0xff]
                  %444 = vst [vmem:[%s384 + $0xe8] sm:$0xff] %v443
                  %v445 = vld [vmem:[%s383 + $0x1e0] sm:$0xff]
                  %446 = vst [vmem:[%s384 + $0xf0] sm:$0xff] %v445
                  %v447 = vld [vmem:[%s383 + $0x1f0] sm:$0xff]
                  %448 = vst [vmem:[%s384 + $0xf8] sm:$0xff] %v447
                  %v449 = vld [vmem:[%s383 + $0x200] sm:$0xff]
                  %450 = vst [vmem:[%s384 + $0x100] sm:$0xff] %v449
                  %v451 = vld [vmem:[%s383 + $0x210] sm:$0xff]
                  %452 = vst [vmem:[%s384 + $0x108] sm:$0xff] %v451
                  %v453 = vld [vmem:[%s383 + $0x220] sm:$0xff]
                  %454 = vst [vmem:[%s384 + $0x110] sm:$0xff] %v453
                  %v455 = vld [vmem:[%s383 + $0x230] sm:$0xff]
                  %456 = vst [vmem:[%s384 + $0x118] sm:$0xff] %v455
                $region80: #{encoder_forward.1} parent=74 // loop_footer
                  %s382 = sadd.s32 1, %s378
                $region81: #{encoder_forward.1} parent=74 // loop_footer_branch
                  %377 = sbr.rel target = $region77
                $region82: #{encoder_forward.1} parent=74 // loop_exit
                  _
              $region75: #{encoder_forward.1} parent=59 // pred_fallthru
                _
              // Predicated region
              $region83: #{encoder_forward.1} parent=59 // pred_check
                _
              $region84: #{encoder_forward.1} parent=59 // pred_check_branch
                %458 = sbr.rel target = $region86
              $region85: #{encoder_forward.1} parent=59 // pred_region
                _
              $region86: #{encoder_forward.1} parent=59 // pred_fallthru
                _
            $region60: #{encoder_forward.1} parent=55 // pred_fallthru
              _
            // Predicated region
            $region61: #{encoder_forward.1} parent=55 // pred_check
              _
            $region62: #{encoder_forward.1} parent=55 // pred_check_branch
              %292 = sbr.rel target = $region64
            $region63: #{encoder_forward.1} parent=55 // pred_region
              %s294 = ssub.s32 256, 1
              loop: start=0, step=1, limit=1
              $region65: #{encoder_forward.1} parent=63 // loop_pre_header
                _
              $region66: #{encoder_forward.1} parent=63 // loop_header
                %s296 = sphi 0, %s300
                %p297 = scmp.ge.s32.totalorder %s296, 1
                %s301 = sphi %s286, %s286
                %s302 = sphi %s284, %s284
              $region67: #{encoder_forward.1} parent=63 // loop_header_branch
                %299 = sbr.rel (%p297) target = $region71
              $region68: #{encoder_forward.1} parent=63 // loop_body
                %v303 = vld [vmem:[%s301] sm:%s294]
                %304 = vst [vmem:[%s302] sm:%s294] %v303
                %v305 = vld [vmem:[%s301 + $0x10] sm:%s294]
                %306 = vst [vmem:[%s302 + $0x8] sm:%s294] %v305
                %v307 = vld [vmem:[%s301 + $0x20] sm:%s294]
                %308 = vst [vmem:[%s302 + $0x10] sm:%s294] %v307
                %v309 = vld [vmem:[%s301 + $0x30] sm:%s294]
                %310 = vst [vmem:[%s302 + $0x18] sm:%s294] %v309
                %v311 = vld [vmem:[%s301 + $0x40] sm:%s294]
                %312 = vst [vmem:[%s302 + $0x20] sm:%s294] %v311
                %v313 = vld [vmem:[%s301 + $0x50] sm:%s294]
                %314 = vst [vmem:[%s302 + $0x28] sm:%s294] %v313
                %v315 = vld [vmem:[%s301 + $0x60] sm:%s294]
                %316 = vst [vmem:[%s302 + $0x30] sm:%s294] %v315
                %v317 = vld [vmem:[%s301 + $0x70] sm:%s294]
                %318 = vst [vmem:[%s302 + $0x38] sm:%s294] %v317
                %v319 = vld [vmem:[%s301 + $0x80] sm:%s294]
                %320 = vst [vmem:[%s302 + $0x40] sm:%s294] %v319
                %v321 = vld [vmem:[%s301 + $0x90] sm:%s294]
                %322 = vst [vmem:[%s302 + $0x48] sm:%s294] %v321
                %v323 = vld [vmem:[%s301 + $0xa0] sm:%s294]
                %324 = vst [vmem:[%s302 + $0x50] sm:%s294] %v323
                %v325 = vld [vmem:[%s301 + $0xb0] sm:%s294]
                %326 = vst [vmem:[%s302 + $0x58] sm:%s294] %v325
                %v327 = vld [vmem:[%s301 + $0xc0] sm:%s294]
                %328 = vst [vmem:[%s302 + $0x60] sm:%s294] %v327
                %v329 = vld [vmem:[%s301 + $0xd0] sm:%s294]
                %330 = vst [vmem:[%s302 + $0x68] sm:%s294] %v329
                %v331 = vld [vmem:[%s301 + $0xe0] sm:%s294]
                %332 = vst [vmem:[%s302 + $0x70] sm:%s294] %v331
                %v333 = vld [vmem:[%s301 + $0xf0] sm:%s294]
                %334 = vst [vmem:[%s302 + $0x78] sm:%s294] %v333
                %v335 = vld [vmem:[%s301 + $0x100] sm:%s294]
                %336 = vst [vmem:[%s302 + $0x80] sm:%s294] %v335
                %v337 = vld [vmem:[%s301 + $0x110] sm:%s294]
                %338 = vst [vmem:[%s302 + $0x88] sm:%s294] %v337
                %v339 = vld [vmem:[%s301 + $0x120] sm:%s294]
                %340 = vst [vmem:[%s302 + $0x90] sm:%s294] %v339
                %v341 = vld [vmem:[%s301 + $0x130] sm:%s294]
                %342 = vst [vmem:[%s302 + $0x98] sm:%s294] %v341
                %v343 = vld [vmem:[%s301 + $0x140] sm:%s294]
                %344 = vst [vmem:[%s302 + $0xa0] sm:%s294] %v343
                %v345 = vld [vmem:[%s301 + $0x150] sm:%s294]
                %346 = vst [vmem:[%s302 + $0xa8] sm:%s294] %v345
                %v347 = vld [vmem:[%s301 + $0x160] sm:%s294]
                %348 = vst [vmem:[%s302 + $0xb0] sm:%s294] %v347
                %v349 = vld [vmem:[%s301 + $0x170] sm:%s294]
                %350 = vst [vmem:[%s302 + $0xb8] sm:%s294] %v349
                %v351 = vld [vmem:[%s301 + $0x180] sm:%s294]
                %352 = vst [vmem:[%s302 + $0xc0] sm:%s294] %v351
                %v353 = vld [vmem:[%s301 + $0x190] sm:%s294]
                %354 = vst [vmem:[%s302 + $0xc8] sm:%s294] %v353
                %v355 = vld [vmem:[%s301 + $0x1a0] sm:%s294]
                %356 = vst [vmem:[%s302 + $0xd0] sm:%s294] %v355
                %v357 = vld [vmem:[%s301 + $0x1b0] sm:%s294]
                %358 = vst [vmem:[%s302 + $0xd8] sm:%s294] %v357
                %v359 = vld [vmem:[%s301 + $0x1c0] sm:%s294]
                %360 = vst [vmem:[%s302 + $0xe0] sm:%s294] %v359
                %v361 = vld [vmem:[%s301 + $0x1d0] sm:%s294]
                %362 = vst [vmem:[%s302 + $0xe8] sm:%s294] %v361
                %v363 = vld [vmem:[%s301 + $0x1e0] sm:%s294]
                %364 = vst [vmem:[%s302 + $0xf0] sm:%s294] %v363
                %v365 = vld [vmem:[%s301 + $0x1f0] sm:%s294]
                %366 = vst [vmem:[%s302 + $0xf8] sm:%s294] %v365
                %v367 = vld [vmem:[%s301 + $0x200] sm:%s294]
                %368 = vst [vmem:[%s302 + $0x100] sm:%s294] %v367
                %v369 = vld [vmem:[%s301 + $0x210] sm:%s294]
                %370 = vst [vmem:[%s302 + $0x108] sm:%s294] %v369
                %v371 = vld [vmem:[%s301 + $0x220] sm:%s294]
                %372 = vst [vmem:[%s302 + $0x110] sm:%s294] %v371
                %v373 = vld [vmem:[%s301 + $0x230] sm:%s294]
                %374 = vst [vmem:[%s302 + $0x118] sm:%s294] %v373
              $region69: #{encoder_forward.1} parent=63 // loop_footer
                %s300 = sadd.s32 1, %s296
              $region70: #{encoder_forward.1} parent=63 // loop_footer_branch
                %295 = sbr.rel target = $region66
              $region71: #{encoder_forward.1} parent=63 // loop_exit
                _
            $region64: #{encoder_forward.1} parent=55 // pred_fallthru
              _
          $region56: #{encoder_forward.1} parent=51 // pred_fallthru
            _
          %459 = vnop
        $region52: #{encoder_forward.1} parent=47 // pred_fallthru
          _
      $region48: #{encoder_forward.1} parent=5 // pred_fallthru
        _
      %p460 = scmp.le.s32.totalorder 1, %s15
      %p461 = scmp.lt.s32.totalorder %s15, 3
      %p462 = pnand %p460, %p461
      %p463 = pneg %p462
      // Predicated region
      $region87: #{encoder_forward.1} parent=5 // pred_check
        _
      $region88: #{encoder_forward.1} parent=5 // pred_check_branch
        %465 = sbr.rel (%p462) target = $region90
      $region89: #{encoder_forward.1} parent=5 // pred_region
        %s466 = ssub.s32 %s15, 1
        %s467 = sand.u32 %s28, 1
        %s468 = sand.u32 %s28, 1
        %s469 = smul.addr %s468, 288
        %s470 = scalar_lea.vmem [#allocation5], %s469
        // Predicated region
        $region91: #{encoder_forward.1} parent=89 // pred_check
          %p471 = pneg %p41
        $region92: #{encoder_forward.1} parent=89 // pred_check_branch
          %473 = sbr.rel (%p471) target = $region94
        $region93: #{encoder_forward.1} parent=89 // pred_region
          _
        $region94: #{encoder_forward.1} parent=89 // pred_fallthru
          _
        %s474 = sand.u32 %s28, 1
        %s475 = sand.u32 %s28, 1
        %s476 = smul.addr %s475, 288
        %s477 = scalar_lea.vmem [#allocation5], %s476
        %p478 = pneg %p41
        %p479 = pneg %p38
        %p480 = pneg %p62
        %p481 = pneg %p59
        %p482 = pneg %p83
        %p483 = pneg %p80
        %p484 = pneg %p104
        %p485 = pneg %p101
        %p486 = pneg %p125
        %p487 = pneg %p122
        %p488 = pneg %p146
        %p489 = pneg %p143
        %p490 = pneg %p167
        %p491 = pneg %p164
        %p492 = pneg %p188
        %p493 = pneg %p185
        %p494 = pneg %p209
        %p495 = pneg %p206
        %p496 = pneg %p235
        %p497 = pneg %p232
        %s498 = sand.u32 %s222, 1
        %s499 = sand.u32 %s222, 1
        %s500 = smul.addr %s499, 16
        %s501 = scalar_lea.vmem [#allocation6], %s500
        %v503 = vld [vmem:[%s470] sm:$0xff]
        %v504 = vld [vmem:[%s470 + $0x8] sm:$0xff]
        %v505 = vld [vmem:[%s470 + $0x10] sm:$0xff]
        %v506 = vld [vmem:[%s470 + $0x18] sm:$0xff]
        %v507 = vld [vmem:[%s470 + $0x20] sm:$0xff]
        %v508 = vld [vmem:[%s470 + $0x28] sm:$0xff]
        %v509 = vld [vmem:[%s470 + $0x30] sm:$0xff]
        %v510 = vld [vmem:[%s470 + $0x38] sm:$0xff]
        %v511 = vld [vmem:[%s470 + $0x40] sm:$0xff]
        %v512 = vld [vmem:[%s470 + $0x48] sm:$0xff]
        %v513 = vld [vmem:[%s470 + $0x50] sm:$0xff]
        %v514 = vld [vmem:[%s470 + $0x58] sm:$0xff]
        %v515 = vld [vmem:[%s470 + $0x60] sm:$0xff]
        %v516 = vld [vmem:[%s470 + $0x68] sm:$0xff]
        %v517 = vld [vmem:[%s470 + $0x70] sm:$0xff]
        %v518 = vld [vmem:[%s470 + $0x78] sm:$0xff]
        %v519 = vpack.c.bf16 %v504, %v503
        %v520 = vpack.c.bf16 %v506, %v505
        %v521 = vpack.c.bf16 %v508, %v507
        %v522 = vpack.c.bf16 %v510, %v509
        %v523 = vpack.c.bf16 %v512, %v511
        %v524 = vpack.c.bf16 %v514, %v513
        %v525 = vpack.c.bf16 %v516, %v515
        %v526 = vpack.c.bf16 %v518, %v517
        %v527 = vld [vmem:[%s1] sm:$0xff]
        %v528 = vld [vmem:[%s1 + $0x8] sm:$0xf]
        %v529 = vld [vmem:[%s1 + $0xc] sm:$0xff]
        %v530 = vld [vmem:[%s1 + $0x14] sm:$0xf]
        %v531 = vld [vmem:[%s1 + $0x18] sm:$0xff]
        %v532 = vld [vmem:[%s1 + $0x20] sm:$0xf]
        %v533 = vld [vmem:[%s1 + $0x24] sm:$0xff]
        %v534 = vld [vmem:[%s1 + $0x2c] sm:$0xf]
        %v535 = vld [vmem:[%s1 + $0x30] sm:$0xff]
        %v536 = vld [vmem:[%s1 + $0x38] sm:$0xf]
        %v537 = vld [vmem:[%s1 + $0x3c] sm:$0xff]
        %v538 = vld [vmem:[%s1 + $0x44] sm:$0xf]
        %v539 = vld [vmem:[%s1 + $0x48] sm:$0xff]
        %v540 = vld [vmem:[%s1 + $0x50] sm:$0xf]
        %v541 = vld [vmem:[%s1 + $0x54] sm:$0xff]
        %v542 = vld [vmem:[%s1 + $0x5c] sm:$0xf]
        %v543 = vld [vmem:[%s1 + $0x60] sm:$0xff]
        %v544 = vld [vmem:[%s1 + $0x68] sm:$0xf]
        %v545 = vld [vmem:[%s1 + $0x6c] sm:$0xff]
        %v546 = vld [vmem:[%s1 + $0x74] sm:$0xf]
        %v547 = vld [vmem:[%s1 + $0x78] sm:$0xff]
        %v548 = vld [vmem:[%s1 + $0x80] sm:$0xf]
        %v549 = vld [vmem:[%s1 + $0x84] sm:$0xff]
        %v550 = vld [vmem:[%s1 + $0x8c] sm:$0xf]
        %s551 = scalar_lea.vmem %s470, 144 [#allocation5]
        %v552 = vld [vmem:[%s551] sm:$0xff]
        %v553 = vld [vmem:[%s551 + $0x8] sm:$0xff]
        %v554 = vld [vmem:[%s551 + $0x10] sm:$0xff]
        %v555 = vld [vmem:[%s551 + $0x18] sm:$0xff]
        %v556 = vld [vmem:[%s551 + $0x20] sm:$0xff]
        %v557 = vld [vmem:[%s551 + $0x28] sm:$0xff]
        %v558 = vld [vmem:[%s551 + $0x30] sm:$0xff]
        %v559 = vld [vmem:[%s551 + $0x38] sm:$0xff]
        %v560 = vld [vmem:[%s551 + $0x40] sm:$0xff]
        %v561 = vld [vmem:[%s551 + $0x48] sm:$0xff]
        %v562 = vld [vmem:[%s551 + $0x50] sm:$0xff]
        %v563 = vld [vmem:[%s551 + $0x58] sm:$0xff]
        %v564 = vld [vmem:[%s551 + $0x60] sm:$0xff]
        %v565 = vld [vmem:[%s551 + $0x68] sm:$0xff]
        %v566 = vld [vmem:[%s551 + $0x70] sm:$0xff]
        %v567 = vld [vmem:[%s551 + $0x78] sm:$0xff]
        %v568 = vpack.c.bf16 %v553, %v552
        %v569 = vpack.c.bf16 %v555, %v554
        %v570 = vpack.c.bf16 %v557, %v556
        %v571 = vpack.c.bf16 %v559, %v558
        %v572 = vpack.c.bf16 %v561, %v560
        %v573 = vpack.c.bf16 %v563, %v562
        %v574 = vpack.c.bf16 %v565, %v564
        %v575 = vpack.c.bf16 %v567, %v566
        %s576 = scalar_lea.vmem %s1, 144
        %v577 = vld [vmem:[%s576] sm:$0xff]
        %v578 = vld [vmem:[%s576 + $0x8] sm:$0xf]
        %v579 = vld [vmem:[%s576 + $0xc] sm:$0xff]
        %v580 = vld [vmem:[%s576 + $0x14] sm:$0xf]
        %v581 = vld [vmem:[%s576 + $0x18] sm:$0xff]
        %v582 = vld [vmem:[%s576 + $0x20] sm:$0xf]
        %v583 = vld [vmem:[%s576 + $0x24] sm:$0xff]
        %v584 = vld [vmem:[%s576 + $0x2c] sm:$0xf]
        %v585 = vld [vmem:[%s576 + $0x30] sm:$0xff]
        %v586 = vld [vmem:[%s576 + $0x38] sm:$0xf]
        %v587 = vld [vmem:[%s576 + $0x3c] sm:$0xff]
        %v588 = vld [vmem:[%s576 + $0x44] sm:$0xf]
        %v589 = vld [vmem:[%s576 + $0x48] sm:$0xff]
        %v590 = vld [vmem:[%s576 + $0x50] sm:$0xf]
        %v591 = vld [vmem:[%s576 + $0x54] sm:$0xff]
        %v592 = vld [vmem:[%s576 + $0x5c] sm:$0xf]
        %v593 = vld [vmem:[%s576 + $0x60] sm:$0xff]
        %v594 = vld [vmem:[%s576 + $0x68] sm:$0xf]
        %v595 = vld [vmem:[%s576 + $0x6c] sm:$0xff]
        %v596 = vld [vmem:[%s576 + $0x74] sm:$0xf]
        %v597 = vld [vmem:[%s576 + $0x78] sm:$0xff]
        %v598 = vld [vmem:[%s576 + $0x80] sm:$0xf]
        %v599 = vld [vmem:[%s576 + $0x84] sm:$0xff]
        %v600 = vld [vmem:[%s576 + $0x8c] sm:$0xf]
        %v625 = vunpack.c.l.b16 %v577
        %v626 = vunpack.c.h.b16 %v577
        %v627 = vunpack.c.l.b16 %v578
        %v628 = vunpack.c.l.b16 %v579
        %v629 = vunpack.c.h.b16 %v579
        %v630 = vunpack.c.l.b16 %v580
        %v631 = vunpack.c.l.b16 %v581
        %v632 = vunpack.c.h.b16 %v581
        %v633 = vunpack.c.l.b16 %v582
        %v634 = vunpack.c.l.b16 %v583
        %v635 = vunpack.c.h.b16 %v583
        %v636 = vunpack.c.l.b16 %v584
        %v637 = vunpack.c.l.b16 %v585
        %v638 = vunpack.c.h.b16 %v585
        %v639 = vunpack.c.l.b16 %v586
        %v640 = vunpack.c.l.b16 %v587
        %v641 = vunpack.c.h.b16 %v587
        %v642 = vunpack.c.l.b16 %v588
        %v643 = vunpack.c.l.b16 %v589
        %v644 = vunpack.c.h.b16 %v589
        %v645 = vunpack.c.l.b16 %v590
        %v646 = vunpack.c.l.b16 %v591
        %v647 = vunpack.c.h.b16 %v591
        %v648 = vunpack.c.l.b16 %v592
        %v649 = vunpack.c.l.b16 %v593
        %v650 = vunpack.c.h.b16 %v593
        %v651 = vunpack.c.l.b16 %v594
        %v652 = vunpack.c.l.b16 %v595
        %v653 = vunpack.c.h.b16 %v595
        %v654 = vunpack.c.l.b16 %v596
        %v655 = vunpack.c.l.b16 %v597
        %v656 = vunpack.c.h.b16 %v597
        %v657 = vunpack.c.l.b16 %v598
        %v658 = vunpack.c.l.b16 %v599
        %v659 = vunpack.c.h.b16 %v599
        %v660 = vunpack.c.l.b16 %v600
        %v661 = vpack.c.b16 %v628, %v625
        %v662 = vpack.c.b16 %v629, %v626
        %v663 = vpack.c.b16 %v630, %v627
        %v664 = vpack.c.b16 %v634, %v631
        %v665 = vpack.c.b16 %v635, %v632
        %v666 = vpack.c.b16 %v636, %v633
        %v667 = vpack.c.b16 %v640, %v637
        %v668 = vpack.c.b16 %v641, %v638
        %v669 = vpack.c.b16 %v642, %v639
        %v670 = vpack.c.b16 %v646, %v643
        %v671 = vpack.c.b16 %v647, %v644
        %v672 = vpack.c.b16 %v648, %v645
        %v673 = vpack.c.b16 %v652, %v649
        %v674 = vpack.c.b16 %v653, %v650
        %v675 = vpack.c.b16 %v654, %v651
        %v676 = vpack.c.b16 %v658, %v655
        %v677 = vpack.c.b16 %v659, %v656
        %v678 = vpack.c.b16 %v660, %v657
        %vm697 = vcmask 785408
        %v699 = vsel %vm697, %v568, 0
        %v702 = vsel %vm697, %v569, 0
        %v705 = vsel %vm697, %v570, 0
        %v708 = vsel %vm697, %v571, 0
        %v711 = vsel %vm697, %v572, 0
        %v714 = vsel %vm697, %v573, 0
        %v717 = vsel %vm697, %v574, 0
        %v720 = vsel %vm697, %v575, 0
        %722 = vmatpush.bf16.msra.mxu0 0
        %723 = vmatpush.bf16.msra.mxu0 0
        %724 = vmatpush.bf16.msra.mxu0 %v676
        %725 = vmatpush.bf16.msra.mxu0 %v673
        %726 = vmatpush.bf16.msra.mxu0 %v670
        %727 = vmatpush.bf16.msra.mxu0 %v667
        %728 = vmatpush.bf16.msra.mxu0 %v664
        %729 = vmatpush.bf16.msra.mxu0 %v661
        %730 = vmatmul.bf16.gmra.mxu0 %v699
        %v731 = vpop.f32.mrf.mxu0
        %v732 = vadd.f32 0.0, %v731
        %v733 = vpop.f32.mrf.mxu0
        %v734 = vadd.f32 0.0, %v733
        %735 = vmatmul.bf16.gmra.mxu0 %v702
        %v736 = vpop.f32.mrf.mxu0
        %v737 = vadd.f32 0.0, %v736
        %v738 = vpop.f32.mrf.mxu0
        %v739 = vadd.f32 0.0, %v738
        %740 = vmatmul.bf16.gmra.mxu0 %v705
        %v741 = vpop.f32.mrf.mxu0
        %v742 = vadd.f32 0.0, %v741
        %v743 = vpop.f32.mrf.mxu0
        %v744 = vadd.f32 0.0, %v743
        %745 = vmatmul.bf16.gmra.mxu0 %v708
        %v746 = vpop.f32.mrf.mxu0
        %v747 = vadd.f32 0.0, %v746
        %v748 = vpop.f32.mrf.mxu0
        %v749 = vadd.f32 0.0, %v748
        %750 = vmatmul.bf16.gmra.mxu0 %v711
        %v751 = vpop.f32.mrf.mxu0
        %v752 = vadd.f32 0.0, %v751
        %v753 = vpop.f32.mrf.mxu0
        %v754 = vadd.f32 0.0, %v753
        %755 = vmatmul.bf16.gmra.mxu0 %v714
        %v756 = vpop.f32.mrf.mxu0
        %v757 = vadd.f32 0.0, %v756
        %v758 = vpop.f32.mrf.mxu0
        %v759 = vadd.f32 0.0, %v758
        %760 = vmatmul.bf16.gmra.mxu0 %v717
        %v761 = vpop.f32.mrf.mxu0
        %v762 = vadd.f32 0.0, %v761
        %v763 = vpop.f32.mrf.mxu0
        %v764 = vadd.f32 0.0, %v763
        %765 = vmatmul.bf16.gmra.mxu0 %v720
        %v766 = vpop.f32.mrf.mxu0
        %v767 = vadd.f32 0.0, %v766
        %v768 = vpop.f32.mrf.mxu0
        %v769 = vadd.f32 0.0, %v768
        %770 = vdwg.mxu0
        %771 = vmatpush.bf16.msra.mxu0 0
        %772 = vmatpush.bf16.msra.mxu0 0
        %773 = vmatpush.bf16.msra.mxu0 %v677
        %774 = vmatpush.bf16.msra.mxu0 %v674
        %775 = vmatpush.bf16.msra.mxu0 %v671
        %776 = vmatpush.bf16.msra.mxu0 %v668
        %777 = vmatpush.bf16.msra.mxu0 %v665
        %778 = vmatpush.bf16.msra.mxu0 %v662
        %779 = vmatmul.bf16.gmra.mxu0 %v699
        %v780 = vpop.f32.mrf.mxu0
        %v781 = vadd.f32 0.0, %v780
        %v782 = vpop.f32.mrf.mxu0
        %v783 = vadd.f32 0.0, %v782
        %784 = vmatmul.bf16.gmra.mxu0 %v702
        %v785 = vpop.f32.mrf.mxu0
        %v786 = vadd.f32 0.0, %v785
        %v787 = vpop.f32.mrf.mxu0
        %v788 = vadd.f32 0.0, %v787
        %789 = vmatmul.bf16.gmra.mxu0 %v705
        %v790 = vpop.f32.mrf.mxu0
        %v791 = vadd.f32 0.0, %v790
        %v792 = vpop.f32.mrf.mxu0
        %v793 = vadd.f32 0.0, %v792
        %794 = vmatmul.bf16.gmra.mxu0 %v708
        %v795 = vpop.f32.mrf.mxu0
        %v796 = vadd.f32 0.0, %v795
        %v797 = vpop.f32.mrf.mxu0
        %v798 = vadd.f32 0.0, %v797
        %799 = vmatmul.bf16.gmra.mxu0 %v711
        %v800 = vpop.f32.mrf.mxu0
        %v801 = vadd.f32 0.0, %v800
        %v802 = vpop.f32.mrf.mxu0
        %v803 = vadd.f32 0.0, %v802
        %804 = vmatmul.bf16.gmra.mxu0 %v714
        %v805 = vpop.f32.mrf.mxu0
        %v806 = vadd.f32 0.0, %v805
        %v807 = vpop.f32.mrf.mxu0
        %v808 = vadd.f32 0.0, %v807
        %809 = vmatmul.bf16.gmra.mxu0 %v717
        %v810 = vpop.f32.mrf.mxu0
        %v811 = vadd.f32 0.0, %v810
        %v812 = vpop.f32.mrf.mxu0
        %v813 = vadd.f32 0.0, %v812
        %814 = vmatmul.bf16.gmra.mxu0 %v720
        %v815 = vpop.f32.mrf.mxu0
        %v816 = vadd.f32 0.0, %v815
        %v817 = vpop.f32.mrf.mxu0
        %v818 = vadd.f32 0.0, %v817
        %819 = vdwg.mxu0
        %820 = vmatpush.bf16.msra.mxu0 0
        %821 = vmatpush.bf16.msra.mxu0 0
        %822 = vmatpush.bf16.msra.mxu0 %v678
        %823 = vmatpush.bf16.msra.mxu0 %v675
        %824 = vmatpush.bf16.msra.mxu0 %v672
        %825 = vmatpush.bf16.msra.mxu0 %v669
        %826 = vmatpush.bf16.msra.mxu0 %v666
        %827 = vmatpush.bf16.msra.mxu0 %v663
        %828 = vmatmul.bf16.gmra.mxu0 %v699
        %v829 = vpop.f32.mrf.mxu0
        %v830 = vadd.f32 0.0, %v829
        %v831 = vpop.f32.mrf.mxu0
        %v832 = vadd.f32 0.0, %v831
        %833 = vmatmul.bf16.gmra.mxu0 %v702
        %v834 = vpop.f32.mrf.mxu0
        %v835 = vadd.f32 0.0, %v834
        %v836 = vpop.f32.mrf.mxu0
        %v837 = vadd.f32 0.0, %v836
        %838 = vmatmul.bf16.gmra.mxu0 %v705
        %v839 = vpop.f32.mrf.mxu0
        %v840 = vadd.f32 0.0, %v839
        %v841 = vpop.f32.mrf.mxu0
        %v842 = vadd.f32 0.0, %v841
        %843 = vmatmul.bf16.gmra.mxu0 %v708
        %v844 = vpop.f32.mrf.mxu0
        %v845 = vadd.f32 0.0, %v844
        %v846 = vpop.f32.mrf.mxu0
        %v847 = vadd.f32 0.0, %v846
        %848 = vmatmul.bf16.gmra.mxu0 %v711
        %v849 = vpop.f32.mrf.mxu0
        %v850 = vadd.f32 0.0, %v849
        %v851 = vpop.f32.mrf.mxu0
        %v852 = vadd.f32 0.0, %v851
        %853 = vmatmul.bf16.gmra.mxu0 %v714
        %v854 = vpop.f32.mrf.mxu0
        %v855 = vadd.f32 0.0, %v854
        %v856 = vpop.f32.mrf.mxu0
        %v857 = vadd.f32 0.0, %v856
        %858 = vmatmul.bf16.gmra.mxu0 %v717
        %v859 = vpop.f32.mrf.mxu0
        %v860 = vadd.f32 0.0, %v859
        %v861 = vpop.f32.mrf.mxu0
        %v862 = vadd.f32 0.0, %v861
        %863 = vmatmul.bf16.gmra.mxu0 %v720
        %v864 = vpop.f32.mrf.mxu0
        %v865 = vadd.f32 0.0, %v864
        %v866 = vpop.f32.mrf.mxu0
        %v867 = vadd.f32 0.0, %v866
        %868 = vdwg.mxu0
        %v893 = vunpack.c.l.b16 %v527
        %v894 = vunpack.c.h.b16 %v527
        %v895 = vunpack.c.l.b16 %v528
        %v896 = vunpack.c.l.b16 %v529
        %v897 = vunpack.c.h.b16 %v529
        %v898 = vunpack.c.l.b16 %v530
        %v899 = vunpack.c.l.b16 %v531
        %v900 = vunpack.c.h.b16 %v531
        %v901 = vunpack.c.l.b16 %v532
        %v902 = vunpack.c.l.b16 %v533
        %v903 = vunpack.c.h.b16 %v533
        %v904 = vunpack.c.l.b16 %v534
        %v905 = vunpack.c.l.b16 %v535
        %v906 = vunpack.c.h.b16 %v535
        %v907 = vunpack.c.l.b16 %v536
        %v908 = vunpack.c.l.b16 %v537
        %v909 = vunpack.c.h.b16 %v537
        %v910 = vunpack.c.l.b16 %v538
        %v911 = vunpack.c.l.b16 %v539
        %v912 = vunpack.c.h.b16 %v539
        %v913 = vunpack.c.l.b16 %v540
        %v914 = vunpack.c.l.b16 %v541
        %v915 = vunpack.c.h.b16 %v541
        %v916 = vunpack.c.l.b16 %v542
        %v917 = vunpack.c.l.b16 %v543
        %v918 = vunpack.c.h.b16 %v543
        %v919 = vunpack.c.l.b16 %v544
        %v920 = vunpack.c.l.b16 %v545
        %v921 = vunpack.c.h.b16 %v545
        %v922 = vunpack.c.l.b16 %v546
        %v923 = vunpack.c.l.b16 %v547
        %v924 = vunpack.c.h.b16 %v547
        %v925 = vunpack.c.l.b16 %v548
        %v926 = vunpack.c.l.b16 %v549
        %v927 = vunpack.c.h.b16 %v549
        %v928 = vunpack.c.l.b16 %v550
        %v929 = vpack.c.b16 %v896, %v893
        %v930 = vpack.c.b16 %v897, %v894
        %v931 = vpack.c.b16 %v898, %v895
        %v932 = vpack.c.b16 %v902, %v899
        %v933 = vpack.c.b16 %v903, %v900
        %v934 = vpack.c.b16 %v904, %v901
        %v935 = vpack.c.b16 %v908, %v905
        %v936 = vpack.c.b16 %v909, %v906
        %v937 = vpack.c.b16 %v910, %v907
        %v938 = vpack.c.b16 %v914, %v911
        %v939 = vpack.c.b16 %v915, %v912
        %v940 = vpack.c.b16 %v916, %v913
        %v941 = vpack.c.b16 %v920, %v917
        %v942 = vpack.c.b16 %v921, %v918
        %v943 = vpack.c.b16 %v922, %v919
        %v944 = vpack.c.b16 %v926, %v923
        %v945 = vpack.c.b16 %v927, %v924
        %v946 = vpack.c.b16 %v928, %v925
        %v966 = vsel %vm697, %v519, 0
        %v969 = vsel %vm697, %v520, 0
        %v972 = vsel %vm697, %v521, 0
        %v975 = vsel %vm697, %v522, 0
        %v978 = vsel %vm697, %v523, 0
        %v981 = vsel %vm697, %v524, 0
        %v984 = vsel %vm697, %v525, 0
        %v987 = vsel %vm697, %v526, 0
        %989 = vmatpush.bf16.msra.mxu0 0
        %990 = vmatpush.bf16.msra.mxu0 0
        %991 = vmatpush.bf16.msra.mxu0 %v944
        %992 = vmatpush.bf16.msra.mxu0 %v941
        %993 = vmatpush.bf16.msra.mxu0 %v938
        %994 = vmatpush.bf16.msra.mxu0 %v935
        %995 = vmatpush.bf16.msra.mxu0 %v932
        %996 = vmatpush.bf16.msra.mxu0 %v929
        %997 = vmatmul.bf16.gmra.mxu0 %v966
        %v998 = vpop.f32.mrf.mxu0
        %v999 = vadd.f32 %v732, %v998
        %v1000 = vpop.f32.mrf.mxu0
        %v1001 = vadd.f32 %v734, %v1000
        %1002 = vmatmul.bf16.gmra.mxu0 %v969
        %v1003 = vpop.f32.mrf.mxu0
        %v1004 = vadd.f32 %v737, %v1003
        %v1005 = vpop.f32.mrf.mxu0
        %v1006 = vadd.f32 %v739, %v1005
        %1007 = vmatmul.bf16.gmra.mxu0 %v972
        %v1008 = vpop.f32.mrf.mxu0
        %v1009 = vadd.f32 %v742, %v1008
        %v1010 = vpop.f32.mrf.mxu0
        %v1011 = vadd.f32 %v744, %v1010
        %1012 = vmatmul.bf16.gmra.mxu0 %v975
        %v1013 = vpop.f32.mrf.mxu0
        %v1014 = vadd.f32 %v747, %v1013
        %v1015 = vpop.f32.mrf.mxu0
        %v1016 = vadd.f32 %v749, %v1015
        %1017 = vmatmul.bf16.gmra.mxu0 %v978
        %v1018 = vpop.f32.mrf.mxu0
        %v1019 = vadd.f32 %v752, %v1018
        %v1020 = vpop.f32.mrf.mxu0
        %v1021 = vadd.f32 %v754, %v1020
        %1022 = vmatmul.bf16.gmra.mxu0 %v981
        %v1023 = vpop.f32.mrf.mxu0
        %v1024 = vadd.f32 %v757, %v1023
        %v1025 = vpop.f32.mrf.mxu0
        %v1026 = vadd.f32 %v759, %v1025
        %1027 = vmatmul.bf16.gmra.mxu0 %v984
        %v1028 = vpop.f32.mrf.mxu0
        %v1029 = vadd.f32 %v762, %v1028
        %v1030 = vpop.f32.mrf.mxu0
        %v1031 = vadd.f32 %v764, %v1030
        %1032 = vmatmul.bf16.gmra.mxu0 %v987
        %v1033 = vpop.f32.mrf.mxu0
        %v1034 = vadd.f32 %v767, %v1033
        %v1035 = vpop.f32.mrf.mxu0
        %v1036 = vadd.f32 %v769, %v1035
        %1037 = vdwg.mxu0
        %1038 = vmatpush.bf16.msra.mxu0 0
        %1039 = vmatpush.bf16.msra.mxu0 0
        %1040 = vmatpush.bf16.msra.mxu0 %v945
        %1041 = vmatpush.bf16.msra.mxu0 %v942
        %1042 = vmatpush.bf16.msra.mxu0 %v939
        %1043 = vmatpush.bf16.msra.mxu0 %v936
        %1044 = vmatpush.bf16.msra.mxu0 %v933
        %1045 = vmatpush.bf16.msra.mxu0 %v930
        %1046 = vmatmul.bf16.gmra.mxu0 %v966
        %v1047 = vpop.f32.mrf.mxu0
        %v1048 = vadd.f32 %v781, %v1047
        %v1049 = vpop.f32.mrf.mxu0
        %v1050 = vadd.f32 %v783, %v1049
        %1051 = vmatmul.bf16.gmra.mxu0 %v969
        %v1052 = vpop.f32.mrf.mxu0
        %v1053 = vadd.f32 %v786, %v1052
        %v1054 = vpop.f32.mrf.mxu0
        %v1055 = vadd.f32 %v788, %v1054
        %1056 = vmatmul.bf16.gmra.mxu0 %v972
        %v1057 = vpop.f32.mrf.mxu0
        %v1058 = vadd.f32 %v791, %v1057
        %v1059 = vpop.f32.mrf.mxu0
        %v1060 = vadd.f32 %v793, %v1059
        %1061 = vmatmul.bf16.gmra.mxu0 %v975
        %v1062 = vpop.f32.mrf.mxu0
        %v1063 = vadd.f32 %v796, %v1062
        %v1064 = vpop.f32.mrf.mxu0
        %v1065 = vadd.f32 %v798, %v1064
        %1066 = vmatmul.bf16.gmra.mxu0 %v978
        %v1067 = vpop.f32.mrf.mxu0
        %v1068 = vadd.f32 %v801, %v1067
        %v1069 = vpop.f32.mrf.mxu0
        %v1070 = vadd.f32 %v803, %v1069
        %1071 = vmatmul.bf16.gmra.mxu0 %v981
        %v1072 = vpop.f32.mrf.mxu0
        %v1073 = vadd.f32 %v806, %v1072
        %v1074 = vpop.f32.mrf.mxu0
        %v1075 = vadd.f32 %v808, %v1074
        %1076 = vmatmul.bf16.gmra.mxu0 %v984
        %v1077 = vpop.f32.mrf.mxu0
        %v1078 = vadd.f32 %v811, %v1077
        %v1079 = vpop.f32.mrf.mxu0
        %v1080 = vadd.f32 %v813, %v1079
        %1081 = vmatmul.bf16.gmra.mxu0 %v987
        %v1082 = vpop.f32.mrf.mxu0
        %v1083 = vadd.f32 %v816, %v1082
        %v1084 = vpop.f32.mrf.mxu0
        %v1085 = vadd.f32 %v818, %v1084
        %1086 = vdwg.mxu0
        %1087 = vmatpush.bf16.msra.mxu0 0
        %1088 = vmatpush.bf16.msra.mxu0 0
        %1089 = vmatpush.bf16.msra.mxu0 %v946
        %1090 = vmatpush.bf16.msra.mxu0 %v943
        %1091 = vmatpush.bf16.msra.mxu0 %v940
        %1092 = vmatpush.bf16.msra.mxu0 %v937
        %1093 = vmatpush.bf16.msra.mxu0 %v934
        %1094 = vmatpush.bf16.msra.mxu0 %v931
        %1095 = vmatmul.bf16.gmra.mxu0 %v966
        %v1096 = vpop.f32.mrf.mxu0
        %v1097 = vadd.f32 %v830, %v1096
        %v1098 = vpop.f32.mrf.mxu0
        %v1099 = vadd.f32 %v832, %v1098
        %1100 = vmatmul.bf16.gmra.mxu0 %v969
        %v1101 = vpop.f32.mrf.mxu0
        %v1102 = vadd.f32 %v835, %v1101
        %v1103 = vpop.f32.mrf.mxu0
        %v1104 = vadd.f32 %v837, %v1103
        %1105 = vmatmul.bf16.gmra.mxu0 %v972
        %v1106 = vpop.f32.mrf.mxu0
        %v1107 = vadd.f32 %v840, %v1106
        %v1108 = vpop.f32.mrf.mxu0
        %v1109 = vadd.f32 %v842, %v1108
        %1110 = vmatmul.bf16.gmra.mxu0 %v975
        %v1111 = vpop.f32.mrf.mxu0
        %v1112 = vadd.f32 %v845, %v1111
        %v1113 = vpop.f32.mrf.mxu0
        %v1114 = vadd.f32 %v847, %v1113
        %1115 = vmatmul.bf16.gmra.mxu0 %v978
        %v1116 = vpop.f32.mrf.mxu0
        %v1117 = vadd.f32 %v850, %v1116
        %v1118 = vpop.f32.mrf.mxu0
        %v1119 = vadd.f32 %v852, %v1118
        %1120 = vmatmul.bf16.gmra.mxu0 %v981
        %v1121 = vpop.f32.mrf.mxu0
        %v1122 = vadd.f32 %v855, %v1121
        %v1123 = vpop.f32.mrf.mxu0
        %v1124 = vadd.f32 %v857, %v1123
        %1125 = vmatmul.bf16.gmra.mxu0 %v984
        %v1126 = vpop.f32.mrf.mxu0
        %v1127 = vadd.f32 %v860, %v1126
        %v1128 = vpop.f32.mrf.mxu0
        %v1129 = vadd.f32 %v862, %v1128
        %1130 = vmatmul.bf16.gmra.mxu0 %v987
        %v1131 = vpop.f32.mrf.mxu0
        %v1132 = vadd.f32 %v865, %v1131
        %v1133 = vpop.f32.mrf.mxu0
        %v1134 = vadd.f32 %v867, %v1133
        %1135 = vdwg.mxu0
        %s1136 = scalar_lea.vmem %s470, 8 [#allocation5]
        %v1137 = vld [vmem:[%s1136] sm:$0xff]
        %v1138 = vld [vmem:[%s1136 + $0x8] sm:$0xff]
        %v1139 = vld [vmem:[%s1136 + $0x10] sm:$0xff]
        %v1140 = vld [vmem:[%s1136 + $0x18] sm:$0xff]
        %v1141 = vld [vmem:[%s1136 + $0x20] sm:$0xff]
        %v1142 = vld [vmem:[%s1136 + $0x28] sm:$0xff]
        %v1143 = vld [vmem:[%s1136 + $0x30] sm:$0xff]
        %v1144 = vld [vmem:[%s1136 + $0x38] sm:$0xff]
        %v1145 = vld [vmem:[%s1136 + $0x40] sm:$0xff]
        %v1146 = vld [vmem:[%s1136 + $0x48] sm:$0xff]
        %v1147 = vld [vmem:[%s1136 + $0x50] sm:$0xff]
        %v1148 = vld [vmem:[%s1136 + $0x58] sm:$0xff]
        %v1149 = vld [vmem:[%s1136 + $0x60] sm:$0xff]
        %v1150 = vld [vmem:[%s1136 + $0x68] sm:$0xff]
        %v1151 = vld [vmem:[%s1136 + $0x70] sm:$0xff]
        %v1152 = vld [vmem:[%s1136 + $0x78] sm:$0xff]
        %v1153 = vpack.c.bf16 %v1138, %v1137
        %v1154 = vpack.c.bf16 %v1140, %v1139
        %v1155 = vpack.c.bf16 %v1142, %v1141
        %v1156 = vpack.c.bf16 %v1144, %v1143
        %v1157 = vpack.c.bf16 %v1146, %v1145
        %v1158 = vpack.c.bf16 %v1148, %v1147
        %v1159 = vpack.c.bf16 %v1150, %v1149
        %v1160 = vpack.c.bf16 %v1152, %v1151
        %s1161 = scalar_lea.vmem %s1, 288
        %v1162 = vld [vmem:[%s1161] sm:$0xff]
        %v1163 = vld [vmem:[%s1161 + $0x8] sm:$0xf]
        %v1164 = vld [vmem:[%s1161 + $0xc] sm:$0xff]
        %v1165 = vld [vmem:[%s1161 + $0x14] sm:$0xf]
        %v1166 = vld [vmem:[%s1161 + $0x18] sm:$0xff]
        %v1167 = vld [vmem:[%s1161 + $0x20] sm:$0xf]
        %v1168 = vld [vmem:[%s1161 + $0x24] sm:$0xff]
        %v1169 = vld [vmem:[%s1161 + $0x2c] sm:$0xf]
        %v1170 = vld [vmem:[%s1161 + $0x30] sm:$0xff]
        %v1171 = vld [vmem:[%s1161 + $0x38] sm:$0xf]
        %v1172 = vld [vmem:[%s1161 + $0x3c] sm:$0xff]
        %v1173 = vld [vmem:[%s1161 + $0x44] sm:$0xf]
        %v1174 = vld [vmem:[%s1161 + $0x48] sm:$0xff]
        %v1175 = vld [vmem:[%s1161 + $0x50] sm:$0xf]
        %v1176 = vld [vmem:[%s1161 + $0x54] sm:$0xff]
        %v1177 = vld [vmem:[%s1161 + $0x5c] sm:$0xf]
        %v1178 = vld [vmem:[%s1161 + $0x60] sm:$0xff]
        %v1179 = vld [vmem:[%s1161 + $0x68] sm:$0xf]
        %v1180 = vld [vmem:[%s1161 + $0x6c] sm:$0xff]
        %v1181 = vld [vmem:[%s1161 + $0x74] sm:$0xf]
        %v1182 = vld [vmem:[%s1161 + $0x78] sm:$0xff]
        %v1183 = vld [vmem:[%s1161 + $0x80] sm:$0xf]
        %v1184 = vld [vmem:[%s1161 + $0x84] sm:$0xff]
        %v1185 = vld [vmem:[%s1161 + $0x8c] sm:$0xf]
        %v1210 = vunpack.c.l.b16 %v1162
        %v1211 = vunpack.c.h.b16 %v1162
        %v1212 = vunpack.c.l.b16 %v1163
        %v1213 = vunpack.c.l.b16 %v1164
        %v1214 = vunpack.c.h.b16 %v1164
        %v1215 = vunpack.c.l.b16 %v1165
        %v1216 = vunpack.c.l.b16 %v1166
        %v1217 = vunpack.c.h.b16 %v1166
        %v1218 = vunpack.c.l.b16 %v1167
        %v1219 = vunpack.c.l.b16 %v1168
        %v1220 = vunpack.c.h.b16 %v1168
        %v1221 = vunpack.c.l.b16 %v1169
        %v1222 = vunpack.c.l.b16 %v1170
        %v1223 = vunpack.c.h.b16 %v1170
        %v1224 = vunpack.c.l.b16 %v1171
        %v1225 = vunpack.c.l.b16 %v1172
        %v1226 = vunpack.c.h.b16 %v1172
        %v1227 = vunpack.c.l.b16 %v1173
        %v1228 = vunpack.c.l.b16 %v1174
        %v1229 = vunpack.c.h.b16 %v1174
        %v1230 = vunpack.c.l.b16 %v1175
        %v1231 = vunpack.c.l.b16 %v1176
        %v1232 = vunpack.c.h.b16 %v1176
        %v1233 = vunpack.c.l.b16 %v1177
        %v1234 = vunpack.c.l.b16 %v1178
        %v1235 = vunpack.c.h.b16 %v1178
        %v1236 = vunpack.c.l.b16 %v1179
        %v1237 = vunpack.c.l.b16 %v1180
        %v1238 = vunpack.c.h.b16 %v1180
        %v1239 = vunpack.c.l.b16 %v1181
        %v1240 = vunpack.c.l.b16 %v1182
        %v1241 = vunpack.c.h.b16 %v1182
        %v1242 = vunpack.c.l.b16 %v1183
        %v1243 = vunpack.c.l.b16 %v1184
        %v1244 = vunpack.c.h.b16 %v1184
        %v1245 = vunpack.c.l.b16 %v1185
        %v1246 = vpack.c.b16 %v1213, %v1210
        %v1247 = vpack.c.b16 %v1214, %v1211
        %v1248 = vpack.c.b16 %v1215, %v1212
        %v1249 = vpack.c.b16 %v1219, %v1216
        %v1250 = vpack.c.b16 %v1220, %v1217
        %v1251 = vpack.c.b16 %v1221, %v1218
        %v1252 = vpack.c.b16 %v1225, %v1222
        %v1253 = vpack.c.b16 %v1226, %v1223
        %v1254 = vpack.c.b16 %v1227, %v1224
        %v1255 = vpack.c.b16 %v1231, %v1228
        %v1256 = vpack.c.b16 %v1232, %v1229
        %v1257 = vpack.c.b16 %v1233, %v1230
        %v1258 = vpack.c.b16 %v1237, %v1234
        %v1259 = vpack.c.b16 %v1238, %v1235
        %v1260 = vpack.c.b16 %v1239, %v1236
        %v1261 = vpack.c.b16 %v1243, %v1240
        %v1262 = vpack.c.b16 %v1244, %v1241
        %v1263 = vpack.c.b16 %v1245, %v1242
        %v1283 = vsel %vm697, %v1153, 0
        %v1286 = vsel %vm697, %v1154, 0
        %v1289 = vsel %vm697, %v1155, 0
        %v1292 = vsel %vm697, %v1156, 0
        %v1295 = vsel %vm697, %v1157, 0
        %v1298 = vsel %vm697, %v1158, 0
        %v1301 = vsel %vm697, %v1159, 0
        %v1304 = vsel %vm697, %v1160, 0
        %1306 = vmatpush.bf16.msra.mxu0 0
        %1307 = vmatpush.bf16.msra.mxu0 0
        %1308 = vmatpush.bf16.msra.mxu0 %v1261
        %1309 = vmatpush.bf16.msra.mxu0 %v1258
        %1310 = vmatpush.bf16.msra.mxu0 %v1255
        %1311 = vmatpush.bf16.msra.mxu0 %v1252
        %1312 = vmatpush.bf16.msra.mxu0 %v1249
        %1313 = vmatpush.bf16.msra.mxu0 %v1246
        %1314 = vmatmul.bf16.gmra.mxu0 %v1283
        %v1315 = vpop.f32.mrf.mxu0
        %v1316 = vadd.f32 0.0, %v1315
        %v1317 = vpop.f32.mrf.mxu0
        %v1318 = vadd.f32 0.0, %v1317
        %1319 = vmatmul.bf16.gmra.mxu0 %v1286
        %v1320 = vpop.f32.mrf.mxu0
        %v1321 = vadd.f32 0.0, %v1320
        %v1322 = vpop.f32.mrf.mxu0
        %v1323 = vadd.f32 0.0, %v1322
        %1324 = vmatmul.bf16.gmra.mxu0 %v1289
        %v1325 = vpop.f32.mrf.mxu0
        %v1326 = vadd.f32 0.0, %v1325
        %v1327 = vpop.f32.mrf.mxu0
        %v1328 = vadd.f32 0.0, %v1327
        %1329 = vmatmul.bf16.gmra.mxu0 %v1292
        %v1330 = vpop.f32.mrf.mxu0
        %v1331 = vadd.f32 0.0, %v1330
        %v1332 = vpop.f32.mrf.mxu0
        %v1333 = vadd.f32 0.0, %v1332
        %1334 = vmatmul.bf16.gmra.mxu0 %v1295
        %v1335 = vpop.f32.mrf.mxu0
        %v1336 = vadd.f32 0.0, %v1335
        %v1337 = vpop.f32.mrf.mxu0
        %v1338 = vadd.f32 0.0, %v1337
        %1339 = vmatmul.bf16.gmra.mxu0 %v1298
        %v1340 = vpop.f32.mrf.mxu0
        %v1341 = vadd.f32 0.0, %v1340
        %v1342 = vpop.f32.mrf.mxu0
        %v1343 = vadd.f32 0.0, %v1342
        %1344 = vmatmul.bf16.gmra.mxu0 %v1301
        %v1345 = vpop.f32.mrf.mxu0
        %v1346 = vadd.f32 0.0, %v1345
        %v1347 = vpop.f32.mrf.mxu0
        %v1348 = vadd.f32 0.0, %v1347
        %1349 = vmatmul.bf16.gmra.mxu0 %v1304
        %v1350 = vpop.f32.mrf.mxu0
        %v1351 = vadd.f32 0.0, %v1350
        %v1352 = vpop.f32.mrf.mxu0
        %v1353 = vadd.f32 0.0, %v1352
        %1354 = vdwg.mxu0
        %1355 = vmatpush.bf16.msra.mxu0 0
        %1356 = vmatpush.bf16.msra.mxu0 0
        %1357 = vmatpush.bf16.msra.mxu0 %v1262
        %1358 = vmatpush.bf16.msra.mxu0 %v1259
        %1359 = vmatpush.bf16.msra.mxu0 %v1256
        %1360 = vmatpush.bf16.msra.mxu0 %v1253
        %1361 = vmatpush.bf16.msra.mxu0 %v1250
        %1362 = vmatpush.bf16.msra.mxu0 %v1247
        %1363 = vmatmul.bf16.gmra.mxu0 %v1283
        %v1364 = vpop.f32.mrf.mxu0
        %v1365 = vadd.f32 0.0, %v1364
        %v1366 = vpop.f32.mrf.mxu0
        %v1367 = vadd.f32 0.0, %v1366
        %1368 = vmatmul.bf16.gmra.mxu0 %v1286
        %v1369 = vpop.f32.mrf.mxu0
        %v1370 = vadd.f32 0.0, %v1369
        %v1371 = vpop.f32.mrf.mxu0
        %v1372 = vadd.f32 0.0, %v1371
        %1373 = vmatmul.bf16.gmra.mxu0 %v1289
        %v1374 = vpop.f32.mrf.mxu0
        %v1375 = vadd.f32 0.0, %v1374
        %v1376 = vpop.f32.mrf.mxu0
        %v1377 = vadd.f32 0.0, %v1376
        %1378 = vmatmul.bf16.gmra.mxu0 %v1292
        %v1379 = vpop.f32.mrf.mxu0
        %v1380 = vadd.f32 0.0, %v1379
        %v1381 = vpop.f32.mrf.mxu0
        %v1382 = vadd.f32 0.0, %v1381
        %1383 = vmatmul.bf16.gmra.mxu0 %v1295
        %v1384 = vpop.f32.mrf.mxu0
        %v1385 = vadd.f32 0.0, %v1384
        %v1386 = vpop.f32.mrf.mxu0
        %v1387 = vadd.f32 0.0, %v1386
        %1388 = vmatmul.bf16.gmra.mxu0 %v1298
        %v1389 = vpop.f32.mrf.mxu0
        %v1390 = vadd.f32 0.0, %v1389
        %v1391 = vpop.f32.mrf.mxu0
        %v1392 = vadd.f32 0.0, %v1391
        %1393 = vmatmul.bf16.gmra.mxu0 %v1301
        %v1394 = vpop.f32.mrf.mxu0
        %v1395 = vadd.f32 0.0, %v1394
        %v1396 = vpop.f32.mrf.mxu0
        %v1397 = vadd.f32 0.0, %v1396
        %1398 = vmatmul.bf16.gmra.mxu0 %v1304
        %v1399 = vpop.f32.mrf.mxu0
        %v1400 = vadd.f32 0.0, %v1399
        %v1401 = vpop.f32.mrf.mxu0
        %v1402 = vadd.f32 0.0, %v1401
        %1403 = vdwg.mxu0
        %1404 = vmatpush.bf16.msra.mxu0 0
        %1405 = vmatpush.bf16.msra.mxu0 0
        %1406 = vmatpush.bf16.msra.mxu0 %v1263
        %1407 = vmatpush.bf16.msra.mxu0 %v1260
        %1408 = vmatpush.bf16.msra.mxu0 %v1257
        %1409 = vmatpush.bf16.msra.mxu0 %v1254
        %1410 = vmatpush.bf16.msra.mxu0 %v1251
        %1411 = vmatpush.bf16.msra.mxu0 %v1248
        %1412 = vmatmul.bf16.gmra.mxu0 %v1283
        %v1413 = vpop.f32.mrf.mxu0
        %v1414 = vadd.f32 0.0, %v1413
        %v1415 = vpop.f32.mrf.mxu0
        %v1416 = vadd.f32 0.0, %v1415
        %1417 = vmatmul.bf16.gmra.mxu0 %v1286
        %v1418 = vpop.f32.mrf.mxu0
        %v1419 = vadd.f32 0.0, %v1418
        %v1420 = vpop.f32.mrf.mxu0
        %v1421 = vadd.f32 0.0, %v1420
        %1422 = vmatmul.bf16.gmra.mxu0 %v1289
        %v1423 = vpop.f32.mrf.mxu0
        %v1424 = vadd.f32 0.0, %v1423
        %v1425 = vpop.f32.mrf.mxu0
        %v1426 = vadd.f32 0.0, %v1425
        %1427 = vmatmul.bf16.gmra.mxu0 %v1292
        %v1428 = vpop.f32.mrf.mxu0
        %v1429 = vadd.f32 0.0, %v1428
        %v1430 = vpop.f32.mrf.mxu0
        %v1431 = vadd.f32 0.0, %v1430
        %1432 = vmatmul.bf16.gmra.mxu0 %v1295
        %v1433 = vpop.f32.mrf.mxu0
        %v1434 = vadd.f32 0.0, %v1433
        %v1435 = vpop.f32.mrf.mxu0
        %v1436 = vadd.f32 0.0, %v1435
        %1437 = vmatmul.bf16.gmra.mxu0 %v1298
        %v1438 = vpop.f32.mrf.mxu0
        %v1439 = vadd.f32 0.0, %v1438
        %v1440 = vpop.f32.mrf.mxu0
        %v1441 = vadd.f32 0.0, %v1440
        %1442 = vmatmul.bf16.gmra.mxu0 %v1301
        %v1443 = vpop.f32.mrf.mxu0
        %v1444 = vadd.f32 0.0, %v1443
        %v1445 = vpop.f32.mrf.mxu0
        %v1446 = vadd.f32 0.0, %v1445
        %1447 = vmatmul.bf16.gmra.mxu0 %v1304
        %v1448 = vpop.f32.mrf.mxu0
        %v1449 = vadd.f32 0.0, %v1448
        %v1450 = vpop.f32.mrf.mxu0
        %v1451 = vadd.f32 0.0, %v1450
        %1452 = vdwg.mxu0
        %v1453 = vadd.f32 %v999, %v1316
        %v1454 = vadd.f32 %v1048, %v1365
        %v1455 = vadd.f32 %v1097, %v1414
        %v1456 = vadd.f32 %v1001, %v1318
        %v1457 = vadd.f32 %v1050, %v1367
        %v1458 = vadd.f32 %v1099, %v1416
        %v1459 = vadd.f32 %v1004, %v1321
        %v1460 = vadd.f32 %v1053, %v1370
        %v1461 = vadd.f32 %v1102, %v1419
        %v1462 = vadd.f32 %v1006, %v1323
        %v1463 = vadd.f32 %v1055, %v1372
        %v1464 = vadd.f32 %v1104, %v1421
        %v1465 = vadd.f32 %v1009, %v1326
        %v1466 = vadd.f32 %v1058, %v1375
        %v1467 = vadd.f32 %v1107, %v1424
        %v1468 = vadd.f32 %v1011, %v1328
        %v1469 = vadd.f32 %v1060, %v1377
        %v1470 = vadd.f32 %v1109, %v1426
        %v1471 = vadd.f32 %v1014, %v1331
        %v1472 = vadd.f32 %v1063, %v1380
        %v1473 = vadd.f32 %v1112, %v1429
        %v1474 = vadd.f32 %v1016, %v1333
        %v1475 = vadd.f32 %v1065, %v1382
        %v1476 = vadd.f32 %v1114, %v1431
        %v1477 = vadd.f32 %v1019, %v1336
        %v1478 = vadd.f32 %v1068, %v1385
        %v1479 = vadd.f32 %v1117, %v1434
        %v1480 = vadd.f32 %v1021, %v1338
        %v1481 = vadd.f32 %v1070, %v1387
        %v1482 = vadd.f32 %v1119, %v1436
        %v1483 = vadd.f32 %v1024, %v1341
        %v1484 = vadd.f32 %v1073, %v1390
        %v1485 = vadd.f32 %v1122, %v1439
        %v1486 = vadd.f32 %v1026, %v1343
        %v1487 = vadd.f32 %v1075, %v1392
        %v1488 = vadd.f32 %v1124, %v1441
        %v1489 = vadd.f32 %v1029, %v1346
        %v1490 = vadd.f32 %v1078, %v1395
        %v1491 = vadd.f32 %v1127, %v1444
        %v1492 = vadd.f32 %v1031, %v1348
        %v1493 = vadd.f32 %v1080, %v1397
        %v1494 = vadd.f32 %v1129, %v1446
        %v1495 = vadd.f32 %v1034, %v1351
        %v1496 = vadd.f32 %v1083, %v1400
        %v1497 = vadd.f32 %v1132, %v1449
        %v1498 = vadd.f32 %v1036, %v1353
        %v1499 = vadd.f32 %v1085, %v1402
        %v1500 = vadd.f32 %v1134, %v1451
        %s1501 = scalar_lea.vmem %s470, 152 [#allocation5]
        %v1502 = vld [vmem:[%s1501] sm:$0xff]
        %v1503 = vld [vmem:[%s1501 + $0x8] sm:$0xff]
        %v1504 = vld [vmem:[%s1501 + $0x10] sm:$0xff]
        %v1505 = vld [vmem:[%s1501 + $0x18] sm:$0xff]
        %v1506 = vld [vmem:[%s1501 + $0x20] sm:$0xff]
        %v1507 = vld [vmem:[%s1501 + $0x28] sm:$0xff]
        %v1508 = vld [vmem:[%s1501 + $0x30] sm:$0xff]
        %v1509 = vld [vmem:[%s1501 + $0x38] sm:$0xff]
        %v1510 = vld [vmem:[%s1501 + $0x40] sm:$0xff]
        %v1511 = vld [vmem:[%s1501 + $0x48] sm:$0xff]
        %v1512 = vld [vmem:[%s1501 + $0x50] sm:$0xff]
        %v1513 = vld [vmem:[%s1501 + $0x58] sm:$0xff]
        %v1514 = vld [vmem:[%s1501 + $0x60] sm:$0xff]
        %v1515 = vld [vmem:[%s1501 + $0x68] sm:$0xff]
        %v1516 = vld [vmem:[%s1501 + $0x70] sm:$0xff]
        %v1517 = vld [vmem:[%s1501 + $0x78] sm:$0xff]
        %v1518 = vpack.c.bf16 %v1503, %v1502
        %v1519 = vpack.c.bf16 %v1505, %v1504
        %v1520 = vpack.c.bf16 %v1507, %v1506
        %v1521 = vpack.c.bf16 %v1509, %v1508
        %v1522 = vpack.c.bf16 %v1511, %v1510
        %v1523 = vpack.c.bf16 %v1513, %v1512
        %v1524 = vpack.c.bf16 %v1515, %v1514
        %v1525 = vpack.c.bf16 %v1517, %v1516
        %s1526 = scalar_lea.vmem %s1, 432
        %v1527 = vld [vmem:[%s1526] sm:$0xff]
        %v1528 = vld [vmem:[%s1526 + $0x8] sm:$0xf]
        %v1529 = vld [vmem:[%s1526 + $0xc] sm:$0xff]
        %v1530 = vld [vmem:[%s1526 + $0x14] sm:$0xf]
        %v1531 = vld [vmem:[%s1526 + $0x18] sm:$0xff]
        %v1532 = vld [vmem:[%s1526 + $0x20] sm:$0xf]
        %v1533 = vld [vmem:[%s1526 + $0x24] sm:$0xff]
        %v1534 = vld [vmem:[%s1526 + $0x2c] sm:$0xf]
        %v1535 = vld [vmem:[%s1526 + $0x30] sm:$0xff]
        %v1536 = vld [vmem:[%s1526 + $0x38] sm:$0xf]
        %v1537 = vld [vmem:[%s1526 + $0x3c] sm:$0xff]
        %v1538 = vld [vmem:[%s1526 + $0x44] sm:$0xf]
        %v1539 = vld [vmem:[%s1526 + $0x48] sm:$0xff]
        %v1540 = vld [vmem:[%s1526 + $0x50] sm:$0xf]
        %v1541 = vld [vmem:[%s1526 + $0x54] sm:$0xff]
        %v1542 = vld [vmem:[%s1526 + $0x5c] sm:$0xf]
        %v1543 = vld [vmem:[%s1526 + $0x60] sm:$0xff]
        %v1544 = vld [vmem:[%s1526 + $0x68] sm:$0xf]
        %v1545 = vld [vmem:[%s1526 + $0x6c] sm:$0xff]
        %v1546 = vld [vmem:[%s1526 + $0x74] sm:$0xf]
        %v1547 = vld [vmem:[%s1526 + $0x78] sm:$0xff]
        %v1548 = vld [vmem:[%s1526 + $0x80] sm:$0xf]
        %v1549 = vld [vmem:[%s1526 + $0x84] sm:$0xff]
        %v1550 = vld [vmem:[%s1526 + $0x8c] sm:$0xf]
        %v1575 = vunpack.c.l.b16 %v1527
        %v1576 = vunpack.c.h.b16 %v1527
        %v1577 = vunpack.c.l.b16 %v1528
        %v1578 = vunpack.c.l.b16 %v1529
        %v1579 = vunpack.c.h.b16 %v1529
        %v1580 = vunpack.c.l.b16 %v1530
        %v1581 = vunpack.c.l.b16 %v1531
        %v1582 = vunpack.c.h.b16 %v1531
        %v1583 = vunpack.c.l.b16 %v1532
        %v1584 = vunpack.c.l.b16 %v1533
        %v1585 = vunpack.c.h.b16 %v1533
        %v1586 = vunpack.c.l.b16 %v1534
        %v1587 = vunpack.c.l.b16 %v1535
        %v1588 = vunpack.c.h.b16 %v1535
        %v1589 = vunpack.c.l.b16 %v1536
        %v1590 = vunpack.c.l.b16 %v1537
        %v1591 = vunpack.c.h.b16 %v1537
        %v1592 = vunpack.c.l.b16 %v1538
        %v1593 = vunpack.c.l.b16 %v1539
        %v1594 = vunpack.c.h.b16 %v1539
        %v1595 = vunpack.c.l.b16 %v1540
        %v1596 = vunpack.c.l.b16 %v1541
        %v1597 = vunpack.c.h.b16 %v1541
        %v1598 = vunpack.c.l.b16 %v1542
        %v1599 = vunpack.c.l.b16 %v1543
        %v1600 = vunpack.c.h.b16 %v1543
        %v1601 = vunpack.c.l.b16 %v1544
        %v1602 = vunpack.c.l.b16 %v1545
        %v1603 = vunpack.c.h.b16 %v1545
        %v1604 = vunpack.c.l.b16 %v1546
        %v1605 = vunpack.c.l.b16 %v1547
        %v1606 = vunpack.c.h.b16 %v1547
        %v1607 = vunpack.c.l.b16 %v1548
        %v1608 = vunpack.c.l.b16 %v1549
        %v1609 = vunpack.c.h.b16 %v1549
        %v1610 = vunpack.c.l.b16 %v1550
        %v1611 = vpack.c.b16 %v1578, %v1575
        %v1612 = vpack.c.b16 %v1579, %v1576
        %v1613 = vpack.c.b16 %v1580, %v1577
        %v1614 = vpack.c.b16 %v1584, %v1581
        %v1615 = vpack.c.b16 %v1585, %v1582
        %v1616 = vpack.c.b16 %v1586, %v1583
        %v1617 = vpack.c.b16 %v1590, %v1587
        %v1618 = vpack.c.b16 %v1591, %v1588
        %v1619 = vpack.c.b16 %v1592, %v1589
        %v1620 = vpack.c.b16 %v1596, %v1593
        %v1621 = vpack.c.b16 %v1597, %v1594
        %v1622 = vpack.c.b16 %v1598, %v1595
        %v1623 = vpack.c.b16 %v1602, %v1599
        %v1624 = vpack.c.b16 %v1603, %v1600
        %v1625 = vpack.c.b16 %v1604, %v1601
        %v1626 = vpack.c.b16 %v1608, %v1605
        %v1627 = vpack.c.b16 %v1609, %v1606
        %v1628 = vpack.c.b16 %v1610, %v1607
        %v1648 = vsel %vm697, %v1518, 0
        %v1651 = vsel %vm697, %v1519, 0
        %v1654 = vsel %vm697, %v1520, 0
        %v1657 = vsel %vm697, %v1521, 0
        %v1660 = vsel %vm697, %v1522, 0
        %v1663 = vsel %vm697, %v1523, 0
        %v1666 = vsel %vm697, %v1524, 0
        %v1669 = vsel %vm697, %v1525, 0
        %1671 = vmatpush.bf16.msra.mxu0 0
        %1672 = vmatpush.bf16.msra.mxu0 0
        %1673 = vmatpush.bf16.msra.mxu0 %v1626
        %1674 = vmatpush.bf16.msra.mxu0 %v1623
        %1675 = vmatpush.bf16.msra.mxu0 %v1620
        %1676 = vmatpush.bf16.msra.mxu0 %v1617
        %1677 = vmatpush.bf16.msra.mxu0 %v1614
        %1678 = vmatpush.bf16.msra.mxu0 %v1611
        %1679 = vmatmul.bf16.gmra.mxu0 %v1648
        %v1680 = vpop.f32.mrf.mxu0
        %v1681 = vadd.f32 0.0, %v1680
        %v1682 = vpop.f32.mrf.mxu0
        %v1683 = vadd.f32 0.0, %v1682
        %1684 = vmatmul.bf16.gmra.mxu0 %v1651
        %v1685 = vpop.f32.mrf.mxu0
        %v1686 = vadd.f32 0.0, %v1685
        %v1687 = vpop.f32.mrf.mxu0
        %v1688 = vadd.f32 0.0, %v1687
        %1689 = vmatmul.bf16.gmra.mxu0 %v1654
        %v1690 = vpop.f32.mrf.mxu0
        %v1691 = vadd.f32 0.0, %v1690
        %v1692 = vpop.f32.mrf.mxu0
        %v1693 = vadd.f32 0.0, %v1692
        %1694 = vmatmul.bf16.gmra.mxu0 %v1657
        %v1695 = vpop.f32.mrf.mxu0
        %v1696 = vadd.f32 0.0, %v1695
        %v1697 = vpop.f32.mrf.mxu0
        %v1698 = vadd.f32 0.0, %v1697
        %1699 = vmatmul.bf16.gmra.mxu0 %v1660
        %v1700 = vpop.f32.mrf.mxu0
        %v1701 = vadd.f32 0.0, %v1700
        %v1702 = vpop.f32.mrf.mxu0
        %v1703 = vadd.f32 0.0, %v1702
        %1704 = vmatmul.bf16.gmra.mxu0 %v1663
        %v1705 = vpop.f32.mrf.mxu0
        %v1706 = vadd.f32 0.0, %v1705
        %v1707 = vpop.f32.mrf.mxu0
        %v1708 = vadd.f32 0.0, %v1707
        %1709 = vmatmul.bf16.gmra.mxu0 %v1666
        %v1710 = vpop.f32.mrf.mxu0
        %v1711 = vadd.f32 0.0, %v1710
        %v1712 = vpop.f32.mrf.mxu0
        %v1713 = vadd.f32 0.0, %v1712
        %1714 = vmatmul.bf16.gmra.mxu0 %v1669
        %v1715 = vpop.f32.mrf.mxu0
        %v1716 = vadd.f32 0.0, %v1715
        %v1717 = vpop.f32.mrf.mxu0
        %v1718 = vadd.f32 0.0, %v1717
        %1719 = vdwg.mxu0
        %1720 = vmatpush.bf16.msra.mxu0 0
        %1721 = vmatpush.bf16.msra.mxu0 0
        %1722 = vmatpush.bf16.msra.mxu0 %v1627
        %1723 = vmatpush.bf16.msra.mxu0 %v1624
        %1724 = vmatpush.bf16.msra.mxu0 %v1621
        %1725 = vmatpush.bf16.msra.mxu0 %v1618
        %1726 = vmatpush.bf16.msra.mxu0 %v1615
        %1727 = vmatpush.bf16.msra.mxu0 %v1612
        %1728 = vmatmul.bf16.gmra.mxu0 %v1648
        %v1729 = vpop.f32.mrf.mxu0
        %v1730 = vadd.f32 0.0, %v1729
        %v1731 = vpop.f32.mrf.mxu0
        %v1732 = vadd.f32 0.0, %v1731
        %1733 = vmatmul.bf16.gmra.mxu0 %v1651
        %v1734 = vpop.f32.mrf.mxu0
        %v1735 = vadd.f32 0.0, %v1734
        %v1736 = vpop.f32.mrf.mxu0
        %v1737 = vadd.f32 0.0, %v1736
        %1738 = vmatmul.bf16.gmra.mxu0 %v1654
        %v1739 = vpop.f32.mrf.mxu0
        %v1740 = vadd.f32 0.0, %v1739
        %v1741 = vpop.f32.mrf.mxu0
        %v1742 = vadd.f32 0.0, %v1741
        %1743 = vmatmul.bf16.gmra.mxu0 %v1657
        %v1744 = vpop.f32.mrf.mxu0
        %v1745 = vadd.f32 0.0, %v1744
        %v1746 = vpop.f32.mrf.mxu0
        %v1747 = vadd.f32 0.0, %v1746
        %1748 = vmatmul.bf16.gmra.mxu0 %v1660
        %v1749 = vpop.f32.mrf.mxu0
        %v1750 = vadd.f32 0.0, %v1749
        %v1751 = vpop.f32.mrf.mxu0
        %v1752 = vadd.f32 0.0, %v1751
        %1753 = vmatmul.bf16.gmra.mxu0 %v1663
        %v1754 = vpop.f32.mrf.mxu0
        %v1755 = vadd.f32 0.0, %v1754
        %v1756 = vpop.f32.mrf.mxu0
        %v1757 = vadd.f32 0.0, %v1756
        %1758 = vmatmul.bf16.gmra.mxu0 %v1666
        %v1759 = vpop.f32.mrf.mxu0
        %v1760 = vadd.f32 0.0, %v1759
        %v1761 = vpop.f32.mrf.mxu0
        %v1762 = vadd.f32 0.0, %v1761
        %1763 = vmatmul.bf16.gmra.mxu0 %v1669
        %v1764 = vpop.f32.mrf.mxu0
        %v1765 = vadd.f32 0.0, %v1764
        %v1766 = vpop.f32.mrf.mxu0
        %v1767 = vadd.f32 0.0, %v1766
        %1768 = vdwg.mxu0
        %1769 = vmatpush.bf16.msra.mxu0 0
        %1770 = vmatpush.bf16.msra.mxu0 0
        %1771 = vmatpush.bf16.msra.mxu0 %v1628
        %1772 = vmatpush.bf16.msra.mxu0 %v1625
        %1773 = vmatpush.bf16.msra.mxu0 %v1622
        %1774 = vmatpush.bf16.msra.mxu0 %v1619
        %1775 = vmatpush.bf16.msra.mxu0 %v1616
        %1776 = vmatpush.bf16.msra.mxu0 %v1613
        %1777 = vmatmul.bf16.gmra.mxu0 %v1648
        %v1778 = vpop.f32.mrf.mxu0
        %v1779 = vadd.f32 0.0, %v1778
        %v1780 = vpop.f32.mrf.mxu0
        %v1781 = vadd.f32 0.0, %v1780
        %1782 = vmatmul.bf16.gmra.mxu0 %v1651
        %v1783 = vpop.f32.mrf.mxu0
        %v1784 = vadd.f32 0.0, %v1783
        %v1785 = vpop.f32.mrf.mxu0
        %v1786 = vadd.f32 0.0, %v1785
        %1787 = vmatmul.bf16.gmra.mxu0 %v1654
        %v1788 = vpop.f32.mrf.mxu0
        %v1789 = vadd.f32 0.0, %v1788
        %v1790 = vpop.f32.mrf.mxu0
        %v1791 = vadd.f32 0.0, %v1790
        %1792 = vmatmul.bf16.gmra.mxu0 %v1657
        %v1793 = vpop.f32.mrf.mxu0
        %v1794 = vadd.f32 0.0, %v1793
        %v1795 = vpop.f32.mrf.mxu0
        %v1796 = vadd.f32 0.0, %v1795
        %1797 = vmatmul.bf16.gmra.mxu0 %v1660
        %v1798 = vpop.f32.mrf.mxu0
        %v1799 = vadd.f32 0.0, %v1798
        %v1800 = vpop.f32.mrf.mxu0
        %v1801 = vadd.f32 0.0, %v1800
        %1802 = vmatmul.bf16.gmra.mxu0 %v1663
        %v1803 = vpop.f32.mrf.mxu0
        %v1804 = vadd.f32 0.0, %v1803
        %v1805 = vpop.f32.mrf.mxu0
        %v1806 = vadd.f32 0.0, %v1805
        %1807 = vmatmul.bf16.gmra.mxu0 %v1666
        %v1808 = vpop.f32.mrf.mxu0
        %v1809 = vadd.f32 0.0, %v1808
        %v1810 = vpop.f32.mrf.mxu0
        %v1811 = vadd.f32 0.0, %v1810
        %1812 = vmatmul.bf16.gmra.mxu0 %v1669
        %v1813 = vpop.f32.mrf.mxu0
        %v1814 = vadd.f32 0.0, %v1813
        %v1815 = vpop.f32.mrf.mxu0
        %v1816 = vadd.f32 0.0, %v1815
        %1817 = vdwg.mxu0
        %v1818 = vadd.f32 %v1453, %v1681
        %v1819 = vadd.f32 %v1454, %v1730
        %v1820 = vadd.f32 %v1455, %v1779
        %v1821 = vadd.f32 %v1456, %v1683
        %v1822 = vadd.f32 %v1457, %v1732
        %v1823 = vadd.f32 %v1458, %v1781
        %v1824 = vadd.f32 %v1459, %v1686
        %v1825 = vadd.f32 %v1460, %v1735
        %v1826 = vadd.f32 %v1461, %v1784
        %v1827 = vadd.f32 %v1462, %v1688
        %v1828 = vadd.f32 %v1463, %v1737
        %v1829 = vadd.f32 %v1464, %v1786
        %v1830 = vadd.f32 %v1465, %v1691
        %v1831 = vadd.f32 %v1466, %v1740
        %v1832 = vadd.f32 %v1467, %v1789
        %v1833 = vadd.f32 %v1468, %v1693
        %v1834 = vadd.f32 %v1469, %v1742
        %v1835 = vadd.f32 %v1470, %v1791
        %v1836 = vadd.f32 %v1471, %v1696
        %v1837 = vadd.f32 %v1472, %v1745
        %v1838 = vadd.f32 %v1473, %v1794
        %v1839 = vadd.f32 %v1474, %v1698
        %v1840 = vadd.f32 %v1475, %v1747
        %v1841 = vadd.f32 %v1476, %v1796
        %v1842 = vadd.f32 %v1477, %v1701
        %v1843 = vadd.f32 %v1478, %v1750
        %v1844 = vadd.f32 %v1479, %v1799
        %v1845 = vadd.f32 %v1480, %v1703
        %v1846 = vadd.f32 %v1481, %v1752
        %v1847 = vadd.f32 %v1482, %v1801
        %v1848 = vadd.f32 %v1483, %v1706
        %v1849 = vadd.f32 %v1484, %v1755
        %v1850 = vadd.f32 %v1485, %v1804
        %v1851 = vadd.f32 %v1486, %v1708
        %v1852 = vadd.f32 %v1487, %v1757
        %v1853 = vadd.f32 %v1488, %v1806
        %v1854 = vadd.f32 %v1489, %v1711
        %v1855 = vadd.f32 %v1490, %v1760
        %v1856 = vadd.f32 %v1491, %v1809
        %v1857 = vadd.f32 %v1492, %v1713
        %v1858 = vadd.f32 %v1493, %v1762
        %v1859 = vadd.f32 %v1494, %v1811
        %v1860 = vadd.f32 %v1495, %v1716
        %v1861 = vadd.f32 %v1496, %v1765
        %v1862 = vadd.f32 %v1497, %v1814
        %v1863 = vadd.f32 %v1498, %v1718
        %v1864 = vadd.f32 %v1499, %v1767
        %v1865 = vadd.f32 %v1500, %v1816
        %s1866 = scalar_lea.vmem %s470, 16 [#allocation5]
        %v1867 = vld [vmem:[%s1866] sm:$0xff]
        %v1868 = vld [vmem:[%s1866 + $0x8] sm:$0xff]
        %v1869 = vld [vmem:[%s1866 + $0x10] sm:$0xff]
        %v1870 = vld [vmem:[%s1866 + $0x18] sm:$0xff]
        %v1871 = vld [vmem:[%s1866 + $0x20] sm:$0xff]
        %v1872 = vld [vmem:[%s1866 + $0x28] sm:$0xff]
        %v1873 = vld [vmem:[%s1866 + $0x30] sm:$0xff]
        %v1874 = vld [vmem:[%s1866 + $0x38] sm:$0xff]
        %v1875 = vld [vmem:[%s1866 + $0x40] sm:$0xff]
        %v1876 = vld [vmem:[%s1866 + $0x48] sm:$0xff]
        %v1877 = vld [vmem:[%s1866 + $0x50] sm:$0xff]
        %v1878 = vld [vmem:[%s1866 + $0x58] sm:$0xff]
        %v1879 = vld [vmem:[%s1866 + $0x60] sm:$0xff]
        %v1880 = vld [vmem:[%s1866 + $0x68] sm:$0xff]
        %v1881 = vld [vmem:[%s1866 + $0x70] sm:$0xff]
        %v1882 = vld [vmem:[%s1866 + $0x78] sm:$0xff]
        %v1883 = vpack.c.bf16 %v1868, %v1867
        %v1884 = vpack.c.bf16 %v1870, %v1869
        %v1885 = vpack.c.bf16 %v1872, %v1871
        %v1886 = vpack.c.bf16 %v1874, %v1873
        %v1887 = vpack.c.bf16 %v1876, %v1875
        %v1888 = vpack.c.bf16 %v1878, %v1877
        %v1889 = vpack.c.bf16 %v1880, %v1879
        %v1890 = vpack.c.bf16 %v1882, %v1881
        %s1891 = scalar_lea.vmem %s1, 576
        %v1892 = vld [vmem:[%s1891] sm:$0xff]
        %v1893 = vld [vmem:[%s1891 + $0x8] sm:$0xf]
        %v1894 = vld [vmem:[%s1891 + $0xc] sm:$0xff]
        %v1895 = vld [vmem:[%s1891 + $0x14] sm:$0xf]
        %v1896 = vld [vmem:[%s1891 + $0x18] sm:$0xff]
        %v1897 = vld [vmem:[%s1891 + $0x20] sm:$0xf]
        %v1898 = vld [vmem:[%s1891 + $0x24] sm:$0xff]
        %v1899 = vld [vmem:[%s1891 + $0x2c] sm:$0xf]
        %v1900 = vld [vmem:[%s1891 + $0x30] sm:$0xff]
        %v1901 = vld [vmem:[%s1891 + $0x38] sm:$0xf]
        %v1902 = vld [vmem:[%s1891 + $0x3c] sm:$0xff]
        %v1903 = vld [vmem:[%s1891 + $0x44] sm:$0xf]
        %v1904 = vld [vmem:[%s1891 + $0x48] sm:$0xff]
        %v1905 = vld [vmem:[%s1891 + $0x50] sm:$0xf]
        %v1906 = vld [vmem:[%s1891 + $0x54] sm:$0xff]
        %v1907 = vld [vmem:[%s1891 + $0x5c] sm:$0xf]
        %v1908 = vld [vmem:[%s1891 + $0x60] sm:$0xff]
        %v1909 = vld [vmem:[%s1891 + $0x68] sm:$0xf]
        %v1910 = vld [vmem:[%s1891 + $0x6c] sm:$0xff]
        %v1911 = vld [vmem:[%s1891 + $0x74] sm:$0xf]
        %v1912 = vld [vmem:[%s1891 + $0x78] sm:$0xff]
        %v1913 = vld [vmem:[%s1891 + $0x80] sm:$0xf]
        %v1914 = vld [vmem:[%s1891 + $0x84] sm:$0xff]
        %v1915 = vld [vmem:[%s1891 + $0x8c] sm:$0xf]
        %v1940 = vunpack.c.l.b16 %v1892
        %v1941 = vunpack.c.h.b16 %v1892
        %v1942 = vunpack.c.l.b16 %v1893
        %v1943 = vunpack.c.l.b16 %v1894
        %v1944 = vunpack.c.h.b16 %v1894
        %v1945 = vunpack.c.l.b16 %v1895
        %v1946 = vunpack.c.l.b16 %v1896
        %v1947 = vunpack.c.h.b16 %v1896
        %v1948 = vunpack.c.l.b16 %v1897
        %v1949 = vunpack.c.l.b16 %v1898
        %v1950 = vunpack.c.h.b16 %v1898
        %v1951 = vunpack.c.l.b16 %v1899
        %v1952 = vunpack.c.l.b16 %v1900
        %v1953 = vunpack.c.h.b16 %v1900
        %v1954 = vunpack.c.l.b16 %v1901
        %v1955 = vunpack.c.l.b16 %v1902
        %v1956 = vunpack.c.h.b16 %v1902
        %v1957 = vunpack.c.l.b16 %v1903
        %v1958 = vunpack.c.l.b16 %v1904
        %v1959 = vunpack.c.h.b16 %v1904
        %v1960 = vunpack.c.l.b16 %v1905
        %v1961 = vunpack.c.l.b16 %v1906
        %v1962 = vunpack.c.h.b16 %v1906
        %v1963 = vunpack.c.l.b16 %v1907
        %v1964 = vunpack.c.l.b16 %v1908
        %v1965 = vunpack.c.h.b16 %v1908
        %v1966 = vunpack.c.l.b16 %v1909
        %v1967 = vunpack.c.l.b16 %v1910
        %v1968 = vunpack.c.h.b16 %v1910
        %v1969 = vunpack.c.l.b16 %v1911
        %v1970 = vunpack.c.l.b16 %v1912
        %v1971 = vunpack.c.h.b16 %v1912
        %v1972 = vunpack.c.l.b16 %v1913
        %v1973 = vunpack.c.l.b16 %v1914
        %v1974 = vunpack.c.h.b16 %v1914
        %v1975 = vunpack.c.l.b16 %v1915
        %v1976 = vpack.c.b16 %v1943, %v1940
        %v1977 = vpack.c.b16 %v1944, %v1941
        %v1978 = vpack.c.b16 %v1945, %v1942
        %v1979 = vpack.c.b16 %v1949, %v1946
        %v1980 = vpack.c.b16 %v1950, %v1947
        %v1981 = vpack.c.b16 %v1951, %v1948
        %v1982 = vpack.c.b16 %v1955, %v1952
        %v1983 = vpack.c.b16 %v1956, %v1953
        %v1984 = vpack.c.b16 %v1957, %v1954
        %v1985 = vpack.c.b16 %v1961, %v1958
        %v1986 = vpack.c.b16 %v1962, %v1959
        %v1987 = vpack.c.b16 %v1963, %v1960
        %v1988 = vpack.c.b16 %v1967, %v1964
        %v1989 = vpack.c.b16 %v1968, %v1965
        %v1990 = vpack.c.b16 %v1969, %v1966
        %v1991 = vpack.c.b16 %v1973, %v1970
        %v1992 = vpack.c.b16 %v1974, %v1971
        %v1993 = vpack.c.b16 %v1975, %v1972
        %v2013 = vsel %vm697, %v1883, 0
        %v2016 = vsel %vm697, %v1884, 0
        %v2019 = vsel %vm697, %v1885, 0
        %v2022 = vsel %vm697, %v1886, 0
        %v2025 = vsel %vm697, %v1887, 0
        %v2028 = vsel %vm697, %v1888, 0
        %v2031 = vsel %vm697, %v1889, 0
        %v2034 = vsel %vm697, %v1890, 0
        %2036 = vmatpush.bf16.msra.mxu0 0
        %2037 = vmatpush.bf16.msra.mxu0 0
        %2038 = vmatpush.bf16.msra.mxu0 %v1991
        %2039 = vmatpush.bf16.msra.mxu0 %v1988
        %2040 = vmatpush.bf16.msra.mxu0 %v1985
        %2041 = vmatpush.bf16.msra.mxu0 %v1982
        %2042 = vmatpush.bf16.msra.mxu0 %v1979
        %2043 = vmatpush.bf16.msra.mxu0 %v1976
        %2044 = vmatmul.bf16.gmra.mxu0 %v2013
        %v2045 = vpop.f32.mrf.mxu0
        %v2046 = vadd.f32 0.0, %v2045
        %v2047 = vpop.f32.mrf.mxu0
        %v2048 = vadd.f32 0.0, %v2047
        %2049 = vmatmul.bf16.gmra.mxu0 %v2016
        %v2050 = vpop.f32.mrf.mxu0
        %v2051 = vadd.f32 0.0, %v2050
        %v2052 = vpop.f32.mrf.mxu0
        %v2053 = vadd.f32 0.0, %v2052
        %2054 = vmatmul.bf16.gmra.mxu0 %v2019
        %v2055 = vpop.f32.mrf.mxu0
        %v2056 = vadd.f32 0.0, %v2055
        %v2057 = vpop.f32.mrf.mxu0
        %v2058 = vadd.f32 0.0, %v2057
        %2059 = vmatmul.bf16.gmra.mxu0 %v2022
        %v2060 = vpop.f32.mrf.mxu0
        %v2061 = vadd.f32 0.0, %v2060
        %v2062 = vpop.f32.mrf.mxu0
        %v2063 = vadd.f32 0.0, %v2062
        %2064 = vmatmul.bf16.gmra.mxu0 %v2025
        %v2065 = vpop.f32.mrf.mxu0
        %v2066 = vadd.f32 0.0, %v2065
        %v2067 = vpop.f32.mrf.mxu0
        %v2068 = vadd.f32 0.0, %v2067
        %2069 = vmatmul.bf16.gmra.mxu0 %v2028
        %v2070 = vpop.f32.mrf.mxu0
        %v2071 = vadd.f32 0.0, %v2070
        %v2072 = vpop.f32.mrf.mxu0
        %v2073 = vadd.f32 0.0, %v2072
        %2074 = vmatmul.bf16.gmra.mxu0 %v2031
        %v2075 = vpop.f32.mrf.mxu0
        %v2076 = vadd.f32 0.0, %v2075
        %v2077 = vpop.f32.mrf.mxu0
        %v2078 = vadd.f32 0.0, %v2077
        %2079 = vmatmul.bf16.gmra.mxu0 %v2034
        %v2080 = vpop.f32.mrf.mxu0
        %v2081 = vadd.f32 0.0, %v2080
        %v2082 = vpop.f32.mrf.mxu0
        %v2083 = vadd.f32 0.0, %v2082
        %2084 = vdwg.mxu0
        %2085 = vmatpush.bf16.msra.mxu0 0
        %2086 = vmatpush.bf16.msra.mxu0 0
        %2087 = vmatpush.bf16.msra.mxu0 %v1992
        %2088 = vmatpush.bf16.msra.mxu0 %v1989
        %2089 = vmatpush.bf16.msra.mxu0 %v1986
        %2090 = vmatpush.bf16.msra.mxu0 %v1983
        %2091 = vmatpush.bf16.msra.mxu0 %v1980
        %2092 = vmatpush.bf16.msra.mxu0 %v1977
        %2093 = vmatmul.bf16.gmra.mxu0 %v2013
        %v2094 = vpop.f32.mrf.mxu0
        %v2095 = vadd.f32 0.0, %v2094
        %v2096 = vpop.f32.mrf.mxu0
        %v2097 = vadd.f32 0.0, %v2096
        %2098 = vmatmul.bf16.gmra.mxu0 %v2016
        %v2099 = vpop.f32.mrf.mxu0
        %v2100 = vadd.f32 0.0, %v2099
        %v2101 = vpop.f32.mrf.mxu0
        %v2102 = vadd.f32 0.0, %v2101
        %2103 = vmatmul.bf16.gmra.mxu0 %v2019
        %v2104 = vpop.f32.mrf.mxu0
        %v2105 = vadd.f32 0.0, %v2104
        %v2106 = vpop.f32.mrf.mxu0
        %v2107 = vadd.f32 0.0, %v2106
        %2108 = vmatmul.bf16.gmra.mxu0 %v2022
        %v2109 = vpop.f32.mrf.mxu0
        %v2110 = vadd.f32 0.0, %v2109
        %v2111 = vpop.f32.mrf.mxu0
        %v2112 = vadd.f32 0.0, %v2111
        %2113 = vmatmul.bf16.gmra.mxu0 %v2025
        %v2114 = vpop.f32.mrf.mxu0
        %v2115 = vadd.f32 0.0, %v2114
        %v2116 = vpop.f32.mrf.mxu0
        %v2117 = vadd.f32 0.0, %v2116
        %2118 = vmatmul.bf16.gmra.mxu0 %v2028
        %v2119 = vpop.f32.mrf.mxu0
        %v2120 = vadd.f32 0.0, %v2119
        %v2121 = vpop.f32.mrf.mxu0
        %v2122 = vadd.f32 0.0, %v2121
        %2123 = vmatmul.bf16.gmra.mxu0 %v2031
        %v2124 = vpop.f32.mrf.mxu0
        %v2125 = vadd.f32 0.0, %v2124
        %v2126 = vpop.f32.mrf.mxu0
        %v2127 = vadd.f32 0.0, %v2126
        %2128 = vmatmul.bf16.gmra.mxu0 %v2034
        %v2129 = vpop.f32.mrf.mxu0
        %v2130 = vadd.f32 0.0, %v2129
        %v2131 = vpop.f32.mrf.mxu0
        %v2132 = vadd.f32 0.0, %v2131
        %2133 = vdwg.mxu0
        %2134 = vmatpush.bf16.msra.mxu0 0
        %2135 = vmatpush.bf16.msra.mxu0 0
        %2136 = vmatpush.bf16.msra.mxu0 %v1993
        %2137 = vmatpush.bf16.msra.mxu0 %v1990
        %2138 = vmatpush.bf16.msra.mxu0 %v1987
        %2139 = vmatpush.bf16.msra.mxu0 %v1984
        %2140 = vmatpush.bf16.msra.mxu0 %v1981
        %2141 = vmatpush.bf16.msra.mxu0 %v1978
        %2142 = vmatmul.bf16.gmra.mxu0 %v2013
        %v2143 = vpop.f32.mrf.mxu0
        %v2144 = vadd.f32 0.0, %v2143
        %v2145 = vpop.f32.mrf.mxu0
        %v2146 = vadd.f32 0.0, %v2145
        %2147 = vmatmul.bf16.gmra.mxu0 %v2016
        %v2148 = vpop.f32.mrf.mxu0
        %v2149 = vadd.f32 0.0, %v2148
        %v2150 = vpop.f32.mrf.mxu0
        %v2151 = vadd.f32 0.0, %v2150
        %2152 = vmatmul.bf16.gmra.mxu0 %v2019
        %v2153 = vpop.f32.mrf.mxu0
        %v2154 = vadd.f32 0.0, %v2153
        %v2155 = vpop.f32.mrf.mxu0
        %v2156 = vadd.f32 0.0, %v2155
        %2157 = vmatmul.bf16.gmra.mxu0 %v2022
        %v2158 = vpop.f32.mrf.mxu0
        %v2159 = vadd.f32 0.0, %v2158
        %v2160 = vpop.f32.mrf.mxu0
        %v2161 = vadd.f32 0.0, %v2160
        %2162 = vmatmul.bf16.gmra.mxu0 %v2025
        %v2163 = vpop.f32.mrf.mxu0
        %v2164 = vadd.f32 0.0, %v2163
        %v2165 = vpop.f32.mrf.mxu0
        %v2166 = vadd.f32 0.0, %v2165
        %2167 = vmatmul.bf16.gmra.mxu0 %v2028
        %v2168 = vpop.f32.mrf.mxu0
        %v2169 = vadd.f32 0.0, %v2168
        %v2170 = vpop.f32.mrf.mxu0
        %v2171 = vadd.f32 0.0, %v2170
        %2172 = vmatmul.bf16.gmra.mxu0 %v2031
        %v2173 = vpop.f32.mrf.mxu0
        %v2174 = vadd.f32 0.0, %v2173
        %v2175 = vpop.f32.mrf.mxu0
        %v2176 = vadd.f32 0.0, %v2175
        %2177 = vmatmul.bf16.gmra.mxu0 %v2034
        %v2178 = vpop.f32.mrf.mxu0
        %v2179 = vadd.f32 0.0, %v2178
        %v2180 = vpop.f32.mrf.mxu0
        %v2181 = vadd.f32 0.0, %v2180
        %2182 = vdwg.mxu0
        %v2183 = vadd.f32 %v1818, %v2046
        %v2184 = vadd.f32 %v1819, %v2095
        %v2185 = vadd.f32 %v1820, %v2144
        %v2186 = vadd.f32 %v1821, %v2048
        %v2187 = vadd.f32 %v1822, %v2097
        %v2188 = vadd.f32 %v1823, %v2146
        %v2189 = vadd.f32 %v1824, %v2051
        %v2190 = vadd.f32 %v1825, %v2100
        %v2191 = vadd.f32 %v1826, %v2149
        %v2192 = vadd.f32 %v1827, %v2053
        %v2193 = vadd.f32 %v1828, %v2102
        %v2194 = vadd.f32 %v1829, %v2151
        %v2195 = vadd.f32 %v1830, %v2056
        %v2196 = vadd.f32 %v1831, %v2105
        %v2197 = vadd.f32 %v1832, %v2154
        %v2198 = vadd.f32 %v1833, %v2058
        %v2199 = vadd.f32 %v1834, %v2107
        %v2200 = vadd.f32 %v1835, %v2156
        %v2201 = vadd.f32 %v1836, %v2061
        %v2202 = vadd.f32 %v1837, %v2110
        %v2203 = vadd.f32 %v1838, %v2159
        %v2204 = vadd.f32 %v1839, %v2063
        %v2205 = vadd.f32 %v1840, %v2112
        %v2206 = vadd.f32 %v1841, %v2161
        %v2207 = vadd.f32 %v1842, %v2066
        %v2208 = vadd.f32 %v1843, %v2115
        %v2209 = vadd.f32 %v1844, %v2164
        %v2210 = vadd.f32 %v1845, %v2068
        %v2211 = vadd.f32 %v1846, %v2117
        %v2212 = vadd.f32 %v1847, %v2166
        %v2213 = vadd.f32 %v1848, %v2071
        %v2214 = vadd.f32 %v1849, %v2120
        %v2215 = vadd.f32 %v1850, %v2169
        %v2216 = vadd.f32 %v1851, %v2073
        %v2217 = vadd.f32 %v1852, %v2122
        %v2218 = vadd.f32 %v1853, %v2171
        %v2219 = vadd.f32 %v1854, %v2076
        %v2220 = vadd.f32 %v1855, %v2125
        %v2221 = vadd.f32 %v1856, %v2174
        %v2222 = vadd.f32 %v1857, %v2078
        %v2223 = vadd.f32 %v1858, %v2127
        %v2224 = vadd.f32 %v1859, %v2176
        %v2225 = vadd.f32 %v1860, %v2081
        %v2226 = vadd.f32 %v1861, %v2130
        %v2227 = vadd.f32 %v1862, %v2179
        %v2228 = vadd.f32 %v1863, %v2083
        %v2229 = vadd.f32 %v1864, %v2132
        %v2230 = vadd.f32 %v1865, %v2181
        %v2231 = vld [vmem:[%s2] sm:$0x7]
        %v2233 = vperm.slane %v2231, 0
        %v2234 = vperm.slane %v2231, 1
        %v2235 = vperm.slane %v2231, 2
        %v2239 = vadd.f32 %v2183, %v2233
        %v2240 = vadd.f32 %v2184, %v2234
        %v2241 = vadd.f32 %v2185, %v2235
        %v2242 = vadd.f32 %v2186, %v2233
        %v2243 = vadd.f32 %v2187, %v2234
        %v2244 = vadd.f32 %v2188, %v2235
        %v2245 = vadd.f32 %v2189, %v2233
        %v2246 = vadd.f32 %v2190, %v2234
        %v2247 = vadd.f32 %v2191, %v2235
        %v2248 = vadd.f32 %v2192, %v2233
        %v2249 = vadd.f32 %v2193, %v2234
        %v2250 = vadd.f32 %v2194, %v2235
        %v2251 = vadd.f32 %v2195, %v2233
        %v2252 = vadd.f32 %v2196, %v2234
        %v2253 = vadd.f32 %v2197, %v2235
        %v2254 = vadd.f32 %v2198, %v2233
        %v2255 = vadd.f32 %v2199, %v2234
        %v2256 = vadd.f32 %v2200, %v2235
        %v2257 = vadd.f32 %v2201, %v2233
        %v2258 = vadd.f32 %v2202, %v2234
        %v2259 = vadd.f32 %v2203, %v2235
        %v2260 = vadd.f32 %v2204, %v2233
        %v2261 = vadd.f32 %v2205, %v2234
        %v2262 = vadd.f32 %v2206, %v2235
        %v2263 = vadd.f32 %v2207, %v2233
        %v2264 = vadd.f32 %v2208, %v2234
        %v2265 = vadd.f32 %v2209, %v2235
        %v2266 = vadd.f32 %v2210, %v2233
        %v2267 = vadd.f32 %v2211, %v2234
        %v2268 = vadd.f32 %v2212, %v2235
        %v2269 = vadd.f32 %v2213, %v2233
        %v2270 = vadd.f32 %v2214, %v2234
        %v2271 = vadd.f32 %v2215, %v2235
        %v2272 = vadd.f32 %v2216, %v2233
        %v2273 = vadd.f32 %v2217, %v2234
        %v2274 = vadd.f32 %v2218, %v2235
        %v2275 = vadd.f32 %v2219, %v2233
        %v2276 = vadd.f32 %v2220, %v2234
        %v2277 = vadd.f32 %v2221, %v2235
        %v2278 = vadd.f32 %v2222, %v2233
        %v2279 = vadd.f32 %v2223, %v2234
        %v2280 = vadd.f32 %v2224, %v2235
        %v2281 = vadd.f32 %v2225, %v2233
        %v2282 = vadd.f32 %v2226, %v2234
        %v2283 = vadd.f32 %v2227, %v2235
        %v2284 = vadd.f32 %v2228, %v2233
        %v2285 = vadd.f32 %v2229, %v2234
        %v2286 = vadd.f32 %v2230, %v2235
        %v2287 = vmax.f32 %v2239, 0.0
        %v2288 = vmax.f32 %v2240, 0.0
        %v2289 = vmax.f32 %v2241, 0.0
        %v2290 = vmax.f32 %v2242, 0.0
        %v2291 = vmax.f32 %v2243, 0.0
        %v2292 = vmax.f32 %v2244, 0.0
        %v2293 = vmax.f32 %v2245, 0.0
        %v2294 = vmax.f32 %v2246, 0.0
        %v2295 = vmax.f32 %v2247, 0.0
        %v2296 = vmax.f32 %v2248, 0.0
        %v2297 = vmax.f32 %v2249, 0.0
        %v2298 = vmax.f32 %v2250, 0.0
        %v2299 = vmax.f32 %v2251, 0.0
        %v2300 = vmax.f32 %v2252, 0.0
        %v2301 = vmax.f32 %v2253, 0.0
        %v2302 = vmax.f32 %v2254, 0.0
        %v2303 = vmax.f32 %v2255, 0.0
        %v2304 = vmax.f32 %v2256, 0.0
        %v2305 = vmax.f32 %v2257, 0.0
        %v2306 = vmax.f32 %v2258, 0.0
        %v2307 = vmax.f32 %v2259, 0.0
        %v2308 = vmax.f32 %v2260, 0.0
        %v2309 = vmax.f32 %v2261, 0.0
        %v2310 = vmax.f32 %v2262, 0.0
        %v2311 = vmax.f32 %v2263, 0.0
        %v2312 = vmax.f32 %v2264, 0.0
        %v2313 = vmax.f32 %v2265, 0.0
        %v2314 = vmax.f32 %v2266, 0.0
        %v2315 = vmax.f32 %v2267, 0.0
        %v2316 = vmax.f32 %v2268, 0.0
        %v2317 = vmax.f32 %v2269, 0.0
        %v2318 = vmax.f32 %v2270, 0.0
        %v2319 = vmax.f32 %v2271, 0.0
        %v2320 = vmax.f32 %v2272, 0.0
        %v2321 = vmax.f32 %v2273, 0.0
        %v2322 = vmax.f32 %v2274, 0.0
        %v2323 = vmax.f32 %v2275, 0.0
        %v2324 = vmax.f32 %v2276, 0.0
        %v2325 = vmax.f32 %v2277, 0.0
        %v2326 = vmax.f32 %v2278, 0.0
        %v2327 = vmax.f32 %v2279, 0.0
        %v2328 = vmax.f32 %v2280, 0.0
        %v2329 = vmax.f32 %v2281, 0.0
        %v2330 = vmax.f32 %v2282, 0.0
        %v2331 = vmax.f32 %v2283, 0.0
        %v2332 = vmax.f32 %v2284, 0.0
        %v2333 = vmax.f32 %v2285, 0.0
        %v2334 = vmax.f32 %v2286, 0.0
        %s2335 = scalar_lea.vmem [#allocation2], 24
        %2336 = vst [vmem:[%s2335] sm:$0xff] %v2287
        %2337 = vst [vmem:[%s2335 + $0x8] sm:$0xff] %v2288
        %2338 = vst [vmem:[%s2335 + $0x10] sm:$0xff] %v2289
        %2339 = vst [vmem:[%s2335 + $0x18] sm:$0xff] %v2293
        %2340 = vst [vmem:[%s2335 + $0x20] sm:$0xff] %v2294
        %2341 = vst [vmem:[%s2335 + $0x28] sm:$0xff] %v2295
        %2342 = vst [vmem:[%s2335 + $0x30] sm:$0xff] %v2299
        %2343 = vst [vmem:[%s2335 + $0x38] sm:$0xff] %v2300
        %2344 = vst [vmem:[%s2335 + $0x40] sm:$0xff] %v2301
        %2345 = vst [vmem:[%s2335 + $0x48] sm:$0xff] %v2305
        %2346 = vst [vmem:[%s2335 + $0x50] sm:$0xff] %v2306
        %2347 = vst [vmem:[%s2335 + $0x58] sm:$0xff] %v2307
        %2348 = vst [vmem:[%s2335 + $0x60] sm:$0xff] %v2311
        %2349 = vst [vmem:[%s2335 + $0x68] sm:$0xff] %v2312
        %2350 = vst [vmem:[%s2335 + $0x70] sm:$0xff] %v2313
        %2351 = vst [vmem:[%s2335 + $0x78] sm:$0xff] %v2317
        %2352 = vst [vmem:[%s2335 + $0x80] sm:$0xff] %v2318
        %2353 = vst [vmem:[%s2335 + $0x88] sm:$0xff] %v2319
        %2354 = vst [vmem:[%s2335 + $0x90] sm:$0xff] %v2323
        %2355 = vst [vmem:[%s2335 + $0x98] sm:$0xff] %v2324
        %2356 = vst [vmem:[%s2335 + $0xa0] sm:$0xff] %v2325
        %2357 = vst [vmem:[%s2335 + $0xa8] sm:$0xff] %v2329
        %2358 = vst [vmem:[%s2335 + $0xb0] sm:$0xff] %v2330
        %2359 = vst [vmem:[%s2335 + $0xb8] sm:$0xff] %v2331
        %s2360 = scalar_lea.vmem [#allocation2], 264
        %2361 = vst [vmem:[%s2360] sm:$0xff] %v2290
        %2362 = vst [vmem:[%s2360 + $0x8] sm:$0xff] %v2291
        %2363 = vst [vmem:[%s2360 + $0x10] sm:$0xff] %v2292
        %2364 = vst [vmem:[%s2360 + $0x18] sm:$0xff] %v2296
        %2365 = vst [vmem:[%s2360 + $0x20] sm:$0xff] %v2297
        %2366 = vst [vmem:[%s2360 + $0x28] sm:$0xff] %v2298
        %2367 = vst [vmem:[%s2360 + $0x30] sm:$0xff] %v2302
        %2368 = vst [vmem:[%s2360 + $0x38] sm:$0xff] %v2303
        %2369 = vst [vmem:[%s2360 + $0x40] sm:$0xff] %v2304
        %2370 = vst [vmem:[%s2360 + $0x48] sm:$0xff] %v2308
        %2371 = vst [vmem:[%s2360 + $0x50] sm:$0xff] %v2309
        %2372 = vst [vmem:[%s2360 + $0x58] sm:$0xff] %v2310
        %2373 = vst [vmem:[%s2360 + $0x60] sm:$0xff] %v2314
        %2374 = vst [vmem:[%s2360 + $0x68] sm:$0xff] %v2315
        %2375 = vst [vmem:[%s2360 + $0x70] sm:$0xff] %v2316
        %2376 = vst [vmem:[%s2360 + $0x78] sm:$0xff] %v2320
        %2377 = vst [vmem:[%s2360 + $0x80] sm:$0xff] %v2321
        %2378 = vst [vmem:[%s2360 + $0x88] sm:$0xff] %v2322
        %2379 = vst [vmem:[%s2360 + $0x90] sm:$0xff] %v2326
        %2380 = vst [vmem:[%s2360 + $0x98] sm:$0xff] %v2327
        %2381 = vst [vmem:[%s2360 + $0xa0] sm:$0xff] %v2328
        %2382 = vst [vmem:[%s2360 + $0xa8] sm:$0xff] %v2332
        %2383 = vst [vmem:[%s2360 + $0xb0] sm:$0xff] %v2333
        %2384 = vst [vmem:[%s2360 + $0xb8] sm:$0xff] %v2334
        %2385 = vst [vmem:[#allocation2] sm:$0xff] 0.0
        %2386 = vst [vmem:[#allocation2 + $0x8] sm:$0xff] 0.0
        %2387 = vst [vmem:[#allocation2 + $0x10] sm:$0xff] 0.0
        %s2388 = scalar_lea.vmem [#allocation2], 240
        %2389 = vst [vmem:[%s2388] sm:$0xff] 0.0
        %2390 = vst [vmem:[%s2388 + $0x8] sm:$0xff] 0.0
        %2391 = vst [vmem:[%s2388 + $0x10] sm:$0xff] 0.0
        %s2392 = scalar_lea.vmem [#allocation2], 216
        %2393 = vst [vmem:[%s2392] sm:$0xff] 0.0
        %2394 = vst [vmem:[%s2392 + $0x8] sm:$0xff] 0.0
        %2395 = vst [vmem:[%s2392 + $0x10] sm:$0xff] 0.0
        %s2396 = scalar_lea.vmem [#allocation2], 456
        %2397 = vst [vmem:[%s2396] sm:$0xff] 0.0
        %2398 = vst [vmem:[%s2396 + $0x8] sm:$0xff] 0.0
        %2399 = vst [vmem:[%s2396 + $0x10] sm:$0xff] 0.0
        %v2400 = vld [vmem:[#allocation2] sm:$0xff]
        %v2401 = vld [vmem:[#allocation2 + $0x8] sm:$0xff]
        %v2402 = vld [vmem:[#allocation2 + $0x10] sm:$0xff]
        %v2403 = vld [vmem:[#allocation2 + $0x18] sm:$0xff]
        %v2404 = vld [vmem:[#allocation2 + $0x20] sm:$0xff]
        %v2405 = vld [vmem:[#allocation2 + $0x28] sm:$0xff]
        %v2406 = vld [vmem:[#allocation2 + $0x30] sm:$0xff]
        %v2407 = vld [vmem:[#allocation2 + $0x38] sm:$0xff]
        %v2408 = vld [vmem:[#allocation2 + $0x40] sm:$0xff]
        %v2409 = vld [vmem:[#allocation2 + $0x48] sm:$0xff]
        %v2410 = vld [vmem:[#allocation2 + $0x50] sm:$0xff]
        %v2411 = vld [vmem:[#allocation2 + $0x58] sm:$0xff]
        %v2412 = vld [vmem:[#allocation2 + $0x60] sm:$0xff]
        %v2413 = vld [vmem:[#allocation2 + $0x68] sm:$0xff]
        %v2414 = vld [vmem:[#allocation2 + $0x70] sm:$0xff]
        %v2415 = vld [vmem:[#allocation2 + $0x78] sm:$0xff]
        %v2416 = vld [vmem:[#allocation2 + $0x80] sm:$0xff]
        %v2417 = vld [vmem:[#allocation2 + $0x88] sm:$0xff]
        %v2418 = vld [vmem:[#allocation2 + $0x90] sm:$0xff]
        %v2419 = vld [vmem:[#allocation2 + $0x98] sm:$0xff]
        %v2420 = vld [vmem:[#allocation2 + $0xa0] sm:$0xff]
        %v2421 = vld [vmem:[#allocation2 + $0xa8] sm:$0xff]
        %v2422 = vld [vmem:[#allocation2 + $0xb0] sm:$0xff]
        %v2423 = vld [vmem:[#allocation2 + $0xb8] sm:$0xff]
        %v2424 = vpack.c.bf16 %v2403, %v2400
        %v2425 = vpack.c.bf16 %v2404, %v2401
        %v2426 = vpack.c.bf16 %v2405, %v2402
        %v2427 = vpack.c.bf16 %v2409, %v2406
        %v2428 = vpack.c.bf16 %v2410, %v2407
        %v2429 = vpack.c.bf16 %v2411, %v2408
        %v2430 = vpack.c.bf16 %v2415, %v2412
        %v2431 = vpack.c.bf16 %v2416, %v2413
        %v2432 = vpack.c.bf16 %v2417, %v2414
        %v2433 = vpack.c.bf16 %v2421, %v2418
        %v2434 = vpack.c.bf16 %v2422, %v2419
        %v2435 = vpack.c.bf16 %v2423, %v2420
        %v2436 = vld [vmem:[%s3] sm:$0xf]
        %v2437 = vld [vmem:[%s3 + $0x4] sm:$0xf]
        %v2438 = vld [vmem:[%s3 + $0x8] sm:$0xf]
        %v2439 = vld [vmem:[%s3 + $0xc] sm:$0xf]
        %v2440 = vld [vmem:[%s3 + $0x10] sm:$0xf]
        %v2441 = vld [vmem:[%s3 + $0x14] sm:$0xf]
        %v2442 = vld [vmem:[%s3 + $0x18] sm:$0xf]
        %v2443 = vld [vmem:[%s3 + $0x1c] sm:$0xf]
        %v2444 = vld [vmem:[%s3 + $0x20] sm:$0xf]
        %v2445 = vld [vmem:[%s3 + $0x24] sm:$0xf]
        %v2446 = vld [vmem:[%s3 + $0x28] sm:$0xf]
        %v2447 = vld [vmem:[%s3 + $0x2c] sm:$0xf]
        %v2448 = vld [vmem:[%s3 + $0x30] sm:$0xf]
        %v2449 = vld [vmem:[%s3 + $0x34] sm:$0xf]
        %v2450 = vld [vmem:[%s3 + $0x38] sm:$0xf]
        %v2451 = vld [vmem:[%s3 + $0x3c] sm:$0xf]
        %v2452 = vld [vmem:[%s3 + $0x40] sm:$0xf]
        %v2453 = vld [vmem:[%s3 + $0x44] sm:$0xf]
        %v2454 = vld [vmem:[%s3 + $0x48] sm:$0xf]
        %v2455 = vld [vmem:[%s3 + $0x4c] sm:$0xf]
        %v2456 = vld [vmem:[%s3 + $0x50] sm:$0xf]
        %v2457 = vld [vmem:[%s3 + $0x54] sm:$0xf]
        %v2458 = vld [vmem:[%s3 + $0x58] sm:$0xf]
        %v2459 = vld [vmem:[%s3 + $0x5c] sm:$0xf]
        %v2460 = vld [vmem:[%s3 + $0x60] sm:$0xf]
        %v2461 = vld [vmem:[%s3 + $0x64] sm:$0xf]
        %v2462 = vld [vmem:[%s3 + $0x68] sm:$0xf]
        %v2463 = vld [vmem:[%s3 + $0x6c] sm:$0xf]
        %v2464 = vld [vmem:[%s3 + $0x70] sm:$0xf]
        %v2465 = vld [vmem:[%s3 + $0x74] sm:$0xf]
        %v2466 = vld [vmem:[%s3 + $0x78] sm:$0xf]
        %v2467 = vld [vmem:[%s3 + $0x7c] sm:$0xf]
        %v2468 = vld [vmem:[%s3 + $0x80] sm:$0xf]
        %v2469 = vld [vmem:[%s3 + $0x84] sm:$0xf]
        %v2470 = vld [vmem:[%s3 + $0x88] sm:$0xf]
        %v2471 = vld [vmem:[%s3 + $0x8c] sm:$0xf]
        %v2472 = vld [vmem:[%s3 + $0x90] sm:$0xf]
        %v2473 = vld [vmem:[%s3 + $0x94] sm:$0xf]
        %v2474 = vld [vmem:[%s3 + $0x98] sm:$0xf]
        %v2475 = vld [vmem:[%s3 + $0x9c] sm:$0xf]
        %v2476 = vld [vmem:[%s3 + $0xa0] sm:$0xf]
        %v2477 = vld [vmem:[%s3 + $0xa4] sm:$0xf]
        %v2478 = vld [vmem:[%s3 + $0xa8] sm:$0xf]
        %v2479 = vld [vmem:[%s3 + $0xac] sm:$0xf]
        %v2480 = vld [vmem:[%s3 + $0xb0] sm:$0xf]
        %v2481 = vld [vmem:[%s3 + $0xb4] sm:$0xf]
        %v2482 = vld [vmem:[%s3 + $0xb8] sm:$0xf]
        %v2483 = vld [vmem:[%s3 + $0xbc] sm:$0xf]
        %v2484 = vld [vmem:[%s2388] sm:$0xff]
        %v2485 = vld [vmem:[%s2388 + $0x8] sm:$0xff]
        %v2486 = vld [vmem:[%s2388 + $0x10] sm:$0xff]
        %v2487 = vld [vmem:[%s2388 + $0x18] sm:$0xff]
        %v2488 = vld [vmem:[%s2388 + $0x20] sm:$0xff]
        %v2489 = vld [vmem:[%s2388 + $0x28] sm:$0xff]
        %v2490 = vld [vmem:[%s2388 + $0x30] sm:$0xff]
        %v2491 = vld [vmem:[%s2388 + $0x38] sm:$0xff]
        %v2492 = vld [vmem:[%s2388 + $0x40] sm:$0xff]
        %v2493 = vld [vmem:[%s2388 + $0x48] sm:$0xff]
        %v2494 = vld [vmem:[%s2388 + $0x50] sm:$0xff]
        %v2495 = vld [vmem:[%s2388 + $0x58] sm:$0xff]
        %v2496 = vld [vmem:[%s2388 + $0x60] sm:$0xff]
        %v2497 = vld [vmem:[%s2388 + $0x68] sm:$0xff]
        %v2498 = vld [vmem:[%s2388 + $0x70] sm:$0xff]
        %v2499 = vld [vmem:[%s2388 + $0x78] sm:$0xff]
        %v2500 = vld [vmem:[%s2388 + $0x80] sm:$0xff]
        %v2501 = vld [vmem:[%s2388 + $0x88] sm:$0xff]
        %v2502 = vld [vmem:[%s2388 + $0x90] sm:$0xff]
        %v2503 = vld [vmem:[%s2388 + $0x98] sm:$0xff]
        %v2504 = vld [vmem:[%s2388 + $0xa0] sm:$0xff]
        %v2505 = vld [vmem:[%s2388 + $0xa8] sm:$0xff]
        %v2506 = vld [vmem:[%s2388 + $0xb0] sm:$0xff]
        %v2507 = vld [vmem:[%s2388 + $0xb8] sm:$0xff]
        %v2508 = vpack.c.bf16 %v2487, %v2484
        %v2509 = vpack.c.bf16 %v2488, %v2485
        %v2510 = vpack.c.bf16 %v2489, %v2486
        %v2511 = vpack.c.bf16 %v2493, %v2490
        %v2512 = vpack.c.bf16 %v2494, %v2491
        %v2513 = vpack.c.bf16 %v2495, %v2492
        %v2514 = vpack.c.bf16 %v2499, %v2496
        %v2515 = vpack.c.bf16 %v2500, %v2497
        %v2516 = vpack.c.bf16 %v2501, %v2498
        %v2517 = vpack.c.bf16 %v2505, %v2502
        %v2518 = vpack.c.bf16 %v2506, %v2503
        %v2519 = vpack.c.bf16 %v2507, %v2504
        %s2520 = scalar_lea.vmem %s3, 192
        %v2521 = vld [vmem:[%s2520] sm:$0xf]
        %v2522 = vld [vmem:[%s2520 + $0x4] sm:$0xf]
        %v2523 = vld [vmem:[%s2520 + $0x8] sm:$0xf]
        %v2524 = vld [vmem:[%s2520 + $0xc] sm:$0xf]
        %v2525 = vld [vmem:[%s2520 + $0x10] sm:$0xf]
        %v2526 = vld [vmem:[%s2520 + $0x14] sm:$0xf]
        %v2527 = vld [vmem:[%s2520 + $0x18] sm:$0xf]
        %v2528 = vld [vmem:[%s2520 + $0x1c] sm:$0xf]
        %v2529 = vld [vmem:[%s2520 + $0x20] sm:$0xf]
        %v2530 = vld [vmem:[%s2520 + $0x24] sm:$0xf]
        %v2531 = vld [vmem:[%s2520 + $0x28] sm:$0xf]
        %v2532 = vld [vmem:[%s2520 + $0x2c] sm:$0xf]
        %v2533 = vld [vmem:[%s2520 + $0x30] sm:$0xf]
        %v2534 = vld [vmem:[%s2520 + $0x34] sm:$0xf]
        %v2535 = vld [vmem:[%s2520 + $0x38] sm:$0xf]
        %v2536 = vld [vmem:[%s2520 + $0x3c] sm:$0xf]
        %v2537 = vld [vmem:[%s2520 + $0x40] sm:$0xf]
        %v2538 = vld [vmem:[%s2520 + $0x44] sm:$0xf]
        %v2539 = vld [vmem:[%s2520 + $0x48] sm:$0xf]
        %v2540 = vld [vmem:[%s2520 + $0x4c] sm:$0xf]
        %v2541 = vld [vmem:[%s2520 + $0x50] sm:$0xf]
        %v2542 = vld [vmem:[%s2520 + $0x54] sm:$0xf]
        %v2543 = vld [vmem:[%s2520 + $0x58] sm:$0xf]
        %v2544 = vld [vmem:[%s2520 + $0x5c] sm:$0xf]
        %v2545 = vld [vmem:[%s2520 + $0x60] sm:$0xf]
        %v2546 = vld [vmem:[%s2520 + $0x64] sm:$0xf]
        %v2547 = vld [vmem:[%s2520 + $0x68] sm:$0xf]
        %v2548 = vld [vmem:[%s2520 + $0x6c] sm:$0xf]
        %v2549 = vld [vmem:[%s2520 + $0x70] sm:$0xf]
        %v2550 = vld [vmem:[%s2520 + $0x74] sm:$0xf]
        %v2551 = vld [vmem:[%s2520 + $0x78] sm:$0xf]
        %v2552 = vld [vmem:[%s2520 + $0x7c] sm:$0xf]
        %v2553 = vld [vmem:[%s2520 + $0x80] sm:$0xf]
        %v2554 = vld [vmem:[%s2520 + $0x84] sm:$0xf]
        %v2555 = vld [vmem:[%s2520 + $0x88] sm:$0xf]
        %v2556 = vld [vmem:[%s2520 + $0x8c] sm:$0xf]
        %v2557 = vld [vmem:[%s2520 + $0x90] sm:$0xf]
        %v2558 = vld [vmem:[%s2520 + $0x94] sm:$0xf]
        %v2559 = vld [vmem:[%s2520 + $0x98] sm:$0xf]
        %v2560 = vld [vmem:[%s2520 + $0x9c] sm:$0xf]
        %v2561 = vld [vmem:[%s2520 + $0xa0] sm:$0xf]
        %v2562 = vld [vmem:[%s2520 + $0xa4] sm:$0xf]
        %v2563 = vld [vmem:[%s2520 + $0xa8] sm:$0xf]
        %v2564 = vld [vmem:[%s2520 + $0xac] sm:$0xf]
        %v2565 = vld [vmem:[%s2520 + $0xb0] sm:$0xf]
        %v2566 = vld [vmem:[%s2520 + $0xb4] sm:$0xf]
        %v2567 = vld [vmem:[%s2520 + $0xb8] sm:$0xf]
        %v2568 = vld [vmem:[%s2520 + $0xbc] sm:$0xf]
        %v2617 = vunpack.c.l.b16 %v2521
        %v2618 = vunpack.c.l.b16 %v2522
        %v2619 = vunpack.c.l.b16 %v2523
        %v2620 = vunpack.c.l.b16 %v2524
        %v2621 = vunpack.c.l.b16 %v2525
        %v2622 = vunpack.c.l.b16 %v2526
        %v2623 = vunpack.c.l.b16 %v2527
        %v2624 = vunpack.c.l.b16 %v2528
        %v2625 = vunpack.c.l.b16 %v2529
        %v2626 = vunpack.c.l.b16 %v2530
        %v2627 = vunpack.c.l.b16 %v2531
        %v2628 = vunpack.c.l.b16 %v2532
        %v2629 = vunpack.c.l.b16 %v2533
        %v2630 = vunpack.c.l.b16 %v2534
        %v2631 = vunpack.c.l.b16 %v2535
        %v2632 = vunpack.c.l.b16 %v2536
        %v2633 = vunpack.c.l.b16 %v2537
        %v2634 = vunpack.c.l.b16 %v2538
        %v2635 = vunpack.c.l.b16 %v2539
        %v2636 = vunpack.c.l.b16 %v2540
        %v2637 = vunpack.c.l.b16 %v2541
        %v2638 = vunpack.c.l.b16 %v2542
        %v2639 = vunpack.c.l.b16 %v2543
        %v2640 = vunpack.c.l.b16 %v2544
        %v2641 = vunpack.c.l.b16 %v2545
        %v2642 = vunpack.c.l.b16 %v2546
        %v2643 = vunpack.c.l.b16 %v2547
        %v2644 = vunpack.c.l.b16 %v2548
        %v2645 = vunpack.c.l.b16 %v2549
        %v2646 = vunpack.c.l.b16 %v2550
        %v2647 = vunpack.c.l.b16 %v2551
        %v2648 = vunpack.c.l.b16 %v2552
        %v2649 = vunpack.c.l.b16 %v2553
        %v2650 = vunpack.c.l.b16 %v2554
        %v2651 = vunpack.c.l.b16 %v2555
        %v2652 = vunpack.c.l.b16 %v2556
        %v2653 = vunpack.c.l.b16 %v2557
        %v2654 = vunpack.c.l.b16 %v2558
        %v2655 = vunpack.c.l.b16 %v2559
        %v2656 = vunpack.c.l.b16 %v2560
        %v2657 = vunpack.c.l.b16 %v2561
        %v2658 = vunpack.c.l.b16 %v2562
        %v2659 = vunpack.c.l.b16 %v2563
        %v2660 = vunpack.c.l.b16 %v2564
        %v2661 = vunpack.c.l.b16 %v2565
        %v2662 = vunpack.c.l.b16 %v2566
        %v2663 = vunpack.c.l.b16 %v2567
        %v2664 = vunpack.c.l.b16 %v2568
        %v2665 = vpack.c.b16 %v2618, %v2617
        %v2666 = vpack.c.b16 %v2620, %v2619
        %v2667 = vpack.c.b16 %v2622, %v2621
        %v2668 = vpack.c.b16 %v2624, %v2623
        %v2669 = vpack.c.b16 %v2626, %v2625
        %v2670 = vpack.c.b16 %v2628, %v2627
        %v2671 = vpack.c.b16 %v2630, %v2629
        %v2672 = vpack.c.b16 %v2632, %v2631
        %v2673 = vpack.c.b16 %v2634, %v2633
        %v2674 = vpack.c.b16 %v2636, %v2635
        %v2675 = vpack.c.b16 %v2638, %v2637
        %v2676 = vpack.c.b16 %v2640, %v2639
        %v2677 = vpack.c.b16 %v2642, %v2641
        %v2678 = vpack.c.b16 %v2644, %v2643
        %v2679 = vpack.c.b16 %v2646, %v2645
        %v2680 = vpack.c.b16 %v2648, %v2647
        %v2681 = vpack.c.b16 %v2650, %v2649
        %v2682 = vpack.c.b16 %v2652, %v2651
        %v2683 = vpack.c.b16 %v2654, %v2653
        %v2684 = vpack.c.b16 %v2656, %v2655
        %v2685 = vpack.c.b16 %v2658, %v2657
        %v2686 = vpack.c.b16 %v2660, %v2659
        %v2687 = vpack.c.b16 %v2662, %v2661
        %v2688 = vpack.c.b16 %v2664, %v2663
        %2713 = vmatpush.bf16.msra.mxu0 %v2672
        %2714 = vmatpush.bf16.msra.mxu0 %v2671
        %2715 = vmatpush.bf16.msra.mxu0 %v2670
        %2716 = vmatpush.bf16.msra.mxu0 %v2669
        %2717 = vmatpush.bf16.msra.mxu0 %v2668
        %2718 = vmatpush.bf16.msra.mxu0 %v2667
        %2719 = vmatpush.bf16.msra.mxu0 %v2666
        %2720 = vmatpush.bf16.msra.mxu0 %v2665
        %2721 = vmatmul.bf16.gmra.mxu0 %v2508
        %v2722 = vpop.f32.mrf.mxu0
        %v2723 = vadd.f32 0.0, %v2722
        %v2724 = vpop.f32.mrf.mxu0
        %v2725 = vadd.f32 0.0, %v2724
        %2726 = vmatmul.bf16.gmra.mxu0 %v2511
        %v2727 = vpop.f32.mrf.mxu0
        %v2728 = vadd.f32 0.0, %v2727
        %v2729 = vpop.f32.mrf.mxu0
        %v2730 = vadd.f32 0.0, %v2729
        %2731 = vmatmul.bf16.gmra.mxu0 %v2514
        %v2732 = vpop.f32.mrf.mxu0
        %v2733 = vadd.f32 0.0, %v2732
        %v2734 = vpop.f32.mrf.mxu0
        %v2735 = vadd.f32 0.0, %v2734
        %2736 = vmatmul.bf16.gmra.mxu0 %v2517
        %v2737 = vpop.f32.mrf.mxu0
        %v2738 = vadd.f32 0.0, %v2737
        %v2739 = vpop.f32.mrf.mxu0
        %v2740 = vadd.f32 0.0, %v2739
        %2741 = vdwg.mxu0
        %2742 = vmatpush.bf16.msra.mxu0 %v2680
        %2743 = vmatpush.bf16.msra.mxu0 %v2679
        %2744 = vmatpush.bf16.msra.mxu0 %v2678
        %2745 = vmatpush.bf16.msra.mxu0 %v2677
        %2746 = vmatpush.bf16.msra.mxu0 %v2676
        %2747 = vmatpush.bf16.msra.mxu0 %v2675
        %2748 = vmatpush.bf16.msra.mxu0 %v2674
        %2749 = vmatpush.bf16.msra.mxu0 %v2673
        %2750 = vmatmul.bf16.gmra.mxu0 %v2509
        %v2751 = vpop.f32.mrf.mxu0
        %v2752 = vadd.f32 %v2723, %v2751
        %v2753 = vpop.f32.mrf.mxu0
        %v2754 = vadd.f32 %v2725, %v2753
        %2755 = vmatmul.bf16.gmra.mxu0 %v2512
        %v2756 = vpop.f32.mrf.mxu0
        %v2757 = vadd.f32 %v2728, %v2756
        %v2758 = vpop.f32.mrf.mxu0
        %v2759 = vadd.f32 %v2730, %v2758
        %2760 = vmatmul.bf16.gmra.mxu0 %v2515
        %v2761 = vpop.f32.mrf.mxu0
        %v2762 = vadd.f32 %v2733, %v2761
        %v2763 = vpop.f32.mrf.mxu0
        %v2764 = vadd.f32 %v2735, %v2763
        %2765 = vmatmul.bf16.gmra.mxu0 %v2518
        %v2766 = vpop.f32.mrf.mxu0
        %v2767 = vadd.f32 %v2738, %v2766
        %v2768 = vpop.f32.mrf.mxu0
        %v2769 = vadd.f32 %v2740, %v2768
        %2770 = vdwg.mxu0
        %2771 = vmatpush.bf16.msra.mxu0 %v2688
        %2772 = vmatpush.bf16.msra.mxu0 %v2687
        %2773 = vmatpush.bf16.msra.mxu0 %v2686
        %2774 = vmatpush.bf16.msra.mxu0 %v2685
        %2775 = vmatpush.bf16.msra.mxu0 %v2684
        %2776 = vmatpush.bf16.msra.mxu0 %v2683
        %2777 = vmatpush.bf16.msra.mxu0 %v2682
        %2778 = vmatpush.bf16.msra.mxu0 %v2681
        %2779 = vmatmul.bf16.gmra.mxu0 %v2510
        %v2780 = vpop.f32.mrf.mxu0
        %v2781 = vadd.f32 %v2752, %v2780
        %v2782 = vpop.f32.mrf.mxu0
        %v2783 = vadd.f32 %v2754, %v2782
        %2784 = vmatmul.bf16.gmra.mxu0 %v2513
        %v2785 = vpop.f32.mrf.mxu0
        %v2786 = vadd.f32 %v2757, %v2785
        %v2787 = vpop.f32.mrf.mxu0
        %v2788 = vadd.f32 %v2759, %v2787
        %2789 = vmatmul.bf16.gmra.mxu0 %v2516
        %v2790 = vpop.f32.mrf.mxu0
        %v2791 = vadd.f32 %v2762, %v2790
        %v2792 = vpop.f32.mrf.mxu0
        %v2793 = vadd.f32 %v2764, %v2792
        %2794 = vmatmul.bf16.gmra.mxu0 %v2519
        %v2795 = vpop.f32.mrf.mxu0
        %v2796 = vadd.f32 %v2767, %v2795
        %v2797 = vpop.f32.mrf.mxu0
        %v2798 = vadd.f32 %v2769, %v2797
        %2799 = vdwg.mxu0
        %v2848 = vunpack.c.l.b16 %v2436
        %v2849 = vunpack.c.l.b16 %v2437
        %v2850 = vunpack.c.l.b16 %v2438
        %v2851 = vunpack.c.l.b16 %v2439
        %v2852 = vunpack.c.l.b16 %v2440
        %v2853 = vunpack.c.l.b16 %v2441
        %v2854 = vunpack.c.l.b16 %v2442
        %v2855 = vunpack.c.l.b16 %v2443
        %v2856 = vunpack.c.l.b16 %v2444
        %v2857 = vunpack.c.l.b16 %v2445
        %v2858 = vunpack.c.l.b16 %v2446
        %v2859 = vunpack.c.l.b16 %v2447
        %v2860 = vunpack.c.l.b16 %v2448
        %v2861 = vunpack.c.l.b16 %v2449
        %v2862 = vunpack.c.l.b16 %v2450
        %v2863 = vunpack.c.l.b16 %v2451
        %v2864 = vunpack.c.l.b16 %v2452
        %v2865 = vunpack.c.l.b16 %v2453
        %v2866 = vunpack.c.l.b16 %v2454
        %v2867 = vunpack.c.l.b16 %v2455
        %v2868 = vunpack.c.l.b16 %v2456
        %v2869 = vunpack.c.l.b16 %v2457
        %v2870 = vunpack.c.l.b16 %v2458
        %v2871 = vunpack.c.l.b16 %v2459
        %v2872 = vunpack.c.l.b16 %v2460
        %v2873 = vunpack.c.l.b16 %v2461
        %v2874 = vunpack.c.l.b16 %v2462
        %v2875 = vunpack.c.l.b16 %v2463
        %v2876 = vunpack.c.l.b16 %v2464
        %v2877 = vunpack.c.l.b16 %v2465
        %v2878 = vunpack.c.l.b16 %v2466
        %v2879 = vunpack.c.l.b16 %v2467
        %v2880 = vunpack.c.l.b16 %v2468
        %v2881 = vunpack.c.l.b16 %v2469
        %v2882 = vunpack.c.l.b16 %v2470
        %v2883 = vunpack.c.l.b16 %v2471
        %v2884 = vunpack.c.l.b16 %v2472
        %v2885 = vunpack.c.l.b16 %v2473
        %v2886 = vunpack.c.l.b16 %v2474
        %v2887 = vunpack.c.l.b16 %v2475
        %v2888 = vunpack.c.l.b16 %v2476
        %v2889 = vunpack.c.l.b16 %v2477
        %v2890 = vunpack.c.l.b16 %v2478
        %v2891 = vunpack.c.l.b16 %v2479
        %v2892 = vunpack.c.l.b16 %v2480
        %v2893 = vunpack.c.l.b16 %v2481
        %v2894 = vunpack.c.l.b16 %v2482
        %v2895 = vunpack.c.l.b16 %v2483
        %v2896 = vpack.c.b16 %v2849, %v2848
        %v2897 = vpack.c.b16 %v2851, %v2850
        %v2898 = vpack.c.b16 %v2853, %v2852
        %v2899 = vpack.c.b16 %v2855, %v2854
        %v2900 = vpack.c.b16 %v2857, %v2856
        %v2901 = vpack.c.b16 %v2859, %v2858
        %v2902 = vpack.c.b16 %v2861, %v2860
        %v2903 = vpack.c.b16 %v2863, %v2862
        %v2904 = vpack.c.b16 %v2865, %v2864
        %v2905 = vpack.c.b16 %v2867, %v2866
        %v2906 = vpack.c.b16 %v2869, %v2868
        %v2907 = vpack.c.b16 %v2871, %v2870
        %v2908 = vpack.c.b16 %v2873, %v2872
        %v2909 = vpack.c.b16 %v2875, %v2874
        %v2910 = vpack.c.b16 %v2877, %v2876
        %v2911 = vpack.c.b16 %v2879, %v2878
        %v2912 = vpack.c.b16 %v2881, %v2880
        %v2913 = vpack.c.b16 %v2883, %v2882
        %v2914 = vpack.c.b16 %v2885, %v2884
        %v2915 = vpack.c.b16 %v2887, %v2886
        %v2916 = vpack.c.b16 %v2889, %v2888
        %v2917 = vpack.c.b16 %v2891, %v2890
        %v2918 = vpack.c.b16 %v2893, %v2892
        %v2919 = vpack.c.b16 %v2895, %v2894
        %2944 = vmatpush.bf16.msra.mxu0 %v2903
        %2945 = vmatpush.bf16.msra.mxu0 %v2902
        %2946 = vmatpush.bf16.msra.mxu0 %v2901
        %2947 = vmatpush.bf16.msra.mxu0 %v2900
        %2948 = vmatpush.bf16.msra.mxu0 %v2899
        %2949 = vmatpush.bf16.msra.mxu0 %v2898
        %2950 = vmatpush.bf16.msra.mxu0 %v2897
        %2951 = vmatpush.bf16.msra.mxu0 %v2896
        %2952 = vmatmul.bf16.gmra.mxu0 %v2424
        %v2953 = vpop.f32.mrf.mxu0
        %v2954 = vadd.f32 %v2781, %v2953
        %v2955 = vpop.f32.mrf.mxu0
        %v2956 = vadd.f32 %v2783, %v2955
        %2957 = vmatmul.bf16.gmra.mxu0 %v2427
        %v2958 = vpop.f32.mrf.mxu0
        %v2959 = vadd.f32 %v2786, %v2958
        %v2960 = vpop.f32.mrf.mxu0
        %v2961 = vadd.f32 %v2788, %v2960
        %2962 = vmatmul.bf16.gmra.mxu0 %v2430
        %v2963 = vpop.f32.mrf.mxu0
        %v2964 = vadd.f32 %v2791, %v2963
        %v2965 = vpop.f32.mrf.mxu0
        %v2966 = vadd.f32 %v2793, %v2965
        %2967 = vmatmul.bf16.gmra.mxu0 %v2433
        %v2968 = vpop.f32.mrf.mxu0
        %v2969 = vadd.f32 %v2796, %v2968
        %v2970 = vpop.f32.mrf.mxu0
        %v2971 = vadd.f32 %v2798, %v2970
        %2972 = vdwg.mxu0
        %2973 = vmatpush.bf16.msra.mxu0 %v2911
        %2974 = vmatpush.bf16.msra.mxu0 %v2910
        %2975 = vmatpush.bf16.msra.mxu0 %v2909
        %2976 = vmatpush.bf16.msra.mxu0 %v2908
        %2977 = vmatpush.bf16.msra.mxu0 %v2907
        %2978 = vmatpush.bf16.msra.mxu0 %v2906
        %2979 = vmatpush.bf16.msra.mxu0 %v2905
        %2980 = vmatpush.bf16.msra.mxu0 %v2904
        %2981 = vmatmul.bf16.gmra.mxu0 %v2425
        %v2982 = vpop.f32.mrf.mxu0
        %v2983 = vadd.f32 %v2954, %v2982
        %v2984 = vpop.f32.mrf.mxu0
        %v2985 = vadd.f32 %v2956, %v2984
        %2986 = vmatmul.bf16.gmra.mxu0 %v2428
        %v2987 = vpop.f32.mrf.mxu0
        %v2988 = vadd.f32 %v2959, %v2987
        %v2989 = vpop.f32.mrf.mxu0
        %v2990 = vadd.f32 %v2961, %v2989
        %2991 = vmatmul.bf16.gmra.mxu0 %v2431
        %v2992 = vpop.f32.mrf.mxu0
        %v2993 = vadd.f32 %v2964, %v2992
        %v2994 = vpop.f32.mrf.mxu0
        %v2995 = vadd.f32 %v2966, %v2994
        %2996 = vmatmul.bf16.gmra.mxu0 %v2434
        %v2997 = vpop.f32.mrf.mxu0
        %v2998 = vadd.f32 %v2969, %v2997
        %v2999 = vpop.f32.mrf.mxu0
        %v3000 = vadd.f32 %v2971, %v2999
        %3001 = vdwg.mxu0
        %3002 = vmatpush.bf16.msra.mxu0 %v2919
        %3003 = vmatpush.bf16.msra.mxu0 %v2918
        %3004 = vmatpush.bf16.msra.mxu0 %v2917
        %3005 = vmatpush.bf16.msra.mxu0 %v2916
        %3006 = vmatpush.bf16.msra.mxu0 %v2915
        %3007 = vmatpush.bf16.msra.mxu0 %v2914
        %3008 = vmatpush.bf16.msra.mxu0 %v2913
        %3009 = vmatpush.bf16.msra.mxu0 %v2912
        %3010 = vmatmul.bf16.gmra.mxu0 %v2426
        %v3011 = vpop.f32.mrf.mxu0
        %v3012 = vadd.f32 %v2983, %v3011
        %v3013 = vpop.f32.mrf.mxu0
        %v3014 = vadd.f32 %v2985, %v3013
        %3015 = vmatmul.bf16.gmra.mxu0 %v2429
        %v3016 = vpop.f32.mrf.mxu0
        %v3017 = vadd.f32 %v2988, %v3016
        %v3018 = vpop.f32.mrf.mxu0
        %v3019 = vadd.f32 %v2990, %v3018
        %3020 = vmatmul.bf16.gmra.mxu0 %v2432
        %v3021 = vpop.f32.mrf.mxu0
        %v3022 = vadd.f32 %v2993, %v3021
        %v3023 = vpop.f32.mrf.mxu0
        %v3024 = vadd.f32 %v2995, %v3023
        %3025 = vmatmul.bf16.gmra.mxu0 %v2435
        %v3026 = vpop.f32.mrf.mxu0
        %v3027 = vadd.f32 %v2998, %v3026
        %v3028 = vpop.f32.mrf.mxu0
        %v3029 = vadd.f32 %v3000, %v3028
        %3030 = vdwg.mxu0
        %v3031 = vld [vmem:[%s2335] sm:$0xff]
        %v3032 = vld [vmem:[%s2335 + $0x8] sm:$0xff]
        %v3033 = vld [vmem:[%s2335 + $0x10] sm:$0xff]
        %v3034 = vld [vmem:[%s2335 + $0x18] sm:$0xff]
        %v3035 = vld [vmem:[%s2335 + $0x20] sm:$0xff]
        %v3036 = vld [vmem:[%s2335 + $0x28] sm:$0xff]
        %v3037 = vld [vmem:[%s2335 + $0x30] sm:$0xff]
        %v3038 = vld [vmem:[%s2335 + $0x38] sm:$0xff]
        %v3039 = vld [vmem:[%s2335 + $0x40] sm:$0xff]
        %v3040 = vld [vmem:[%s2335 + $0x48] sm:$0xff]
        %v3041 = vld [vmem:[%s2335 + $0x50] sm:$0xff]
        %v3042 = vld [vmem:[%s2335 + $0x58] sm:$0xff]
        %v3043 = vld [vmem:[%s2335 + $0x60] sm:$0xff]
        %v3044 = vld [vmem:[%s2335 + $0x68] sm:$0xff]
        %v3045 = vld [vmem:[%s2335 + $0x70] sm:$0xff]
        %v3046 = vld [vmem:[%s2335 + $0x78] sm:$0xff]
        %v3047 = vld [vmem:[%s2335 + $0x80] sm:$0xff]
        %v3048 = vld [vmem:[%s2335 + $0x88] sm:$0xff]
        %v3049 = vld [vmem:[%s2335 + $0x90] sm:$0xff]
        %v3050 = vld [vmem:[%s2335 + $0x98] sm:$0xff]
        %v3051 = vld [vmem:[%s2335 + $0xa0] sm:$0xff]
        %v3052 = vld [vmem:[%s2335 + $0xa8] sm:$0xff]
        %v3053 = vld [vmem:[%s2335 + $0xb0] sm:$0xff]
        %v3054 = vld [vmem:[%s2335 + $0xb8] sm:$0xff]
        %v3055 = vpack.c.bf16 %v3034, %v3031
        %v3056 = vpack.c.bf16 %v3035, %v3032
        %v3057 = vpack.c.bf16 %v3036, %v3033
        %v3058 = vpack.c.bf16 %v3040, %v3037
        %v3059 = vpack.c.bf16 %v3041, %v3038
        %v3060 = vpack.c.bf16 %v3042, %v3039
        %v3061 = vpack.c.bf16 %v3046, %v3043
        %v3062 = vpack.c.bf16 %v3047, %v3044
        %v3063 = vpack.c.bf16 %v3048, %v3045
        %v3064 = vpack.c.bf16 %v3052, %v3049
        %v3065 = vpack.c.bf16 %v3053, %v3050
        %v3066 = vpack.c.bf16 %v3054, %v3051
        %s3067 = scalar_lea.vmem %s3, 384
        %v3068 = vld [vmem:[%s3067] sm:$0xf]
        %v3069 = vld [vmem:[%s3067 + $0x4] sm:$0xf]
        %v3070 = vld [vmem:[%s3067 + $0x8] sm:$0xf]
        %v3071 = vld [vmem:[%s3067 + $0xc] sm:$0xf]
        %v3072 = vld [vmem:[%s3067 + $0x10] sm:$0xf]
        %v3073 = vld [vmem:[%s3067 + $0x14] sm:$0xf]
        %v3074 = vld [vmem:[%s3067 + $0x18] sm:$0xf]
        %v3075 = vld [vmem:[%s3067 + $0x1c] sm:$0xf]
        %v3076 = vld [vmem:[%s3067 + $0x20] sm:$0xf]
        %v3077 = vld [vmem:[%s3067 + $0x24] sm:$0xf]
        %v3078 = vld [vmem:[%s3067 + $0x28] sm:$0xf]
        %v3079 = vld [vmem:[%s3067 + $0x2c] sm:$0xf]
        %v3080 = vld [vmem:[%s3067 + $0x30] sm:$0xf]
        %v3081 = vld [vmem:[%s3067 + $0x34] sm:$0xf]
        %v3082 = vld [vmem:[%s3067 + $0x38] sm:$0xf]
        %v3083 = vld [vmem:[%s3067 + $0x3c] sm:$0xf]
        %v3084 = vld [vmem:[%s3067 + $0x40] sm:$0xf]
        %v3085 = vld [vmem:[%s3067 + $0x44] sm:$0xf]
        %v3086 = vld [vmem:[%s3067 + $0x48] sm:$0xf]
        %v3087 = vld [vmem:[%s3067 + $0x4c] sm:$0xf]
        %v3088 = vld [vmem:[%s3067 + $0x50] sm:$0xf]
        %v3089 = vld [vmem:[%s3067 + $0x54] sm:$0xf]
        %v3090 = vld [vmem:[%s3067 + $0x58] sm:$0xf]
        %v3091 = vld [vmem:[%s3067 + $0x5c] sm:$0xf]
        %v3092 = vld [vmem:[%s3067 + $0x60] sm:$0xf]
        %v3093 = vld [vmem:[%s3067 + $0x64] sm:$0xf]
        %v3094 = vld [vmem:[%s3067 + $0x68] sm:$0xf]
        %v3095 = vld [vmem:[%s3067 + $0x6c] sm:$0xf]
        %v3096 = vld [vmem:[%s3067 + $0x70] sm:$0xf]
        %v3097 = vld [vmem:[%s3067 + $0x74] sm:$0xf]
        %v3098 = vld [vmem:[%s3067 + $0x78] sm:$0xf]
        %v3099 = vld [vmem:[%s3067 + $0x7c] sm:$0xf]
        %v3100 = vld [vmem:[%s3067 + $0x80] sm:$0xf]
        %v3101 = vld [vmem:[%s3067 + $0x84] sm:$0xf]
        %v3102 = vld [vmem:[%s3067 + $0x88] sm:$0xf]
        %v3103 = vld [vmem:[%s3067 + $0x8c] sm:$0xf]
        %v3104 = vld [vmem:[%s3067 + $0x90] sm:$0xf]
        %v3105 = vld [vmem:[%s3067 + $0x94] sm:$0xf]
        %v3106 = vld [vmem:[%s3067 + $0x98] sm:$0xf]
        %v3107 = vld [vmem:[%s3067 + $0x9c] sm:$0xf]
        %v3108 = vld [vmem:[%s3067 + $0xa0] sm:$0xf]
        %v3109 = vld [vmem:[%s3067 + $0xa4] sm:$0xf]
        %v3110 = vld [vmem:[%s3067 + $0xa8] sm:$0xf]
        %v3111 = vld [vmem:[%s3067 + $0xac] sm:$0xf]
        %v3112 = vld [vmem:[%s3067 + $0xb0] sm:$0xf]
        %v3113 = vld [vmem:[%s3067 + $0xb4] sm:$0xf]
        %v3114 = vld [vmem:[%s3067 + $0xb8] sm:$0xf]
        %v3115 = vld [vmem:[%s3067 + $0xbc] sm:$0xf]
        %v3164 = vunpack.c.l.b16 %v3068
        %v3165 = vunpack.c.l.b16 %v3069
        %v3166 = vunpack.c.l.b16 %v3070
        %v3167 = vunpack.c.l.b16 %v3071
        %v3168 = vunpack.c.l.b16 %v3072
        %v3169 = vunpack.c.l.b16 %v3073
        %v3170 = vunpack.c.l.b16 %v3074
        %v3171 = vunpack.c.l.b16 %v3075
        %v3172 = vunpack.c.l.b16 %v3076
        %v3173 = vunpack.c.l.b16 %v3077
        %v3174 = vunpack.c.l.b16 %v3078
        %v3175 = vunpack.c.l.b16 %v3079
        %v3176 = vunpack.c.l.b16 %v3080
        %v3177 = vunpack.c.l.b16 %v3081
        %v3178 = vunpack.c.l.b16 %v3082
        %v3179 = vunpack.c.l.b16 %v3083
        %v3180 = vunpack.c.l.b16 %v3084
        %v3181 = vunpack.c.l.b16 %v3085
        %v3182 = vunpack.c.l.b16 %v3086
        %v3183 = vunpack.c.l.b16 %v3087
        %v3184 = vunpack.c.l.b16 %v3088
        %v3185 = vunpack.c.l.b16 %v3089
        %v3186 = vunpack.c.l.b16 %v3090
        %v3187 = vunpack.c.l.b16 %v3091
        %v3188 = vunpack.c.l.b16 %v3092
        %v3189 = vunpack.c.l.b16 %v3093
        %v3190 = vunpack.c.l.b16 %v3094
        %v3191 = vunpack.c.l.b16 %v3095
        %v3192 = vunpack.c.l.b16 %v3096
        %v3193 = vunpack.c.l.b16 %v3097
        %v3194 = vunpack.c.l.b16 %v3098
        %v3195 = vunpack.c.l.b16 %v3099
        %v3196 = vunpack.c.l.b16 %v3100
        %v3197 = vunpack.c.l.b16 %v3101
        %v3198 = vunpack.c.l.b16 %v3102
        %v3199 = vunpack.c.l.b16 %v3103
        %v3200 = vunpack.c.l.b16 %v3104
        %v3201 = vunpack.c.l.b16 %v3105
        %v3202 = vunpack.c.l.b16 %v3106
        %v3203 = vunpack.c.l.b16 %v3107
        %v3204 = vunpack.c.l.b16 %v3108
        %v3205 = vunpack.c.l.b16 %v3109
        %v3206 = vunpack.c.l.b16 %v3110
        %v3207 = vunpack.c.l.b16 %v3111
        %v3208 = vunpack.c.l.b16 %v3112
        %v3209 = vunpack.c.l.b16 %v3113
        %v3210 = vunpack.c.l.b16 %v3114
        %v3211 = vunpack.c.l.b16 %v3115
        %v3212 = vpack.c.b16 %v3165, %v3164
        %v3213 = vpack.c.b16 %v3167, %v3166
        %v3214 = vpack.c.b16 %v3169, %v3168
        %v3215 = vpack.c.b16 %v3171, %v3170
        %v3216 = vpack.c.b16 %v3173, %v3172
        %v3217 = vpack.c.b16 %v3175, %v3174
        %v3218 = vpack.c.b16 %v3177, %v3176
        %v3219 = vpack.c.b16 %v3179, %v3178
        %v3220 = vpack.c.b16 %v3181, %v3180
        %v3221 = vpack.c.b16 %v3183, %v3182
        %v3222 = vpack.c.b16 %v3185, %v3184
        %v3223 = vpack.c.b16 %v3187, %v3186
        %v3224 = vpack.c.b16 %v3189, %v3188
        %v3225 = vpack.c.b16 %v3191, %v3190
        %v3226 = vpack.c.b16 %v3193, %v3192
        %v3227 = vpack.c.b16 %v3195, %v3194
        %v3228 = vpack.c.b16 %v3197, %v3196
        %v3229 = vpack.c.b16 %v3199, %v3198
        %v3230 = vpack.c.b16 %v3201, %v3200
        %v3231 = vpack.c.b16 %v3203, %v3202
        %v3232 = vpack.c.b16 %v3205, %v3204
        %v3233 = vpack.c.b16 %v3207, %v3206
        %v3234 = vpack.c.b16 %v3209, %v3208
        %v3235 = vpack.c.b16 %v3211, %v3210
        %3260 = vmatpush.bf16.msra.mxu0 %v3219
        %3261 = vmatpush.bf16.msra.mxu0 %v3218
        %3262 = vmatpush.bf16.msra.mxu0 %v3217
        %3263 = vmatpush.bf16.msra.mxu0 %v3216
        %3264 = vmatpush.bf16.msra.mxu0 %v3215
        %3265 = vmatpush.bf16.msra.mxu0 %v3214
        %3266 = vmatpush.bf16.msra.mxu0 %v3213
        %3267 = vmatpush.bf16.msra.mxu0 %v3212
        %3268 = vmatmul.bf16.gmra.mxu0 %v3055
        %v3269 = vpop.f32.mrf.mxu0
        %v3270 = vadd.f32 0.0, %v3269
        %v3271 = vpop.f32.mrf.mxu0
        %v3272 = vadd.f32 0.0, %v3271
        %3273 = vmatmul.bf16.gmra.mxu0 %v3058
        %v3274 = vpop.f32.mrf.mxu0
        %v3275 = vadd.f32 0.0, %v3274
        %v3276 = vpop.f32.mrf.mxu0
        %v3277 = vadd.f32 0.0, %v3276
        %3278 = vmatmul.bf16.gmra.mxu0 %v3061
        %v3279 = vpop.f32.mrf.mxu0
        %v3280 = vadd.f32 0.0, %v3279
        %v3281 = vpop.f32.mrf.mxu0
        %v3282 = vadd.f32 0.0, %v3281
        %3283 = vmatmul.bf16.gmra.mxu0 %v3064
        %v3284 = vpop.f32.mrf.mxu0
        %v3285 = vadd.f32 0.0, %v3284
        %v3286 = vpop.f32.mrf.mxu0
        %v3287 = vadd.f32 0.0, %v3286
        %3288 = vdwg.mxu0
        %3289 = vmatpush.bf16.msra.mxu0 %v3227
        %3290 = vmatpush.bf16.msra.mxu0 %v3226
        %3291 = vmatpush.bf16.msra.mxu0 %v3225
        %3292 = vmatpush.bf16.msra.mxu0 %v3224
        %3293 = vmatpush.bf16.msra.mxu0 %v3223
        %3294 = vmatpush.bf16.msra.mxu0 %v3222
        %3295 = vmatpush.bf16.msra.mxu0 %v3221
        %3296 = vmatpush.bf16.msra.mxu0 %v3220
        %3297 = vmatmul.bf16.gmra.mxu0 %v3056
        %v3298 = vpop.f32.mrf.mxu0
        %v3299 = vadd.f32 %v3270, %v3298
        %v3300 = vpop.f32.mrf.mxu0
        %v3301 = vadd.f32 %v3272, %v3300
        %3302 = vmatmul.bf16.gmra.mxu0 %v3059
        %v3303 = vpop.f32.mrf.mxu0
        %v3304 = vadd.f32 %v3275, %v3303
        %v3305 = vpop.f32.mrf.mxu0
        %v3306 = vadd.f32 %v3277, %v3305
        %3307 = vmatmul.bf16.gmra.mxu0 %v3062
        %v3308 = vpop.f32.mrf.mxu0
        %v3309 = vadd.f32 %v3280, %v3308
        %v3310 = vpop.f32.mrf.mxu0
        %v3311 = vadd.f32 %v3282, %v3310
        %3312 = vmatmul.bf16.gmra.mxu0 %v3065
        %v3313 = vpop.f32.mrf.mxu0
        %v3314 = vadd.f32 %v3285, %v3313
        %v3315 = vpop.f32.mrf.mxu0
        %v3316 = vadd.f32 %v3287, %v3315
        %3317 = vdwg.mxu0
        %3318 = vmatpush.bf16.msra.mxu0 %v3235
        %3319 = vmatpush.bf16.msra.mxu0 %v3234
        %3320 = vmatpush.bf16.msra.mxu0 %v3233
        %3321 = vmatpush.bf16.msra.mxu0 %v3232
        %3322 = vmatpush.bf16.msra.mxu0 %v3231
        %3323 = vmatpush.bf16.msra.mxu0 %v3230
        %3324 = vmatpush.bf16.msra.mxu0 %v3229
        %3325 = vmatpush.bf16.msra.mxu0 %v3228
        %3326 = vmatmul.bf16.gmra.mxu0 %v3057
        %v3327 = vpop.f32.mrf.mxu0
        %v3328 = vadd.f32 %v3299, %v3327
        %v3329 = vpop.f32.mrf.mxu0
        %v3330 = vadd.f32 %v3301, %v3329
        %3331 = vmatmul.bf16.gmra.mxu0 %v3060
        %v3332 = vpop.f32.mrf.mxu0
        %v3333 = vadd.f32 %v3304, %v3332
        %v3334 = vpop.f32.mrf.mxu0
        %v3335 = vadd.f32 %v3306, %v3334
        %3336 = vmatmul.bf16.gmra.mxu0 %v3063
        %v3337 = vpop.f32.mrf.mxu0
        %v3338 = vadd.f32 %v3309, %v3337
        %v3339 = vpop.f32.mrf.mxu0
        %v3340 = vadd.f32 %v3311, %v3339
        %3341 = vmatmul.bf16.gmra.mxu0 %v3066
        %v3342 = vpop.f32.mrf.mxu0
        %v3343 = vadd.f32 %v3314, %v3342
        %v3344 = vpop.f32.mrf.mxu0
        %v3345 = vadd.f32 %v3316, %v3344
        %3346 = vdwg.mxu0
        %v3347 = vadd.f32 %v3012, %v3328
        %v3348 = vadd.f32 %v3014, %v3330
        %v3349 = vadd.f32 %v3017, %v3333
        %v3350 = vadd.f32 %v3019, %v3335
        %v3351 = vadd.f32 %v3022, %v3338
        %v3352 = vadd.f32 %v3024, %v3340
        %v3353 = vadd.f32 %v3027, %v3343
        %v3354 = vadd.f32 %v3029, %v3345
        %v3355 = vld [vmem:[%s2360] sm:$0xff]
        %v3356 = vld [vmem:[%s2360 + $0x8] sm:$0xff]
        %v3357 = vld [vmem:[%s2360 + $0x10] sm:$0xff]
        %v3358 = vld [vmem:[%s2360 + $0x18] sm:$0xff]
        %v3359 = vld [vmem:[%s2360 + $0x20] sm:$0xff]
        %v3360 = vld [vmem:[%s2360 + $0x28] sm:$0xff]
        %v3361 = vld [vmem:[%s2360 + $0x30] sm:$0xff]
        %v3362 = vld [vmem:[%s2360 + $0x38] sm:$0xff]
        %v3363 = vld [vmem:[%s2360 + $0x40] sm:$0xff]
        %v3364 = vld [vmem:[%s2360 + $0x48] sm:$0xff]
        %v3365 = vld [vmem:[%s2360 + $0x50] sm:$0xff]
        %v3366 = vld [vmem:[%s2360 + $0x58] sm:$0xff]
        %v3367 = vld [vmem:[%s2360 + $0x60] sm:$0xff]
        %v3368 = vld [vmem:[%s2360 + $0x68] sm:$0xff]
        %v3369 = vld [vmem:[%s2360 + $0x70] sm:$0xff]
        %v3370 = vld [vmem:[%s2360 + $0x78] sm:$0xff]
        %v3371 = vld [vmem:[%s2360 + $0x80] sm:$0xff]
        %v3372 = vld [vmem:[%s2360 + $0x88] sm:$0xff]
        %v3373 = vld [vmem:[%s2360 + $0x90] sm:$0xff]
        %v3374 = vld [vmem:[%s2360 + $0x98] sm:$0xff]
        %v3375 = vld [vmem:[%s2360 + $0xa0] sm:$0xff]
        %v3376 = vld [vmem:[%s2360 + $0xa8] sm:$0xff]
        %v3377 = vld [vmem:[%s2360 + $0xb0] sm:$0xff]
        %v3378 = vld [vmem:[%s2360 + $0xb8] sm:$0xff]
        %v3379 = vpack.c.bf16 %v3358, %v3355
        %v3380 = vpack.c.bf16 %v3359, %v3356
        %v3381 = vpack.c.bf16 %v3360, %v3357
        %v3382 = vpack.c.bf16 %v3364, %v3361
        %v3383 = vpack.c.bf16 %v3365, %v3362
        %v3384 = vpack.c.bf16 %v3366, %v3363
        %v3385 = vpack.c.bf16 %v3370, %v3367
        %v3386 = vpack.c.bf16 %v3371, %v3368
        %v3387 = vpack.c.bf16 %v3372, %v3369
        %v3388 = vpack.c.bf16 %v3376, %v3373
        %v3389 = vpack.c.bf16 %v3377, %v3374
        %v3390 = vpack.c.bf16 %v3378, %v3375
        %s3391 = scalar_lea.vmem %s3, 576
        %v3392 = vld [vmem:[%s3391] sm:$0xf]
        %v3393 = vld [vmem:[%s3391 + $0x4] sm:$0xf]
        %v3394 = vld [vmem:[%s3391 + $0x8] sm:$0xf]
        %v3395 = vld [vmem:[%s3391 + $0xc] sm:$0xf]
        %v3396 = vld [vmem:[%s3391 + $0x10] sm:$0xf]
        %v3397 = vld [vmem:[%s3391 + $0x14] sm:$0xf]
        %v3398 = vld [vmem:[%s3391 + $0x18] sm:$0xf]
        %v3399 = vld [vmem:[%s3391 + $0x1c] sm:$0xf]
        %v3400 = vld [vmem:[%s3391 + $0x20] sm:$0xf]
        %v3401 = vld [vmem:[%s3391 + $0x24] sm:$0xf]
        %v3402 = vld [vmem:[%s3391 + $0x28] sm:$0xf]
        %v3403 = vld [vmem:[%s3391 + $0x2c] sm:$0xf]
        %v3404 = vld [vmem:[%s3391 + $0x30] sm:$0xf]
        %v3405 = vld [vmem:[%s3391 + $0x34] sm:$0xf]
        %v3406 = vld [vmem:[%s3391 + $0x38] sm:$0xf]
        %v3407 = vld [vmem:[%s3391 + $0x3c] sm:$0xf]
        %v3408 = vld [vmem:[%s3391 + $0x40] sm:$0xf]
        %v3409 = vld [vmem:[%s3391 + $0x44] sm:$0xf]
        %v3410 = vld [vmem:[%s3391 + $0x48] sm:$0xf]
        %v3411 = vld [vmem:[%s3391 + $0x4c] sm:$0xf]
        %v3412 = vld [vmem:[%s3391 + $0x50] sm:$0xf]
        %v3413 = vld [vmem:[%s3391 + $0x54] sm:$0xf]
        %v3414 = vld [vmem:[%s3391 + $0x58] sm:$0xf]
        %v3415 = vld [vmem:[%s3391 + $0x5c] sm:$0xf]
        %v3416 = vld [vmem:[%s3391 + $0x60] sm:$0xf]
        %v3417 = vld [vmem:[%s3391 + $0x64] sm:$0xf]
        %v3418 = vld [vmem:[%s3391 + $0x68] sm:$0xf]
        %v3419 = vld [vmem:[%s3391 + $0x6c] sm:$0xf]
        %v3420 = vld [vmem:[%s3391 + $0x70] sm:$0xf]
        %v3421 = vld [vmem:[%s3391 + $0x74] sm:$0xf]
        %v3422 = vld [vmem:[%s3391 + $0x78] sm:$0xf]
        %v3423 = vld [vmem:[%s3391 + $0x7c] sm:$0xf]
        %v3424 = vld [vmem:[%s3391 + $0x80] sm:$0xf]
        %v3425 = vld [vmem:[%s3391 + $0x84] sm:$0xf]
        %v3426 = vld [vmem:[%s3391 + $0x88] sm:$0xf]
        %v3427 = vld [vmem:[%s3391 + $0x8c] sm:$0xf]
        %v3428 = vld [vmem:[%s3391 + $0x90] sm:$0xf]
        %v3429 = vld [vmem:[%s3391 + $0x94] sm:$0xf]
        %v3430 = vld [vmem:[%s3391 + $0x98] sm:$0xf]
        %v3431 = vld [vmem:[%s3391 + $0x9c] sm:$0xf]
        %v3432 = vld [vmem:[%s3391 + $0xa0] sm:$0xf]
        %v3433 = vld [vmem:[%s3391 + $0xa4] sm:$0xf]
        %v3434 = vld [vmem:[%s3391 + $0xa8] sm:$0xf]
        %v3435 = vld [vmem:[%s3391 + $0xac] sm:$0xf]
        %v3436 = vld [vmem:[%s3391 + $0xb0] sm:$0xf]
        %v3437 = vld [vmem:[%s3391 + $0xb4] sm:$0xf]
        %v3438 = vld [vmem:[%s3391 + $0xb8] sm:$0xf]
        %v3439 = vld [vmem:[%s3391 + $0xbc] sm:$0xf]
        %v3488 = vunpack.c.l.b16 %v3392
        %v3489 = vunpack.c.l.b16 %v3393
        %v3490 = vunpack.c.l.b16 %v3394
        %v3491 = vunpack.c.l.b16 %v3395
        %v3492 = vunpack.c.l.b16 %v3396
        %v3493 = vunpack.c.l.b16 %v3397
        %v3494 = vunpack.c.l.b16 %v3398
        %v3495 = vunpack.c.l.b16 %v3399
        %v3496 = vunpack.c.l.b16 %v3400
        %v3497 = vunpack.c.l.b16 %v3401
        %v3498 = vunpack.c.l.b16 %v3402
        %v3499 = vunpack.c.l.b16 %v3403
        %v3500 = vunpack.c.l.b16 %v3404
        %v3501 = vunpack.c.l.b16 %v3405
        %v3502 = vunpack.c.l.b16 %v3406
        %v3503 = vunpack.c.l.b16 %v3407
        %v3504 = vunpack.c.l.b16 %v3408
        %v3505 = vunpack.c.l.b16 %v3409
        %v3506 = vunpack.c.l.b16 %v3410
        %v3507 = vunpack.c.l.b16 %v3411
        %v3508 = vunpack.c.l.b16 %v3412
        %v3509 = vunpack.c.l.b16 %v3413
        %v3510 = vunpack.c.l.b16 %v3414
        %v3511 = vunpack.c.l.b16 %v3415
        %v3512 = vunpack.c.l.b16 %v3416
        %v3513 = vunpack.c.l.b16 %v3417
        %v3514 = vunpack.c.l.b16 %v3418
        %v3515 = vunpack.c.l.b16 %v3419
        %v3516 = vunpack.c.l.b16 %v3420
        %v3517 = vunpack.c.l.b16 %v3421
        %v3518 = vunpack.c.l.b16 %v3422
        %v3519 = vunpack.c.l.b16 %v3423
        %v3520 = vunpack.c.l.b16 %v3424
        %v3521 = vunpack.c.l.b16 %v3425
        %v3522 = vunpack.c.l.b16 %v3426
        %v3523 = vunpack.c.l.b16 %v3427
        %v3524 = vunpack.c.l.b16 %v3428
        %v3525 = vunpack.c.l.b16 %v3429
        %v3526 = vunpack.c.l.b16 %v3430
        %v3527 = vunpack.c.l.b16 %v3431
        %v3528 = vunpack.c.l.b16 %v3432
        %v3529 = vunpack.c.l.b16 %v3433
        %v3530 = vunpack.c.l.b16 %v3434
        %v3531 = vunpack.c.l.b16 %v3435
        %v3532 = vunpack.c.l.b16 %v3436
        %v3533 = vunpack.c.l.b16 %v3437
        %v3534 = vunpack.c.l.b16 %v3438
        %v3535 = vunpack.c.l.b16 %v3439
        %v3536 = vpack.c.b16 %v3489, %v3488
        %v3537 = vpack.c.b16 %v3491, %v3490
        %v3538 = vpack.c.b16 %v3493, %v3492
        %v3539 = vpack.c.b16 %v3495, %v3494
        %v3540 = vpack.c.b16 %v3497, %v3496
        %v3541 = vpack.c.b16 %v3499, %v3498
        %v3542 = vpack.c.b16 %v3501, %v3500
        %v3543 = vpack.c.b16 %v3503, %v3502
        %v3544 = vpack.c.b16 %v3505, %v3504
        %v3545 = vpack.c.b16 %v3507, %v3506
        %v3546 = vpack.c.b16 %v3509, %v3508
        %v3547 = vpack.c.b16 %v3511, %v3510
        %v3548 = vpack.c.b16 %v3513, %v3512
        %v3549 = vpack.c.b16 %v3515, %v3514
        %v3550 = vpack.c.b16 %v3517, %v3516
        %v3551 = vpack.c.b16 %v3519, %v3518
        %v3552 = vpack.c.b16 %v3521, %v3520
        %v3553 = vpack.c.b16 %v3523, %v3522
        %v3554 = vpack.c.b16 %v3525, %v3524
        %v3555 = vpack.c.b16 %v3527, %v3526
        %v3556 = vpack.c.b16 %v3529, %v3528
        %v3557 = vpack.c.b16 %v3531, %v3530
        %v3558 = vpack.c.b16 %v3533, %v3532
        %v3559 = vpack.c.b16 %v3535, %v3534
        %3584 = vmatpush.bf16.msra.mxu0 %v3543
        %3585 = vmatpush.bf16.msra.mxu0 %v3542
        %3586 = vmatpush.bf16.msra.mxu0 %v3541
        %3587 = vmatpush.bf16.msra.mxu0 %v3540
        %3588 = vmatpush.bf16.msra.mxu0 %v3539
        %3589 = vmatpush.bf16.msra.mxu0 %v3538
        %3590 = vmatpush.bf16.msra.mxu0 %v3537
        %3591 = vmatpush.bf16.msra.mxu0 %v3536
        %3592 = vmatmul.bf16.gmra.mxu0 %v3379
        %v3593 = vpop.f32.mrf.mxu0
        %v3594 = vadd.f32 0.0, %v3593
        %v3595 = vpop.f32.mrf.mxu0
        %v3596 = vadd.f32 0.0, %v3595
        %3597 = vmatmul.bf16.gmra.mxu0 %v3382
        %v3598 = vpop.f32.mrf.mxu0
        %v3599 = vadd.f32 0.0, %v3598
        %v3600 = vpop.f32.mrf.mxu0
        %v3601 = vadd.f32 0.0, %v3600
        %3602 = vmatmul.bf16.gmra.mxu0 %v3385
        %v3603 = vpop.f32.mrf.mxu0
        %v3604 = vadd.f32 0.0, %v3603
        %v3605 = vpop.f32.mrf.mxu0
        %v3606 = vadd.f32 0.0, %v3605
        %3607 = vmatmul.bf16.gmra.mxu0 %v3388
        %v3608 = vpop.f32.mrf.mxu0
        %v3609 = vadd.f32 0.0, %v3608
        %v3610 = vpop.f32.mrf.mxu0
        %v3611 = vadd.f32 0.0, %v3610
        %3612 = vdwg.mxu0
        %3613 = vmatpush.bf16.msra.mxu0 %v3551
        %3614 = vmatpush.bf16.msra.mxu0 %v3550
        %3615 = vmatpush.bf16.msra.mxu0 %v3549
        %3616 = vmatpush.bf16.msra.mxu0 %v3548
        %3617 = vmatpush.bf16.msra.mxu0 %v3547
        %3618 = vmatpush.bf16.msra.mxu0 %v3546
        %3619 = vmatpush.bf16.msra.mxu0 %v3545
        %3620 = vmatpush.bf16.msra.mxu0 %v3544
        %3621 = vmatmul.bf16.gmra.mxu0 %v3380
        %v3622 = vpop.f32.mrf.mxu0
        %v3623 = vadd.f32 %v3594, %v3622
        %v3624 = vpop.f32.mrf.mxu0
        %v3625 = vadd.f32 %v3596, %v3624
        %3626 = vmatmul.bf16.gmra.mxu0 %v3383
        %v3627 = vpop.f32.mrf.mxu0
        %v3628 = vadd.f32 %v3599, %v3627
        %v3629 = vpop.f32.mrf.mxu0
        %v3630 = vadd.f32 %v3601, %v3629
        %3631 = vmatmul.bf16.gmra.mxu0 %v3386
        %v3632 = vpop.f32.mrf.mxu0
        %v3633 = vadd.f32 %v3604, %v3632
        %v3634 = vpop.f32.mrf.mxu0
        %v3635 = vadd.f32 %v3606, %v3634
        %3636 = vmatmul.bf16.gmra.mxu0 %v3389
        %v3637 = vpop.f32.mrf.mxu0
        %v3638 = vadd.f32 %v3609, %v3637
        %v3639 = vpop.f32.mrf.mxu0
        %v3640 = vadd.f32 %v3611, %v3639
        %3641 = vdwg.mxu0
        %3642 = vmatpush.bf16.msra.mxu0 %v3559
        %3643 = vmatpush.bf16.msra.mxu0 %v3558
        %3644 = vmatpush.bf16.msra.mxu0 %v3557
        %3645 = vmatpush.bf16.msra.mxu0 %v3556
        %3646 = vmatpush.bf16.msra.mxu0 %v3555
        %3647 = vmatpush.bf16.msra.mxu0 %v3554
        %3648 = vmatpush.bf16.msra.mxu0 %v3553
        %3649 = vmatpush.bf16.msra.mxu0 %v3552
        %3650 = vmatmul.bf16.gmra.mxu0 %v3381
        %v3651 = vpop.f32.mrf.mxu0
        %v3652 = vadd.f32 %v3623, %v3651
        %v3653 = vpop.f32.mrf.mxu0
        %v3654 = vadd.f32 %v3625, %v3653
        %3655 = vmatmul.bf16.gmra.mxu0 %v3384
        %v3656 = vpop.f32.mrf.mxu0
        %v3657 = vadd.f32 %v3628, %v3656
        %v3658 = vpop.f32.mrf.mxu0
        %v3659 = vadd.f32 %v3630, %v3658
        %3660 = vmatmul.bf16.gmra.mxu0 %v3387
        %v3661 = vpop.f32.mrf.mxu0
        %v3662 = vadd.f32 %v3633, %v3661
        %v3663 = vpop.f32.mrf.mxu0
        %v3664 = vadd.f32 %v3635, %v3663
        %3665 = vmatmul.bf16.gmra.mxu0 %v3390
        %v3666 = vpop.f32.mrf.mxu0
        %v3667 = vadd.f32 %v3638, %v3666
        %v3668 = vpop.f32.mrf.mxu0
        %v3669 = vadd.f32 %v3640, %v3668
        %3670 = vdwg.mxu0
        %v3671 = vadd.f32 %v3347, %v3652
        %v3672 = vadd.f32 %v3348, %v3654
        %v3673 = vadd.f32 %v3349, %v3657
        %v3674 = vadd.f32 %v3350, %v3659
        %v3675 = vadd.f32 %v3351, %v3662
        %v3676 = vadd.f32 %v3352, %v3664
        %v3677 = vadd.f32 %v3353, %v3667
        %v3678 = vadd.f32 %v3354, %v3669
        %s3679 = scalar_lea.vmem [#allocation2], 48
        %v3680 = vld [vmem:[%s3679] sm:$0xff]
        %v3681 = vld [vmem:[%s3679 + $0x8] sm:$0xff]
        %v3682 = vld [vmem:[%s3679 + $0x10] sm:$0xff]
        %v3683 = vld [vmem:[%s3679 + $0x18] sm:$0xff]
        %v3684 = vld [vmem:[%s3679 + $0x20] sm:$0xff]
        %v3685 = vld [vmem:[%s3679 + $0x28] sm:$0xff]
        %v3686 = vld [vmem:[%s3679 + $0x30] sm:$0xff]
        %v3687 = vld [vmem:[%s3679 + $0x38] sm:$0xff]
        %v3688 = vld [vmem:[%s3679 + $0x40] sm:$0xff]
        %v3689 = vld [vmem:[%s3679 + $0x48] sm:$0xff]
        %v3690 = vld [vmem:[%s3679 + $0x50] sm:$0xff]
        %v3691 = vld [vmem:[%s3679 + $0x58] sm:$0xff]
        %v3692 = vld [vmem:[%s3679 + $0x60] sm:$0xff]
        %v3693 = vld [vmem:[%s3679 + $0x68] sm:$0xff]
        %v3694 = vld [vmem:[%s3679 + $0x70] sm:$0xff]
        %v3695 = vld [vmem:[%s3679 + $0x78] sm:$0xff]
        %v3696 = vld [vmem:[%s3679 + $0x80] sm:$0xff]
        %v3697 = vld [vmem:[%s3679 + $0x88] sm:$0xff]
        %v3698 = vld [vmem:[%s3679 + $0x90] sm:$0xff]
        %v3699 = vld [vmem:[%s3679 + $0x98] sm:$0xff]
        %v3700 = vld [vmem:[%s3679 + $0xa0] sm:$0xff]
        %v3701 = vld [vmem:[%s3679 + $0xa8] sm:$0xff]
        %v3702 = vld [vmem:[%s3679 + $0xb0] sm:$0xff]
        %v3703 = vld [vmem:[%s3679 + $0xb8] sm:$0xff]
        %v3704 = vpack.c.bf16 %v3683, %v3680
        %v3705 = vpack.c.bf16 %v3684, %v3681
        %v3706 = vpack.c.bf16 %v3685, %v3682
        %v3707 = vpack.c.bf16 %v3689, %v3686
        %v3708 = vpack.c.bf16 %v3690, %v3687
        %v3709 = vpack.c.bf16 %v3691, %v3688
        %v3710 = vpack.c.bf16 %v3695, %v3692
        %v3711 = vpack.c.bf16 %v3696, %v3693
        %v3712 = vpack.c.bf16 %v3697, %v3694
        %v3713 = vpack.c.bf16 %v3701, %v3698
        %v3714 = vpack.c.bf16 %v3702, %v3699
        %v3715 = vpack.c.bf16 %v3703, %v3700
        %s3716 = scalar_lea.vmem %s3, 768
        %v3717 = vld [vmem:[%s3716] sm:$0xf]
        %v3718 = vld [vmem:[%s3716 + $0x4] sm:$0xf]
        %v3719 = vld [vmem:[%s3716 + $0x8] sm:$0xf]
        %v3720 = vld [vmem:[%s3716 + $0xc] sm:$0xf]
        %v3721 = vld [vmem:[%s3716 + $0x10] sm:$0xf]
        %v3722 = vld [vmem:[%s3716 + $0x14] sm:$0xf]
        %v3723 = vld [vmem:[%s3716 + $0x18] sm:$0xf]
        %v3724 = vld [vmem:[%s3716 + $0x1c] sm:$0xf]
        %v3725 = vld [vmem:[%s3716 + $0x20] sm:$0xf]
        %v3726 = vld [vmem:[%s3716 + $0x24] sm:$0xf]
        %v3727 = vld [vmem:[%s3716 + $0x28] sm:$0xf]
        %v3728 = vld [vmem:[%s3716 + $0x2c] sm:$0xf]
        %v3729 = vld [vmem:[%s3716 + $0x30] sm:$0xf]
        %v3730 = vld [vmem:[%s3716 + $0x34] sm:$0xf]
        %v3731 = vld [vmem:[%s3716 + $0x38] sm:$0xf]
        %v3732 = vld [vmem:[%s3716 + $0x3c] sm:$0xf]
        %v3733 = vld [vmem:[%s3716 + $0x40] sm:$0xf]
        %v3734 = vld [vmem:[%s3716 + $0x44] sm:$0xf]
        %v3735 = vld [vmem:[%s3716 + $0x48] sm:$0xf]
        %v3736 = vld [vmem:[%s3716 + $0x4c] sm:$0xf]
        %v3737 = vld [vmem:[%s3716 + $0x50] sm:$0xf]
        %v3738 = vld [vmem:[%s3716 + $0x54] sm:$0xf]
        %v3739 = vld [vmem:[%s3716 + $0x58] sm:$0xf]
        %v3740 = vld [vmem:[%s3716 + $0x5c] sm:$0xf]
        %v3741 = vld [vmem:[%s3716 + $0x60] sm:$0xf]
        %v3742 = vld [vmem:[%s3716 + $0x64] sm:$0xf]
        %v3743 = vld [vmem:[%s3716 + $0x68] sm:$0xf]
        %v3744 = vld [vmem:[%s3716 + $0x6c] sm:$0xf]
        %v3745 = vld [vmem:[%s3716 + $0x70] sm:$0xf]
        %v3746 = vld [vmem:[%s3716 + $0x74] sm:$0xf]
        %v3747 = vld [vmem:[%s3716 + $0x78] sm:$0xf]
        %v3748 = vld [vmem:[%s3716 + $0x7c] sm:$0xf]
        %v3749 = vld [vmem:[%s3716 + $0x80] sm:$0xf]
        %v3750 = vld [vmem:[%s3716 + $0x84] sm:$0xf]
        %v3751 = vld [vmem:[%s3716 + $0x88] sm:$0xf]
        %v3752 = vld [vmem:[%s3716 + $0x8c] sm:$0xf]
        %v3753 = vld [vmem:[%s3716 + $0x90] sm:$0xf]
        %v3754 = vld [vmem:[%s3716 + $0x94] sm:$0xf]
        %v3755 = vld [vmem:[%s3716 + $0x98] sm:$0xf]
        %v3756 = vld [vmem:[%s3716 + $0x9c] sm:$0xf]
        %v3757 = vld [vmem:[%s3716 + $0xa0] sm:$0xf]
        %v3758 = vld [vmem:[%s3716 + $0xa4] sm:$0xf]
        %v3759 = vld [vmem:[%s3716 + $0xa8] sm:$0xf]
        %v3760 = vld [vmem:[%s3716 + $0xac] sm:$0xf]
        %v3761 = vld [vmem:[%s3716 + $0xb0] sm:$0xf]
        %v3762 = vld [vmem:[%s3716 + $0xb4] sm:$0xf]
        %v3763 = vld [vmem:[%s3716 + $0xb8] sm:$0xf]
        %v3764 = vld [vmem:[%s3716 + $0xbc] sm:$0xf]
        %v3813 = vunpack.c.l.b16 %v3717
        %v3814 = vunpack.c.l.b16 %v3718
        %v3815 = vunpack.c.l.b16 %v3719
        %v3816 = vunpack.c.l.b16 %v3720
        %v3817 = vunpack.c.l.b16 %v3721
        %v3818 = vunpack.c.l.b16 %v3722
        %v3819 = vunpack.c.l.b16 %v3723
        %v3820 = vunpack.c.l.b16 %v3724
        %v3821 = vunpack.c.l.b16 %v3725
        %v3822 = vunpack.c.l.b16 %v3726
        %v3823 = vunpack.c.l.b16 %v3727
        %v3824 = vunpack.c.l.b16 %v3728
        %v3825 = vunpack.c.l.b16 %v3729
        %v3826 = vunpack.c.l.b16 %v3730
        %v3827 = vunpack.c.l.b16 %v3731
        %v3828 = vunpack.c.l.b16 %v3732
        %v3829 = vunpack.c.l.b16 %v3733
        %v3830 = vunpack.c.l.b16 %v3734
        %v3831 = vunpack.c.l.b16 %v3735
        %v3832 = vunpack.c.l.b16 %v3736
        %v3833 = vunpack.c.l.b16 %v3737
        %v3834 = vunpack.c.l.b16 %v3738
        %v3835 = vunpack.c.l.b16 %v3739
        %v3836 = vunpack.c.l.b16 %v3740
        %v3837 = vunpack.c.l.b16 %v3741
        %v3838 = vunpack.c.l.b16 %v3742
        %v3839 = vunpack.c.l.b16 %v3743
        %v3840 = vunpack.c.l.b16 %v3744
        %v3841 = vunpack.c.l.b16 %v3745
        %v3842 = vunpack.c.l.b16 %v3746
        %v3843 = vunpack.c.l.b16 %v3747
        %v3844 = vunpack.c.l.b16 %v3748
        %v3845 = vunpack.c.l.b16 %v3749
        %v3846 = vunpack.c.l.b16 %v3750
        %v3847 = vunpack.c.l.b16 %v3751
        %v3848 = vunpack.c.l.b16 %v3752
        %v3849 = vunpack.c.l.b16 %v3753
        %v3850 = vunpack.c.l.b16 %v3754
        %v3851 = vunpack.c.l.b16 %v3755
        %v3852 = vunpack.c.l.b16 %v3756
        %v3853 = vunpack.c.l.b16 %v3757
        %v3854 = vunpack.c.l.b16 %v3758
        %v3855 = vunpack.c.l.b16 %v3759
        %v3856 = vunpack.c.l.b16 %v3760
        %v3857 = vunpack.c.l.b16 %v3761
        %v3858 = vunpack.c.l.b16 %v3762
        %v3859 = vunpack.c.l.b16 %v3763
        %v3860 = vunpack.c.l.b16 %v3764
        %v3861 = vpack.c.b16 %v3814, %v3813
        %v3862 = vpack.c.b16 %v3816, %v3815
        %v3863 = vpack.c.b16 %v3818, %v3817
        %v3864 = vpack.c.b16 %v3820, %v3819
        %v3865 = vpack.c.b16 %v3822, %v3821
        %v3866 = vpack.c.b16 %v3824, %v3823
        %v3867 = vpack.c.b16 %v3826, %v3825
        %v3868 = vpack.c.b16 %v3828, %v3827
        %v3869 = vpack.c.b16 %v3830, %v3829
        %v3870 = vpack.c.b16 %v3832, %v3831
        %v3871 = vpack.c.b16 %v3834, %v3833
        %v3872 = vpack.c.b16 %v3836, %v3835
        %v3873 = vpack.c.b16 %v3838, %v3837
        %v3874 = vpack.c.b16 %v3840, %v3839
        %v3875 = vpack.c.b16 %v3842, %v3841
        %v3876 = vpack.c.b16 %v3844, %v3843
        %v3877 = vpack.c.b16 %v3846, %v3845
        %v3878 = vpack.c.b16 %v3848, %v3847
        %v3879 = vpack.c.b16 %v3850, %v3849
        %v3880 = vpack.c.b16 %v3852, %v3851
        %v3881 = vpack.c.b16 %v3854, %v3853
        %v3882 = vpack.c.b16 %v3856, %v3855
        %v3883 = vpack.c.b16 %v3858, %v3857
        %v3884 = vpack.c.b16 %v3860, %v3859
        %3909 = vmatpush.bf16.msra.mxu0 %v3868
        %3910 = vmatpush.bf16.msra.mxu0 %v3867
        %3911 = vmatpush.bf16.msra.mxu0 %v3866
        %3912 = vmatpush.bf16.msra.mxu0 %v3865
        %3913 = vmatpush.bf16.msra.mxu0 %v3864
        %3914 = vmatpush.bf16.msra.mxu0 %v3863
        %3915 = vmatpush.bf16.msra.mxu0 %v3862
        %3916 = vmatpush.bf16.msra.mxu0 %v3861
        %3917 = vmatmul.bf16.gmra.mxu0 %v3704
        %v3918 = vpop.f32.mrf.mxu0
        %v3919 = vadd.f32 0.0, %v3918
        %v3920 = vpop.f32.mrf.mxu0
        %v3921 = vadd.f32 0.0, %v3920
        %3922 = vmatmul.bf16.gmra.mxu0 %v3707
        %v3923 = vpop.f32.mrf.mxu0
        %v3924 = vadd.f32 0.0, %v3923
        %v3925 = vpop.f32.mrf.mxu0
        %v3926 = vadd.f32 0.0, %v3925
        %3927 = vmatmul.bf16.gmra.mxu0 %v3710
        %v3928 = vpop.f32.mrf.mxu0
        %v3929 = vadd.f32 0.0, %v3928
        %v3930 = vpop.f32.mrf.mxu0
        %v3931 = vadd.f32 0.0, %v3930
        %3932 = vmatmul.bf16.gmra.mxu0 %v3713
        %v3933 = vpop.f32.mrf.mxu0
        %v3934 = vadd.f32 0.0, %v3933
        %v3935 = vpop.f32.mrf.mxu0
        %v3936 = vadd.f32 0.0, %v3935
        %3937 = vdwg.mxu0
        %3938 = vmatpush.bf16.msra.mxu0 %v3876
        %3939 = vmatpush.bf16.msra.mxu0 %v3875
        %3940 = vmatpush.bf16.msra.mxu0 %v3874
        %3941 = vmatpush.bf16.msra.mxu0 %v3873
        %3942 = vmatpush.bf16.msra.mxu0 %v3872
        %3943 = vmatpush.bf16.msra.mxu0 %v3871
        %3944 = vmatpush.bf16.msra.mxu0 %v3870
        %3945 = vmatpush.bf16.msra.mxu0 %v3869
        %3946 = vmatmul.bf16.gmra.mxu0 %v3705
        %v3947 = vpop.f32.mrf.mxu0
        %v3948 = vadd.f32 %v3919, %v3947
        %v3949 = vpop.f32.mrf.mxu0
        %v3950 = vadd.f32 %v3921, %v3949
        %3951 = vmatmul.bf16.gmra.mxu0 %v3708
        %v3952 = vpop.f32.mrf.mxu0
        %v3953 = vadd.f32 %v3924, %v3952
        %v3954 = vpop.f32.mrf.mxu0
        %v3955 = vadd.f32 %v3926, %v3954
        %3956 = vmatmul.bf16.gmra.mxu0 %v3711
        %v3957 = vpop.f32.mrf.mxu0
        %v3958 = vadd.f32 %v3929, %v3957
        %v3959 = vpop.f32.mrf.mxu0
        %v3960 = vadd.f32 %v3931, %v3959
        %3961 = vmatmul.bf16.gmra.mxu0 %v3714
        %v3962 = vpop.f32.mrf.mxu0
        %v3963 = vadd.f32 %v3934, %v3962
        %v3964 = vpop.f32.mrf.mxu0
        %v3965 = vadd.f32 %v3936, %v3964
        %3966 = vdwg.mxu0
        %3967 = vmatpush.bf16.msra.mxu0 %v3884
        %3968 = vmatpush.bf16.msra.mxu0 %v3883
        %3969 = vmatpush.bf16.msra.mxu0 %v3882
        %3970 = vmatpush.bf16.msra.mxu0 %v3881
        %3971 = vmatpush.bf16.msra.mxu0 %v3880
        %3972 = vmatpush.bf16.msra.mxu0 %v3879
        %3973 = vmatpush.bf16.msra.mxu0 %v3878
        %3974 = vmatpush.bf16.msra.mxu0 %v3877
        %3975 = vmatmul.bf16.gmra.mxu0 %v3706
        %v3976 = vpop.f32.mrf.mxu0
        %v3977 = vadd.f32 %v3948, %v3976
        %v3978 = vpop.f32.mrf.mxu0
        %v3979 = vadd.f32 %v3950, %v3978
        %3980 = vmatmul.bf16.gmra.mxu0 %v3709
        %v3981 = vpop.f32.mrf.mxu0
        %v3982 = vadd.f32 %v3953, %v3981
        %v3983 = vpop.f32.mrf.mxu0
        %v3984 = vadd.f32 %v3955, %v3983
        %3985 = vmatmul.bf16.gmra.mxu0 %v3712
        %v3986 = vpop.f32.mrf.mxu0
        %v3987 = vadd.f32 %v3958, %v3986
        %v3988 = vpop.f32.mrf.mxu0
        %v3989 = vadd.f32 %v3960, %v3988
        %3990 = vmatmul.bf16.gmra.mxu0 %v3715
        %v3991 = vpop.f32.mrf.mxu0
        %v3992 = vadd.f32 %v3963, %v3991
        %v3993 = vpop.f32.mrf.mxu0
        %v3994 = vadd.f32 %v3965, %v3993
        %3995 = vdwg.mxu0
        %v3996 = vadd.f32 %v3671, %v3977
        %v3997 = vadd.f32 %v3672, %v3979
        %v3998 = vadd.f32 %v3673, %v3982
        %v3999 = vadd.f32 %v3674, %v3984
        %v4000 = vadd.f32 %v3675, %v3987
        %v4001 = vadd.f32 %v3676, %v3989
        %v4002 = vadd.f32 %v3677, %v3992
        %v4003 = vadd.f32 %v3678, %v3994
        %v4004 = vld [vmem:[%s4] sm:$0x1]
        %v4006 = vperm.slane %v4004, 0
        %v4008 = vadd.f32 %v3996, %v4006
        %v4009 = vadd.f32 %v3997, %v4006
        %v4010 = vadd.f32 %v3998, %v4006
        %v4011 = vadd.f32 %v3999, %v4006
        %v4012 = vadd.f32 %v4000, %v4006
        %v4013 = vadd.f32 %v4001, %v4006
        %v4014 = vadd.f32 %v4002, %v4006
        %v4015 = vadd.f32 %v4003, %v4006
        %v4016 = vmax.f32 %v4008, 0.0
        %v4017 = vmax.f32 %v4009, 0.0
        %v4018 = vmax.f32 %v4010, 0.0
        %v4019 = vmax.f32 %v4011, 0.0
        %v4020 = vmax.f32 %v4012, 0.0
        %v4021 = vmax.f32 %v4013, 0.0
        %v4022 = vmax.f32 %v4014, 0.0
        %v4023 = vmax.f32 %v4015, 0.0
        %s4024 = scalar_lea.vmem [#allocation3], 8
        %4025 = vst [vmem:[%s4024] sm:$0xff] %v4016
        %4026 = vst [vmem:[%s4024 + $0x8] sm:$0xff] %v4018
        %4027 = vst [vmem:[%s4024 + $0x10] sm:$0xff] %v4020
        %4028 = vst [vmem:[%s4024 + $0x18] sm:$0xff] %v4022
        %s4029 = scalar_lea.vmem [#allocation3], 56
        %4030 = vst [vmem:[%s4029] sm:$0xff] %v4017
        %4031 = vst [vmem:[%s4029 + $0x8] sm:$0xff] %v4019
        %4032 = vst [vmem:[%s4029 + $0x10] sm:$0xff] %v4021
        %4033 = vst [vmem:[%s4029 + $0x18] sm:$0xff] %v4023
        %4034 = vst [vmem:[#allocation3] sm:$0xff] 0.0
        %s4035 = scalar_lea.vmem [#allocation3], 48
        %4036 = vst [vmem:[%s4035] sm:$0xff] 0.0
        %s4037 = scalar_lea.vmem [#allocation3], 40
        %4038 = vst [vmem:[%s4037] sm:$0xff] 0.0
        %s4039 = scalar_lea.vmem [#allocation3], 88
        %4040 = vst [vmem:[%s4039] sm:$0xff] 0.0
        %v4041 = vld [vmem:[#allocation3] sm:$0xff]
        %v4042 = vld [vmem:[#allocation3 + $0x8] sm:$0xff]
        %v4043 = vld [vmem:[#allocation3 + $0x10] sm:$0xff]
        %v4044 = vld [vmem:[#allocation3 + $0x18] sm:$0xff]
        %v4045 = vpack.c.bf16 %v4042, %v4041
        %v4046 = vpack.c.bf16 %v4044, %v4043
        %v4047 = vld [vmem:[%s5] sm:$0xf]
        %v4048 = vld [vmem:[%s5 + $0x4] sm:$0xf]
        %v4049 = vld [vmem:[%s5 + $0x8] sm:$0xf]
        %v4050 = vld [vmem:[%s5 + $0xc] sm:$0xf]
        %v4051 = vld [vmem:[%s5 + $0x10] sm:$0xf]
        %v4052 = vld [vmem:[%s5 + $0x14] sm:$0xf]
        %v4053 = vld [vmem:[%s5 + $0x18] sm:$0xf]
        %v4054 = vld [vmem:[%s5 + $0x1c] sm:$0xf]
        %v4055 = vld [vmem:[%s5 + $0x20] sm:$0xf]
        %v4056 = vld [vmem:[%s5 + $0x24] sm:$0xf]
        %v4057 = vld [vmem:[%s5 + $0x28] sm:$0xf]
        %v4058 = vld [vmem:[%s5 + $0x2c] sm:$0xf]
        %v4059 = vld [vmem:[%s5 + $0x30] sm:$0xf]
        %v4060 = vld [vmem:[%s5 + $0x34] sm:$0xf]
        %v4061 = vld [vmem:[%s5 + $0x38] sm:$0xf]
        %v4062 = vld [vmem:[%s5 + $0x3c] sm:$0xf]
        %v4063 = vld [vmem:[%s4035] sm:$0xff]
        %v4064 = vld [vmem:[%s4035 + $0x8] sm:$0xff]
        %v4065 = vld [vmem:[%s4035 + $0x10] sm:$0xff]
        %v4066 = vld [vmem:[%s4035 + $0x18] sm:$0xff]
        %v4067 = vpack.c.bf16 %v4064, %v4063
        %v4068 = vpack.c.bf16 %v4066, %v4065
        %s4069 = scalar_lea.vmem %s5, 64
        %v4070 = vld [vmem:[%s4069] sm:$0xf]
        %v4071 = vld [vmem:[%s4069 + $0x4] sm:$0xf]
        %v4072 = vld [vmem:[%s4069 + $0x8] sm:$0xf]
        %v4073 = vld [vmem:[%s4069 + $0xc] sm:$0xf]
        %v4074 = vld [vmem:[%s4069 + $0x10] sm:$0xf]
        %v4075 = vld [vmem:[%s4069 + $0x14] sm:$0xf]
        %v4076 = vld [vmem:[%s4069 + $0x18] sm:$0xf]
        %v4077 = vld [vmem:[%s4069 + $0x1c] sm:$0xf]
        %v4078 = vld [vmem:[%s4069 + $0x20] sm:$0xf]
        %v4079 = vld [vmem:[%s4069 + $0x24] sm:$0xf]
        %v4080 = vld [vmem:[%s4069 + $0x28] sm:$0xf]
        %v4081 = vld [vmem:[%s4069 + $0x2c] sm:$0xf]
        %v4082 = vld [vmem:[%s4069 + $0x30] sm:$0xf]
        %v4083 = vld [vmem:[%s4069 + $0x34] sm:$0xf]
        %v4084 = vld [vmem:[%s4069 + $0x38] sm:$0xf]
        %v4085 = vld [vmem:[%s4069 + $0x3c] sm:$0xf]
        %v4102 = vunpack.c.l.b16 %v4070
        %v4103 = vunpack.c.l.b16 %v4071
        %v4104 = vunpack.c.l.b16 %v4072
        %v4105 = vunpack.c.l.b16 %v4073
        %v4106 = vunpack.c.l.b16 %v4074
        %v4107 = vunpack.c.l.b16 %v4075
        %v4108 = vunpack.c.l.b16 %v4076
        %v4109 = vunpack.c.l.b16 %v4077
        %v4110 = vunpack.c.l.b16 %v4078
        %v4111 = vunpack.c.l.b16 %v4079
        %v4112 = vunpack.c.l.b16 %v4080
        %v4113 = vunpack.c.l.b16 %v4081
        %v4114 = vunpack.c.l.b16 %v4082
        %v4115 = vunpack.c.l.b16 %v4083
        %v4116 = vunpack.c.l.b16 %v4084
        %v4117 = vunpack.c.l.b16 %v4085
        %v4118 = vpack.c.b16 %v4103, %v4102
        %v4119 = vpack.c.b16 %v4105, %v4104
        %v4120 = vpack.c.b16 %v4107, %v4106
        %v4121 = vpack.c.b16 %v4109, %v4108
        %v4122 = vpack.c.b16 %v4111, %v4110
        %v4123 = vpack.c.b16 %v4113, %v4112
        %v4124 = vpack.c.b16 %v4115, %v4114
        %v4125 = vpack.c.b16 %v4117, %v4116
        %4134 = vmatpush.bf16.msra.mxu0 %v4125
        %4135 = vmatpush.bf16.msra.mxu0 %v4124
        %4136 = vmatpush.bf16.msra.mxu0 %v4123
        %4137 = vmatpush.bf16.msra.mxu0 %v4122
        %4138 = vmatpush.bf16.msra.mxu0 %v4121
        %4139 = vmatpush.bf16.msra.mxu0 %v4120
        %4140 = vmatpush.bf16.msra.mxu0 %v4119
        %4141 = vmatpush.bf16.msra.mxu0 %v4118
        %4142 = vmatmul.bf16.gmra.mxu0 %v4067
        %v4143 = vpop.f32.mrf.mxu0
        %v4144 = vadd.f32 0.0, %v4143
        %v4145 = vpop.f32.mrf.mxu0
        %v4146 = vadd.f32 0.0, %v4145
        %4147 = vmatmul.bf16.gmra.mxu0 %v4068
        %v4148 = vpop.f32.mrf.mxu0
        %v4149 = vadd.f32 0.0, %v4148
        %v4150 = vpop.f32.mrf.mxu0
        %v4151 = vadd.f32 0.0, %v4150
        %4152 = vdwg.mxu0
        %v4169 = vunpack.c.l.b16 %v4047
        %v4170 = vunpack.c.l.b16 %v4048
        %v4171 = vunpack.c.l.b16 %v4049
        %v4172 = vunpack.c.l.b16 %v4050
        %v4173 = vunpack.c.l.b16 %v4051
        %v4174 = vunpack.c.l.b16 %v4052
        %v4175 = vunpack.c.l.b16 %v4053
        %v4176 = vunpack.c.l.b16 %v4054
        %v4177 = vunpack.c.l.b16 %v4055
        %v4178 = vunpack.c.l.b16 %v4056
        %v4179 = vunpack.c.l.b16 %v4057
        %v4180 = vunpack.c.l.b16 %v4058
        %v4181 = vunpack.c.l.b16 %v4059
        %v4182 = vunpack.c.l.b16 %v4060
        %v4183 = vunpack.c.l.b16 %v4061
        %v4184 = vunpack.c.l.b16 %v4062
        %v4185 = vpack.c.b16 %v4170, %v4169
        %v4186 = vpack.c.b16 %v4172, %v4171
        %v4187 = vpack.c.b16 %v4174, %v4173
        %v4188 = vpack.c.b16 %v4176, %v4175
        %v4189 = vpack.c.b16 %v4178, %v4177
        %v4190 = vpack.c.b16 %v4180, %v4179
        %v4191 = vpack.c.b16 %v4182, %v4181
        %v4192 = vpack.c.b16 %v4184, %v4183
        %4201 = vmatpush.bf16.msra.mxu0 %v4192
        %4202 = vmatpush.bf16.msra.mxu0 %v4191
        %4203 = vmatpush.bf16.msra.mxu0 %v4190
        %4204 = vmatpush.bf16.msra.mxu0 %v4189
        %4205 = vmatpush.bf16.msra.mxu0 %v4188
        %4206 = vmatpush.bf16.msra.mxu0 %v4187
        %4207 = vmatpush.bf16.msra.mxu0 %v4186
        %4208 = vmatpush.bf16.msra.mxu0 %v4185
        %4209 = vmatmul.bf16.gmra.mxu0 %v4045
        %v4210 = vpop.f32.mrf.mxu0
        %v4211 = vadd.f32 %v4144, %v4210
        %v4212 = vpop.f32.mrf.mxu0
        %v4213 = vadd.f32 %v4146, %v4212
        %4214 = vmatmul.bf16.gmra.mxu0 %v4046
        %v4215 = vpop.f32.mrf.mxu0
        %v4216 = vadd.f32 %v4149, %v4215
        %v4217 = vpop.f32.mrf.mxu0
        %v4218 = vadd.f32 %v4151, %v4217
        %4219 = vdwg.mxu0
        %v4220 = vld [vmem:[%s4024] sm:$0xff]
        %v4221 = vld [vmem:[%s4024 + $0x8] sm:$0xff]
        %v4222 = vld [vmem:[%s4024 + $0x10] sm:$0xff]
        %v4223 = vld [vmem:[%s4024 + $0x18] sm:$0xff]
        %v4224 = vpack.c.bf16 %v4221, %v4220
        %v4225 = vpack.c.bf16 %v4223, %v4222
        %s4226 = scalar_lea.vmem %s5, 128
        %v4227 = vld [vmem:[%s4226] sm:$0xf]
        %v4228 = vld [vmem:[%s4226 + $0x4] sm:$0xf]
        %v4229 = vld [vmem:[%s4226 + $0x8] sm:$0xf]
        %v4230 = vld [vmem:[%s4226 + $0xc] sm:$0xf]
        %v4231 = vld [vmem:[%s4226 + $0x10] sm:$0xf]
        %v4232 = vld [vmem:[%s4226 + $0x14] sm:$0xf]
        %v4233 = vld [vmem:[%s4226 + $0x18] sm:$0xf]
        %v4234 = vld [vmem:[%s4226 + $0x1c] sm:$0xf]
        %v4235 = vld [vmem:[%s4226 + $0x20] sm:$0xf]
        %v4236 = vld [vmem:[%s4226 + $0x24] sm:$0xf]
        %v4237 = vld [vmem:[%s4226 + $0x28] sm:$0xf]
        %v4238 = vld [vmem:[%s4226 + $0x2c] sm:$0xf]
        %v4239 = vld [vmem:[%s4226 + $0x30] sm:$0xf]
        %v4240 = vld [vmem:[%s4226 + $0x34] sm:$0xf]
        %v4241 = vld [vmem:[%s4226 + $0x38] sm:$0xf]
        %v4242 = vld [vmem:[%s4226 + $0x3c] sm:$0xf]
        %v4259 = vunpack.c.l.b16 %v4227
        %v4260 = vunpack.c.l.b16 %v4228
        %v4261 = vunpack.c.l.b16 %v4229
        %v4262 = vunpack.c.l.b16 %v4230
        %v4263 = vunpack.c.l.b16 %v4231
        %v4264 = vunpack.c.l.b16 %v4232
        %v4265 = vunpack.c.l.b16 %v4233
        %v4266 = vunpack.c.l.b16 %v4234
        %v4267 = vunpack.c.l.b16 %v4235
        %v4268 = vunpack.c.l.b16 %v4236
        %v4269 = vunpack.c.l.b16 %v4237
        %v4270 = vunpack.c.l.b16 %v4238
        %v4271 = vunpack.c.l.b16 %v4239
        %v4272 = vunpack.c.l.b16 %v4240
        %v4273 = vunpack.c.l.b16 %v4241
        %v4274 = vunpack.c.l.b16 %v4242
        %v4275 = vpack.c.b16 %v4260, %v4259
        %v4276 = vpack.c.b16 %v4262, %v4261
        %v4277 = vpack.c.b16 %v4264, %v4263
        %v4278 = vpack.c.b16 %v4266, %v4265
        %v4279 = vpack.c.b16 %v4268, %v4267
        %v4280 = vpack.c.b16 %v4270, %v4269
        %v4281 = vpack.c.b16 %v4272, %v4271
        %v4282 = vpack.c.b16 %v4274, %v4273
        %4291 = vmatpush.bf16.msra.mxu0 %v4282
        %4292 = vmatpush.bf16.msra.mxu0 %v4281
        %4293 = vmatpush.bf16.msra.mxu0 %v4280
        %4294 = vmatpush.bf16.msra.mxu0 %v4279
        %4295 = vmatpush.bf16.msra.mxu0 %v4278
        %4296 = vmatpush.bf16.msra.mxu0 %v4277
        %4297 = vmatpush.bf16.msra.mxu0 %v4276
        %4298 = vmatpush.bf16.msra.mxu0 %v4275
        %4299 = vmatmul.bf16.gmra.mxu0 %v4224
        %v4300 = vpop.f32.mrf.mxu0
        %v4301 = vadd.f32 0.0, %v4300
        %v4302 = vpop.f32.mrf.mxu0
        %v4303 = vadd.f32 0.0, %v4302
        %4304 = vmatmul.bf16.gmra.mxu0 %v4225
        %v4305 = vpop.f32.mrf.mxu0
        %v4306 = vadd.f32 0.0, %v4305
        %v4307 = vpop.f32.mrf.mxu0
        %v4308 = vadd.f32 0.0, %v4307
        %4309 = vdwg.mxu0
        %v4310 = vadd.f32 %v4211, %v4301
        %v4311 = vadd.f32 %v4213, %v4303
        %v4312 = vadd.f32 %v4216, %v4306
        %v4313 = vadd.f32 %v4218, %v4308
        %v4314 = vld [vmem:[%s4029] sm:$0xff]
        %v4315 = vld [vmem:[%s4029 + $0x8] sm:$0xff]
        %v4316 = vld [vmem:[%s4029 + $0x10] sm:$0xff]
        %v4317 = vld [vmem:[%s4029 + $0x18] sm:$0xff]
        %v4318 = vpack.c.bf16 %v4315, %v4314
        %v4319 = vpack.c.bf16 %v4317, %v4316
        %s4320 = scalar_lea.vmem %s5, 192
        %v4321 = vld [vmem:[%s4320] sm:$0xf]
        %v4322 = vld [vmem:[%s4320 + $0x4] sm:$0xf]
        %v4323 = vld [vmem:[%s4320 + $0x8] sm:$0xf]
        %v4324 = vld [vmem:[%s4320 + $0xc] sm:$0xf]
        %v4325 = vld [vmem:[%s4320 + $0x10] sm:$0xf]
        %v4326 = vld [vmem:[%s4320 + $0x14] sm:$0xf]
        %v4327 = vld [vmem:[%s4320 + $0x18] sm:$0xf]
        %v4328 = vld [vmem:[%s4320 + $0x1c] sm:$0xf]
        %v4329 = vld [vmem:[%s4320 + $0x20] sm:$0xf]
        %v4330 = vld [vmem:[%s4320 + $0x24] sm:$0xf]
        %v4331 = vld [vmem:[%s4320 + $0x28] sm:$0xf]
        %v4332 = vld [vmem:[%s4320 + $0x2c] sm:$0xf]
        %v4333 = vld [vmem:[%s4320 + $0x30] sm:$0xf]
        %v4334 = vld [vmem:[%s4320 + $0x34] sm:$0xf]
        %v4335 = vld [vmem:[%s4320 + $0x38] sm:$0xf]
        %v4336 = vld [vmem:[%s4320 + $0x3c] sm:$0xf]
        %v4353 = vunpack.c.l.b16 %v4321
        %v4354 = vunpack.c.l.b16 %v4322
        %v4355 = vunpack.c.l.b16 %v4323
        %v4356 = vunpack.c.l.b16 %v4324
        %v4357 = vunpack.c.l.b16 %v4325
        %v4358 = vunpack.c.l.b16 %v4326
        %v4359 = vunpack.c.l.b16 %v4327
        %v4360 = vunpack.c.l.b16 %v4328
        %v4361 = vunpack.c.l.b16 %v4329
        %v4362 = vunpack.c.l.b16 %v4330
        %v4363 = vunpack.c.l.b16 %v4331
        %v4364 = vunpack.c.l.b16 %v4332
        %v4365 = vunpack.c.l.b16 %v4333
        %v4366 = vunpack.c.l.b16 %v4334
        %v4367 = vunpack.c.l.b16 %v4335
        %v4368 = vunpack.c.l.b16 %v4336
        %v4369 = vpack.c.b16 %v4354, %v4353
        %v4370 = vpack.c.b16 %v4356, %v4355
        %v4371 = vpack.c.b16 %v4358, %v4357
        %v4372 = vpack.c.b16 %v4360, %v4359
        %v4373 = vpack.c.b16 %v4362, %v4361
        %v4374 = vpack.c.b16 %v4364, %v4363
        %v4375 = vpack.c.b16 %v4366, %v4365
        %v4376 = vpack.c.b16 %v4368, %v4367
        %4385 = vmatpush.bf16.msra.mxu0 %v4376
        %4386 = vmatpush.bf16.msra.mxu0 %v4375
        %4387 = vmatpush.bf16.msra.mxu0 %v4374
        %4388 = vmatpush.bf16.msra.mxu0 %v4373
        %4389 = vmatpush.bf16.msra.mxu0 %v4372
        %4390 = vmatpush.bf16.msra.mxu0 %v4371
        %4391 = vmatpush.bf16.msra.mxu0 %v4370
        %4392 = vmatpush.bf16.msra.mxu0 %v4369
        %4393 = vmatmul.bf16.gmra.mxu0 %v4318
        %v4394 = vpop.f32.mrf.mxu0
        %v4395 = vadd.f32 0.0, %v4394
        %v4396 = vpop.f32.mrf.mxu0
        %v4397 = vadd.f32 0.0, %v4396
        %4398 = vmatmul.bf16.gmra.mxu0 %v4319
        %v4399 = vpop.f32.mrf.mxu0
        %v4400 = vadd.f32 0.0, %v4399
        %v4401 = vpop.f32.mrf.mxu0
        %v4402 = vadd.f32 0.0, %v4401
        %4403 = vdwg.mxu0
        %v4404 = vadd.f32 %v4310, %v4395
        %v4405 = vadd.f32 %v4311, %v4397
        %v4406 = vadd.f32 %v4312, %v4400
        %v4407 = vadd.f32 %v4313, %v4402
        %s4408 = scalar_lea.vmem [#allocation3], 16
        %v4409 = vld [vmem:[%s4408] sm:$0xff]
        %v4410 = vld [vmem:[%s4408 + $0x8] sm:$0xff]
        %v4411 = vld [vmem:[%s4408 + $0x10] sm:$0xff]
        %v4412 = vld [vmem:[%s4408 + $0x18] sm:$0xff]
        %v4413 = vpack.c.bf16 %v4410, %v4409
        %v4414 = vpack.c.bf16 %v4412, %v4411
        %s4415 = scalar_lea.vmem %s5, 256
        %v4416 = vld [vmem:[%s4415] sm:$0xf]
        %v4417 = vld [vmem:[%s4415 + $0x4] sm:$0xf]
        %v4418 = vld [vmem:[%s4415 + $0x8] sm:$0xf]
        %v4419 = vld [vmem:[%s4415 + $0xc] sm:$0xf]
        %v4420 = vld [vmem:[%s4415 + $0x10] sm:$0xf]
        %v4421 = vld [vmem:[%s4415 + $0x14] sm:$0xf]
        %v4422 = vld [vmem:[%s4415 + $0x18] sm:$0xf]
        %v4423 = vld [vmem:[%s4415 + $0x1c] sm:$0xf]
        %v4424 = vld [vmem:[%s4415 + $0x20] sm:$0xf]
        %v4425 = vld [vmem:[%s4415 + $0x24] sm:$0xf]
        %v4426 = vld [vmem:[%s4415 + $0x28] sm:$0xf]
        %v4427 = vld [vmem:[%s4415 + $0x2c] sm:$0xf]
        %v4428 = vld [vmem:[%s4415 + $0x30] sm:$0xf]
        %v4429 = vld [vmem:[%s4415 + $0x34] sm:$0xf]
        %v4430 = vld [vmem:[%s4415 + $0x38] sm:$0xf]
        %v4431 = vld [vmem:[%s4415 + $0x3c] sm:$0xf]
        %v4448 = vunpack.c.l.b16 %v4416
        %v4449 = vunpack.c.l.b16 %v4417
        %v4450 = vunpack.c.l.b16 %v4418
        %v4451 = vunpack.c.l.b16 %v4419
        %v4452 = vunpack.c.l.b16 %v4420
        %v4453 = vunpack.c.l.b16 %v4421
        %v4454 = vunpack.c.l.b16 %v4422
        %v4455 = vunpack.c.l.b16 %v4423
        %v4456 = vunpack.c.l.b16 %v4424
        %v4457 = vunpack.c.l.b16 %v4425
        %v4458 = vunpack.c.l.b16 %v4426
        %v4459 = vunpack.c.l.b16 %v4427
        %v4460 = vunpack.c.l.b16 %v4428
        %v4461 = vunpack.c.l.b16 %v4429
        %v4462 = vunpack.c.l.b16 %v4430
        %v4463 = vunpack.c.l.b16 %v4431
        %v4464 = vpack.c.b16 %v4449, %v4448
        %v4465 = vpack.c.b16 %v4451, %v4450
        %v4466 = vpack.c.b16 %v4453, %v4452
        %v4467 = vpack.c.b16 %v4455, %v4454
        %v4468 = vpack.c.b16 %v4457, %v4456
        %v4469 = vpack.c.b16 %v4459, %v4458
        %v4470 = vpack.c.b16 %v4461, %v4460
        %v4471 = vpack.c.b16 %v4463, %v4462
        %4480 = vmatpush.bf16.msra.mxu0 %v4471
        %4481 = vmatpush.bf16.msra.mxu0 %v4470
        %4482 = vmatpush.bf16.msra.mxu0 %v4469
        %4483 = vmatpush.bf16.msra.mxu0 %v4468
        %4484 = vmatpush.bf16.msra.mxu0 %v4467
        %4485 = vmatpush.bf16.msra.mxu0 %v4466
        %4486 = vmatpush.bf16.msra.mxu0 %v4465
        %4487 = vmatpush.bf16.msra.mxu0 %v4464
        %4488 = vmatmul.bf16.gmra.mxu0 %v4413
        %v4489 = vpop.f32.mrf.mxu0
        %v4490 = vadd.f32 0.0, %v4489
        %v4491 = vpop.f32.mrf.mxu0
        %v4492 = vadd.f32 0.0, %v4491
        %4493 = vmatmul.bf16.gmra.mxu0 %v4414
        %v4494 = vpop.f32.mrf.mxu0
        %v4495 = vadd.f32 0.0, %v4494
        %v4496 = vpop.f32.mrf.mxu0
        %v4497 = vadd.f32 0.0, %v4496
        %4498 = vdwg.mxu0
        %v4499 = vadd.f32 %v4404, %v4490
        %v4500 = vadd.f32 %v4405, %v4492
        %v4501 = vadd.f32 %v4406, %v4495
        %v4502 = vadd.f32 %v4407, %v4497
        %v4503 = vld [vmem:[%s6] sm:$0x1]
        %v4505 = vperm.slane %v4503, 0
        %v4507 = vadd.f32 %v4499, %v4505
        %v4508 = vadd.f32 %v4500, %v4505
        %v4509 = vadd.f32 %v4501, %v4505
        %v4510 = vadd.f32 %v4502, %v4505
        %v4511 = vmax.f32 %v4507, 0.0
        %v4512 = vmax.f32 %v4508, 0.0
        %v4513 = vmax.f32 %v4509, 0.0
        %v4514 = vmax.f32 %v4510, 0.0
        %s4515 = scalar_lea.vmem [#allocation4], 8
        %vm4516 = vcmask 392192
        %4517 = vst.msk [vmem:[%s4515] sm:$0xff] %vm4516, %v4511
        %4518 = vst.msk [vmem:[%s4515 + $0x8] sm:$0xff] %vm4516, %v4513
        %s4519 = scalar_lea.vmem [#allocation4], 40
        %4520 = vst.msk [vmem:[%s4519] sm:$0xff] %vm4516, %v4512
        %4521 = vst.msk [vmem:[%s4519 + $0x8] sm:$0xff] %vm4516, %v4514
        %4522 = vst.msk [vmem:[#allocation4] sm:$0xff] %vm4516, 0.0
        %s4523 = scalar_lea.vmem [#allocation4], 32
        %4524 = vst.msk [vmem:[%s4523] sm:$0xff] %vm4516, 0.0
        %s4525 = scalar_lea.vmem [#allocation4], 24
        %4526 = vst.msk [vmem:[%s4525] sm:$0xff] %vm4516, 0.0
        %s4527 = scalar_lea.vmem [#allocation4], 56
        %4528 = vst.msk [vmem:[%s4527] sm:$0xff] %vm4516, 0.0
        %v4529 = vld [vmem:[#allocation4] sm:$0xff]
        %v4530 = vld [vmem:[#allocation4 + $0x8] sm:$0xff]
        %v4531 = vpack.c.bf16 %v4530, %v4529
        %v4532 = vld [vmem:[%s7] sm:$0xf]
        %v4533 = vld [vmem:[%s7 + $0x4] sm:$0xf]
        %v4534 = vld [vmem:[%s7 + $0x8] sm:$0xf]
        %v4535 = vld [vmem:[%s7 + $0xc] sm:$0xf]
        %v4536 = vld [vmem:[%s7 + $0x10] sm:$0xf]
        %v4537 = vld [vmem:[%s7 + $0x14] sm:$0xf]
        %v4538 = vld [vmem:[%s4523] sm:$0xff]
        %v4539 = vld [vmem:[%s4523 + $0x8] sm:$0xff]
        %v4540 = vpack.c.bf16 %v4539, %v4538
        %s4541 = scalar_lea.vmem %s7, 24
        %v4542 = vld [vmem:[%s4541] sm:$0xf]
        %v4543 = vld [vmem:[%s4541 + $0x4] sm:$0xf]
        %v4544 = vld [vmem:[%s4541 + $0x8] sm:$0xf]
        %v4545 = vld [vmem:[%s4541 + $0xc] sm:$0xf]
        %v4546 = vld [vmem:[%s4541 + $0x10] sm:$0xf]
        %v4547 = vld [vmem:[%s4541 + $0x14] sm:$0xf]
        %v4554 = vunpack.c.l.b16 %v4542
        %v4555 = vunpack.c.l.b16 %v4543
        %v4556 = vunpack.c.l.b16 %v4544
        %v4557 = vunpack.c.l.b16 %v4545
        %v4558 = vunpack.c.l.b16 %v4546
        %v4559 = vunpack.c.l.b16 %v4547
        %v4560 = vpack.c.b16 %v4555, %v4554
        %v4561 = vpack.c.b16 %v4557, %v4556
        %v4562 = vpack.c.b16 %v4559, %v4558
        %v4567 = vsel %vm4516, %v4540, 0
        %4569 = vmatpush.bf16.msra.mxu0 0
        %4570 = vmatpush.bf16.msra.mxu0 0
        %4571 = vmatpush.bf16.msra.mxu0 0
        %4572 = vmatpush.bf16.msra.mxu0 0
        %4573 = vmatpush.bf16.msra.mxu0 0
        %4574 = vmatpush.bf16.msra.mxu0 %v4562
        %4575 = vmatpush.bf16.msra.mxu0 %v4561
        %4576 = vmatpush.bf16.msra.mxu0 %v4560
        %4577 = vmatmul.bf16.gmra.mxu0 %v4567
        %v4578 = vpop.f32.mrf.mxu0
        %v4579 = vadd.f32 0.0, %v4578
        %v4580 = vpop.f32.mrf.mxu0
        %v4581 = vadd.f32 0.0, %v4580
        %4582 = vdwg.mxu0
        %v4589 = vunpack.c.l.b16 %v4532
        %v4590 = vunpack.c.l.b16 %v4533
        %v4591 = vunpack.c.l.b16 %v4534
        %v4592 = vunpack.c.l.b16 %v4535
        %v4593 = vunpack.c.l.b16 %v4536
        %v4594 = vunpack.c.l.b16 %v4537
        %v4595 = vpack.c.b16 %v4590, %v4589
        %v4596 = vpack.c.b16 %v4592, %v4591
        %v4597 = vpack.c.b16 %v4594, %v4593
        %v4602 = vsel %vm4516, %v4531, 0
        %4604 = vmatpush.bf16.msra.mxu0 0
        %4605 = vmatpush.bf16.msra.mxu0 0
        %4606 = vmatpush.bf16.msra.mxu0 0
        %4607 = vmatpush.bf16.msra.mxu0 0
        %4608 = vmatpush.bf16.msra.mxu0 0
        %4609 = vmatpush.bf16.msra.mxu0 %v4597
        %4610 = vmatpush.bf16.msra.mxu0 %v4596
        %4611 = vmatpush.bf16.msra.mxu0 %v4595
        %4612 = vmatmul.bf16.gmra.mxu0 %v4602
        %v4613 = vpop.f32.mrf.mxu0
        %v4614 = vadd.f32 %v4579, %v4613
        %v4615 = vpop.f32.mrf.mxu0
        %v4616 = vadd.f32 %v4581, %v4615
        %4617 = vdwg.mxu0
        %v4618 = vld [vmem:[%s4515] sm:$0xff]
        %v4619 = vld [vmem:[%s4515 + $0x8] sm:$0xff]
        %v4620 = vpack.c.bf16 %v4619, %v4618
        %s4621 = scalar_lea.vmem %s7, 48
        %v4622 = vld [vmem:[%s4621] sm:$0xf]
        %v4623 = vld [vmem:[%s4621 + $0x4] sm:$0xf]
        %v4624 = vld [vmem:[%s4621 + $0x8] sm:$0xf]
        %v4625 = vld [vmem:[%s4621 + $0xc] sm:$0xf]
        %v4626 = vld [vmem:[%s4621 + $0x10] sm:$0xf]
        %v4627 = vld [vmem:[%s4621 + $0x14] sm:$0xf]
        %v4634 = vunpack.c.l.b16 %v4622
        %v4635 = vunpack.c.l.b16 %v4623
        %v4636 = vunpack.c.l.b16 %v4624
        %v4637 = vunpack.c.l.b16 %v4625
        %v4638 = vunpack.c.l.b16 %v4626
        %v4639 = vunpack.c.l.b16 %v4627
        %v4640 = vpack.c.b16 %v4635, %v4634
        %v4641 = vpack.c.b16 %v4637, %v4636
        %v4642 = vpack.c.b16 %v4639, %v4638
        %v4647 = vsel %vm4516, %v4620, 0
        %4649 = vmatpush.bf16.msra.mxu0 0
        %4650 = vmatpush.bf16.msra.mxu0 0
        %4651 = vmatpush.bf16.msra.mxu0 0
        %4652 = vmatpush.bf16.msra.mxu0 0
        %4653 = vmatpush.bf16.msra.mxu0 0
        %4654 = vmatpush.bf16.msra.mxu0 %v4642
        %4655 = vmatpush.bf16.msra.mxu0 %v4641
        %4656 = vmatpush.bf16.msra.mxu0 %v4640
        %4657 = vmatmul.bf16.gmra.mxu0 %v4647
        %v4658 = vpop.f32.mrf.mxu0
        %v4659 = vadd.f32 0.0, %v4658
        %v4660 = vpop.f32.mrf.mxu0
        %v4661 = vadd.f32 0.0, %v4660
        %4662 = vdwg.mxu0
        %v4663 = vadd.f32 %v4614, %v4659
        %v4664 = vadd.f32 %v4616, %v4661
        %v4665 = vld [vmem:[%s4519] sm:$0xff]
        %v4666 = vld [vmem:[%s4519 + $0x8] sm:$0xff]
        %v4667 = vpack.c.bf16 %v4666, %v4665
        %s4668 = scalar_lea.vmem %s7, 72
        %v4669 = vld [vmem:[%s4668] sm:$0xf]
        %v4670 = vld [vmem:[%s4668 + $0x4] sm:$0xf]
        %v4671 = vld [vmem:[%s4668 + $0x8] sm:$0xf]
        %v4672 = vld [vmem:[%s4668 + $0xc] sm:$0xf]
        %v4673 = vld [vmem:[%s4668 + $0x10] sm:$0xf]
        %v4674 = vld [vmem:[%s4668 + $0x14] sm:$0xf]
        %v4681 = vunpack.c.l.b16 %v4669
        %v4682 = vunpack.c.l.b16 %v4670
        %v4683 = vunpack.c.l.b16 %v4671
        %v4684 = vunpack.c.l.b16 %v4672
        %v4685 = vunpack.c.l.b16 %v4673
        %v4686 = vunpack.c.l.b16 %v4674
        %v4687 = vpack.c.b16 %v4682, %v4681
        %v4688 = vpack.c.b16 %v4684, %v4683
        %v4689 = vpack.c.b16 %v4686, %v4685
        %v4694 = vsel %vm4516, %v4667, 0
        %4696 = vmatpush.bf16.msra.mxu0 0
        %4697 = vmatpush.bf16.msra.mxu0 0
        %4698 = vmatpush.bf16.msra.mxu0 0
        %4699 = vmatpush.bf16.msra.mxu0 0
        %4700 = vmatpush.bf16.msra.mxu0 0
        %4701 = vmatpush.bf16.msra.mxu0 %v4689
        %4702 = vmatpush.bf16.msra.mxu0 %v4688
        %4703 = vmatpush.bf16.msra.mxu0 %v4687
        %4704 = vmatmul.bf16.gmra.mxu0 %v4694
        %v4705 = vpop.f32.mrf.mxu0
        %v4706 = vadd.f32 0.0, %v4705
        %v4707 = vpop.f32.mrf.mxu0
        %v4708 = vadd.f32 0.0, %v4707
        %4709 = vdwg.mxu0
        %v4710 = vadd.f32 %v4663, %v4706
        %v4711 = vadd.f32 %v4664, %v4708
        %s4712 = scalar_lea.vmem [#allocation4], 16
        %v4713 = vld [vmem:[%s4712] sm:$0xff]
        %v4714 = vld [vmem:[%s4712 + $0x8] sm:$0xff]
        %v4715 = vpack.c.bf16 %v4714, %v4713
        %s4716 = scalar_lea.vmem %s7, 96
        %v4717 = vld [vmem:[%s4716] sm:$0xf]
        %v4718 = vld [vmem:[%s4716 + $0x4] sm:$0xf]
        %v4719 = vld [vmem:[%s4716 + $0x8] sm:$0xf]
        %v4720 = vld [vmem:[%s4716 + $0xc] sm:$0xf]
        %v4721 = vld [vmem:[%s4716 + $0x10] sm:$0xf]
        %v4722 = vld [vmem:[%s4716 + $0x14] sm:$0xf]
        %v4729 = vunpack.c.l.b16 %v4717
        %v4730 = vunpack.c.l.b16 %v4718
        %v4731 = vunpack.c.l.b16 %v4719
        %v4732 = vunpack.c.l.b16 %v4720
        %v4733 = vunpack.c.l.b16 %v4721
        %v4734 = vunpack.c.l.b16 %v4722
        %v4735 = vpack.c.b16 %v4730, %v4729
        %v4736 = vpack.c.b16 %v4732, %v4731
        %v4737 = vpack.c.b16 %v4734, %v4733
        %v4742 = vsel %vm4516, %v4715, 0
        %4744 = vmatpush.bf16.msra.mxu0 0
        %4745 = vmatpush.bf16.msra.mxu0 0
        %4746 = vmatpush.bf16.msra.mxu0 0
        %4747 = vmatpush.bf16.msra.mxu0 0
        %4748 = vmatpush.bf16.msra.mxu0 0
        %4749 = vmatpush.bf16.msra.mxu0 %v4737
        %4750 = vmatpush.bf16.msra.mxu0 %v4736
        %4751 = vmatpush.bf16.msra.mxu0 %v4735
        %4752 = vmatmul.bf16.gmra.mxu0 %v4742
        %v4753 = vpop.f32.mrf.mxu0
        %v4754 = vadd.f32 0.0, %v4753
        %v4755 = vpop.f32.mrf.mxu0
        %v4756 = vadd.f32 0.0, %v4755
        %4757 = vdwg.mxu0
        %v4758 = vadd.f32 %v4710, %v4754
        %v4759 = vadd.f32 %v4711, %v4756
        %v4760 = vld [vmem:[%s8] sm:$0x1]
        %v4762 = vperm.slane %v4760, 0
        %v4764 = vadd.f32 %v4758, %v4762
        %v4765 = vadd.f32 %v4759, %v4762
        %vm4766 = vcmask 130048
        %4767 = vst.msk [vmem:[%s501] sm:$0xff] %vm4766, %v4764
        %4768 = vst.msk [vmem:[%s501 + $0x8] sm:$0xff] %vm4766, %v4765
        %s4769 = sand.u32 %s222, 1
        %s4770 = sand.u32 %s222, 1
        %s4771 = smul.addr %s4770, 16
        %s4772 = scalar_lea.vmem [#allocation6], %s4771
        // Predicated region
        $region95: #{encoder_forward.1} parent=89 // pred_check
          %p4773 = pneg %p232
        $region96: #{encoder_forward.1} parent=89 // pred_check_branch
          %4775 = sbr.rel (%p4773) target = $region98
        $region97: #{encoder_forward.1} parent=89 // pred_region
          %s4776 = smul.addr %s20, 8
          %s4777 = scalar_lea.vmem %s9, %s4776
          // Predicated region
          $region99: #{encoder_forward.1} parent=97 // pred_check
            _
          $region100: #{encoder_forward.1} parent=97 // pred_check_branch
            %4779 = sbr.rel (0) target = $region102
          $region101: #{encoder_forward.1} parent=97 // pred_region
            // Predicated region
            $region103: #{encoder_forward.1} parent=101 // pred_check
              _
            $region104: #{encoder_forward.1} parent=101 // pred_check_branch
              %4781 = sbr.rel (0) target = $region106
            $region105: #{encoder_forward.1} parent=101 // pred_region
              // Predicated region
              $region118: #{encoder_forward.1} parent=105 // pred_check
                _
              $region119: #{encoder_forward.1} parent=105 // pred_check_branch
                %4799 = sbr.rel (0) target = $region121
              $region120: #{encoder_forward.1} parent=105 // pred_region
                loop: start=0, step=1, limit=1
                $region122: #{encoder_forward.1} parent=120 // loop_pre_header
                  _
                $region123: #{encoder_forward.1} parent=120 // loop_header
                  %s4801 = sphi 0, %s4805
                  %p4802 = scmp.ge.s32.totalorder %s4801, 1
                  %s4806 = sphi %s4772, %s4772
                  %s4807 = sphi %s4777, %s4777
                $region124: #{encoder_forward.1} parent=120 // loop_header_branch
                  %4804 = sbr.rel (%p4802) target = $region128
                $region125: #{encoder_forward.1} parent=120 // loop_body
                  %v4808 = vld [vmem:[%s4806] sm:$0xff]
                  %4809 = vst [vmem:[%s4807] sm:$0xff] %v4808
                  %v4810 = vld [vmem:[%s4806 + $0x8] sm:$0xff]
                  %4811 = vst [vmem:[%s4807 + $0x10] sm:$0xff] %v4810
                $region126: #{encoder_forward.1} parent=120 // loop_footer
                  %s4805 = sadd.s32 1, %s4801
                $region127: #{encoder_forward.1} parent=120 // loop_footer_branch
                  %4800 = sbr.rel target = $region123
                $region128: #{encoder_forward.1} parent=120 // loop_exit
                  _
              $region121: #{encoder_forward.1} parent=105 // pred_fallthru
                _
              // Predicated region
              $region129: #{encoder_forward.1} parent=105 // pred_check
                _
              $region130: #{encoder_forward.1} parent=105 // pred_check_branch
                %4813 = sbr.rel target = $region132
              $region131: #{encoder_forward.1} parent=105 // pred_region
                _
              $region132: #{encoder_forward.1} parent=105 // pred_fallthru
                _
            $region106: #{encoder_forward.1} parent=101 // pred_fallthru
              _
            // Predicated region
            $region107: #{encoder_forward.1} parent=101 // pred_check
              _
            $region108: #{encoder_forward.1} parent=101 // pred_check_branch
              %4783 = sbr.rel target = $region110
            $region109: #{encoder_forward.1} parent=101 // pred_region
              %s4785 = ssub.s32 256, 1
              loop: start=0, step=1, limit=1
              $region111: #{encoder_forward.1} parent=109 // loop_pre_header
                _
              $region112: #{encoder_forward.1} parent=109 // loop_header
                %s4787 = sphi 0, %s4791
                %p4788 = scmp.ge.s32.totalorder %s4787, 1
                %s4792 = sphi %s4772, %s4772
                %s4793 = sphi %s4777, %s4777
              $region113: #{encoder_forward.1} parent=109 // loop_header_branch
                %4790 = sbr.rel (%p4788) target = $region117
              $region114: #{encoder_forward.1} parent=109 // loop_body
                %v4794 = vld [vmem:[%s4792] sm:%s4785]
                %4795 = vst [vmem:[%s4793] sm:%s4785] %v4794
                %v4796 = vld [vmem:[%s4792 + $0x8] sm:%s4785]
                %4797 = vst [vmem:[%s4793 + $0x10] sm:%s4785] %v4796
              $region115: #{encoder_forward.1} parent=109 // loop_footer
                %s4791 = sadd.s32 1, %s4787
              $region116: #{encoder_forward.1} parent=109 // loop_footer_branch
                %4786 = sbr.rel target = $region112
              $region117: #{encoder_forward.1} parent=109 // loop_exit
                _
            $region110: #{encoder_forward.1} parent=101 // pred_fallthru
              _
          $region102: #{encoder_forward.1} parent=97 // pred_fallthru
            _
          %4814 = vnop
        $region98: #{encoder_forward.1} parent=89 // pred_fallthru
          _
      $region90: #{encoder_forward.1} parent=5 // pred_fallthru
        _
      %p4815 = scmp.le.s32.totalorder 2, %s15
      // Predicated region
      $region133: #{encoder_forward.1} parent=5 // pred_check
        %p4816 = pneg %p4815
      $region134: #{encoder_forward.1} parent=5 // pred_check_branch
        %4818 = sbr.rel (%p4816) target = $region136
      $region135: #{encoder_forward.1} parent=5 // pred_region
        %s4819 = ssub.s32 %s15, 2
        // Predicated region
        $region137: #{encoder_forward.1} parent=135 // pred_check
          %p4820 = pneg %p238
        $region138: #{encoder_forward.1} parent=135 // pred_check_branch
          %4822 = sbr.rel (%p4820) target = $region140
        $region139: #{encoder_forward.1} parent=135 // pred_region
          %s4823 = sand.u32 %s223, 1
          %s4824 = sand.u32 %s223, 1
          %s4825 = smul.addr %s4824, 16
          %s4826 = scalar_lea.vmem [#allocation6], %s4825
        $region140: #{encoder_forward.1} parent=135 // pred_fallthru
          _
      $region136: #{encoder_forward.1} parent=5 // pred_fallthru
        _
    $region6: #{encoder_forward.1} parent=1 // loop_footer
      %s19 = sadd.s32 1, %s15
    $region7: #{encoder_forward.1} parent=1 // loop_footer_branch
      %14 = sbr.rel target = $region3
    $region8: #{encoder_forward.1} parent=1 // loop_exit
      _

</llo_original>
